<compile_context>
chip_gen: v6e
topology: v6e:2x2x1
jax: 0.10.0
libtpu: 0.0.40
codegen_flags: <defaults>
</compile_context>

<pallas_src>
import jax
import jax.numpy as jnp
from jax.experimental import pallas as pl
from jax.experimental.pallas import tpu as pltpu


def _resmod_kernel(x_ref, lo_ref, hi_ref, w1_ref, b1_ref, w2_ref, b2_ref,
                   o_ref, xwin_ref, h1pad_ref):
    """Per-tile fused ResMod.

    x_ref    : (1, TH, W, Cin)      centre rows of this H-tile
    lo_ref   : (1, 1, 2, W, Cin)    2-row top halo (zeros at image boundary)
    hi_ref   : (1, 1, 2, W, Cin)    2-row bottom halo
    w1_ref   : (9, Cin, Cmid)       conv1 weights, tap-major (dy*3+dx)
    b1_ref   : (1, Cmid)            conv1 bias (f32)
    w2_ref   : (9, Cmid, Cout)      conv2 weights, tap-major
    b2_ref   : (1, Cout)            conv2 bias (f32)
    o_ref    : (1, TH, W, Cout)     output tile (f32)
    xwin_ref : (TH+4, W+2, Cin)     scratch: staged halo window
    h1pad_ref: (TH+2, W+2, Cmid)    scratch: conv1 activation + 1-col W halo
    """
    _, TH, W, Cin = x_ref.shape
    Cmid = w1_ref.shape[-1]
    Cout = w2_ref.shape[-1]
    cdt = x_ref.dtype

    # ---- stage the (TH+4, W+2, Cin) halo window once per tile ------------
    # rows: [2-row top halo | TH centre rows | 2-row bottom halo]
    # cols: [1 zero col | W data cols | 1 zero col]  (image boundary in W)
    xwin_ref[:, 0:1, :] = jnp.zeros((TH + 4, 1, Cin), cdt)
    xwin_ref[:, W + 1:W + 2, :] = jnp.zeros((TH + 4, 1, Cin), cdt)
    xwin_ref[0:2, 1:W + 1, :] = lo_ref[0, 0]
    xwin_ref[2:TH + 2, 1:W + 1, :] = x_ref[0]
    xwin_ref[TH + 2:TH + 4, 1:W + 1, :] = hi_ref[0, 0]

    # ---- conv1: 3x3 'same', Cin -> Cmid, on TH+2 rows (incl. 1-row halo) --
    M1 = (TH + 2) * W
    acc1 = jnp.zeros((M1, Cmid), jnp.float32)
    for t in range(9):
        dy, dx = divmod(t, 3)
        patch = xwin_ref[dy:dy + TH + 2, dx:dx + W, :].reshape(M1, Cin)
        acc1 = acc1 + jnp.dot(patch, w1_ref[t],
                              preferred_element_type=jnp.float32)
    h1 = acc1 + b1_ref[...]                      # (M1, Cmid), f32

    # Zero out-of-image rows so conv2 sees proper 'same' padding at the image
    # top/bottom; interior tile boundaries keep the recomputed real rows.
    h1 = h1.reshape(TH + 2, W, Cmid)
    hb = pl.program_id(1)
    row = jax.lax.broadcasted_iota(jnp.int32, (TH + 2, 1, 1), 0)
    keep = jnp.logical_and(
        jnp.logical_or(row > 0, hb > 0),
        jnp.logical_or(row < TH + 1, hb < pl.num_programs(1) - 1))
    h1 = jnp.where(keep, h1, 0.0)

    # ---- stage conv1 activation; zero only the 1-col W halo ring ----------
    h1pad_ref[:, 0:1, :] = jnp.zeros((TH + 2, 1, Cmid), cdt)
    h1pad_ref[:, W + 1:W + 2, :] = jnp.zeros((TH + 2, 1, Cmid), cdt)
    h1pad_ref[:, 1:W + 1, :] = h1.astype(cdt)

    # ---- conv2: 3x3 'same', Cmid -> Cout ----------------------------------
    M2 = TH * W
    acc2 = jnp.zeros((M2, Cout), jnp.float32)
    for t in range(9):
        dy, dx = divmod(t, 3)
        patch = h1pad_ref[dy:dy + TH, dx:dx + W, :].reshape(M2, Cmid)
        acc2 = acc2 + jnp.dot(patch, w2_ref[t],
                              preferred_element_type=jnp.float32)
    h2 = acc2 + b2_ref[...]                      # (M2, Cout), f32

    # TODO(synk): norm_mod() is constructed with zero args in the PyTorch
    # module (shape-agnostic); treated as identity here.
    y = jnp.maximum(h2, 0.0)                                  # ReLU (f32)
    out = y.reshape(TH, W, Cout) + x_ref[0].astype(jnp.float32)  # residual
    o_ref[0] = out.astype(o_ref.dtype)


def _tile_vmem_bytes(TH, W, C, in_item):
    """Rough per-grid-step VMEM working set (double-buffered I/O blocks)."""
    cmid = max(C // 2, 1)
    blk_in = TH * W * C * in_item + 4 * W * C * in_item       # centre + halos
    blk_out = TH * W * C * 4                                  # f32 output
    scratch = ((TH + 4) * (W + 2) * C + (TH + 2) * (W + 2) * cmid) * in_item
    weights = 9 * 2 * C * cmid * in_item + 2 * (C + cmid) * 4
    return 2 * (blk_in + blk_out) + scratch + weights


def _pick_tile_h(H, W, C, in_item, budget_bytes=20 * 1024 * 1024):
    """Largest divisor-of-H tile height that fits a v7x-safe VMEM budget."""
    for th in (128, 64, 32, 16, 8, 4, 2):
        if H % th == 0 and _tile_vmem_bytes(th, W, C, in_item) <= budget_bytes:
            return th
    return H


def resmod_forward(x_nchw, w1_oihw, b1, w2_oihw, b2, *, tile_h=None,
                   compute_dtype=jnp.float32):
    """x_nchw: (N, C, H, W); weights in PyTorch OIHW layout. Returns NCHW f32."""
    N, C, H, W = x_nchw.shape
    Cmid = w1_oihw.shape[0]
    in_item = jnp.dtype(compute_dtype).itemsize

    TH = _pick_tile_h(H, W, C, in_item) if tile_h is None else tile_h
    if H % TH != 0:
        raise ValueError(f"tile_h={TH} must divide H={H}")
    nH = H // TH

    # NCHW -> NHWC (layout glue); matmul/streaming dtype per compute_dtype.
    x = jnp.transpose(x_nchw, (0, 2, 3, 1)).astype(compute_dtype)

    # 2-row halo slabs per H-tile (zero at the image boundary). These are the
    # only extra HBM bytes (4/TH of x); no full padded copy of the input.
    if nH > 1:
        xr = x.reshape(N, nH, TH, W, C)
        z2 = jnp.zeros((N, 1, 2, W, C), compute_dtype)
        lo = jnp.concatenate([z2, xr[:, :-1, TH - 2:TH]], axis=1)
        hi = jnp.concatenate([xr[:, 1:, 0:2], z2], axis=1)
    else:
        lo = jnp.zeros((N, 1, 2, W, C), compute_dtype)
        hi = jnp.zeros((N, 1, 2, W, C), compute_dtype)

    # OIHW -> HWIO -> tap-major (9, I, O)
    w1 = jnp.transpose(w1_oihw, (2, 3, 1, 0)).reshape(9, C, Cmid)
    w2 = jnp.transpose(w2_oihw, (2, 3, 1, 0)).reshape(9, Cmid, C)
    w1 = w1.astype(compute_dtype)
    w2 = w2.astype(compute_dtype)
    b1_2d = b1.reshape(1, Cmid).astype(jnp.float32)
    b2_2d = b2.reshape(1, C).astype(jnp.float32)

    flops = 2 * N * H * W * 9 * (C * Cmid + Cmid * C)
    bytes_accessed = ((x.size + lo.size + hi.size + w1.size + w2.size) * in_item
                      + (b1_2d.size + b2_2d.size) * 4
                      + N * H * W * C * 4)
    cost = pl.CostEstimate(flops=flops, transcendentals=0,
                           bytes_accessed=bytes_accessed)

    out_nhwc = pl.pallas_call(
        _resmod_kernel,
        out_shape=jax.ShapeDtypeStruct((N, H, W, C), jnp.float32),
        grid_spec=pltpu.PrefetchScalarGridSpec(
            num_scalar_prefetch=0,
            grid=(N, nH),
            in_specs=[
                pl.BlockSpec((1, TH, W, C), lambda n, h: (n, h, 0, 0)),
                pl.BlockSpec((1, 1, 2, W, C), lambda n, h: (n, h, 0, 0, 0)),
                pl.BlockSpec((1, 1, 2, W, C), lambda n, h: (n, h, 0, 0, 0)),
                pl.BlockSpec((9, C, Cmid), lambda n, h: (0, 0, 0)),
                pl.BlockSpec((1, Cmid), lambda n, h: (0, 0)),
                pl.BlockSpec((9, Cmid, C), lambda n, h: (0, 0, 0)),
                pl.BlockSpec((1, C), lambda n, h: (0, 0)),
            ],
            out_specs=pl.BlockSpec((1, TH, W, C), lambda n, h: (n, h, 0, 0)),
            scratch_shapes=[
                pltpu.VMEM((TH + 4, W + 2, C), compute_dtype),
                pltpu.VMEM((TH + 2, W + 2, Cmid), compute_dtype),
            ],
        ),
        compiler_params=pltpu.CompilerParams(
            dimension_semantics=("parallel", "parallel"),
            vmem_limit_bytes=32 * 1024 * 1024,
        ),
        cost_estimate=cost,
    )(x, lo, hi, w1, b1_2d, w2, b2_2d)

    return jnp.transpose(out_nhwc, (0, 3, 1, 2))                # back to NCHW


def _reference(x_nchw, w1_oihw, b1, w2_oihw, b2):
    """Pure-JAX f32 reference (NHWC convs) for correctness checks."""
    x = jnp.transpose(x_nchw, (0, 2, 3, 1)).astype(jnp.float32)
    dn = ('NHWC', 'HWIO', 'NHWC')
    w1 = jnp.transpose(w1_oihw, (2, 3, 1, 0)).astype(jnp.float32)
    w2 = jnp.transpose(w2_oihw, (2, 3, 1, 0)).astype(jnp.float32)
    h = jax.lax.conv_general_dilated(x, w1, (1, 1), 'SAME', dimension_numbers=dn)
    h = h + b1.reshape(1, 1, 1, -1)
    h = jax.lax.conv_general_dilated(h, w2, (1, 1), 'SAME', dimension_numbers=dn)
    h = h + b2.reshape(1, 1, 1, -1)
    y = jnp.maximum(h, 0.0) + x
    return jnp.transpose(y, (0, 3, 1, 2))


if __name__ == "__main__":
    N, C, H, W = 2, 4, 16, 16
    cmid = C // 2

    key = jax.random.PRNGKey(0)
    kx, k1, kb1, k2, kb2 = jax.random.split(key, 5)

    x = jax.random.normal(kx, (N, C, H, W), jnp.float32)

    # PyTorch-style deterministic init (uniform +- 1/sqrt(fan_in))
    fan1 = C * 9
    fan2 = cmid * 9
    w1 = jax.random.uniform(k1, (cmid, C, 3, 3), jnp.float32,
                            -1.0 / fan1 ** 0.5, 1.0 / fan1 ** 0.5)
    b1 = jax.random.uniform(kb1, (cmid,), jnp.float32,
                            -1.0 / fan1 ** 0.5, 1.0 / fan1 ** 0.5)
    w2 = jax.random.uniform(k2, (C, cmid, 3, 3), jnp.float32,
                            -1.0 / fan2 ** 0.5, 1.0 / fan2 ** 0.5)
    b2 = jax.random.uniform(kb2, (C,), jnp.float32,
                            -1.0 / fan2 ** 0.5, 1.0 / fan2 ** 0.5)

    ref = jax.block_until_ready(_reference(x, w1, b1, w2, b2))

    # f32 path, 2 H-tiles per image -> exercises the halo exchange. Tight check.
    out = jax.block_until_ready(
        resmod_forward(x, w1, b1, w2, b2, tile_h=8,
                       compute_dtype=jnp.float32))
    assert out.shape == (N, C, H, W), out.shape
    assert jnp.allclose(out, ref, atol=1e-4, rtol=1e-4), float(
        jnp.max(jnp.abs(out - ref)))

    # f32 path, single H tile (boundary-only halos).
    out1 = jax.block_until_ready(
        resmod_forward(x, w1, b1, w2, b2, tile_h=16,
                       compute_dtype=jnp.float32))
    assert jnp.allclose(out1, ref, atol=1e-4, rtol=1e-4), float(
        jnp.max(jnp.abs(out1 - ref)))

    # bf16 streaming/matmul path (preferred on v6e/v7x); f32 accumulation,
    # looser tolerance per bf16 operand rounding.
    outb = jax.block_until_ready(
        resmod_forward(x, w1, b1, w2, b2, tile_h=8,
                       compute_dtype=jnp.bfloat16))
    assert jnp.allclose(outb, ref, atol=3e-2, rtol=3e-2), float(
        jnp.max(jnp.abs(outb - ref)))

    print("KERNEL_OK")
</pallas_src>

<mosaic_0001>
module attributes {stable_mosaic.version = 11 : i64} {
  func.func @_resmod_kernel(%arg0: i32, %arg1: i32, %arg2: memref<1x8x16x4xf32, #tpu.memory_space<vmem>>, %arg3: memref<1x1x2x16x4xf32, #tpu.memory_space<vmem>>, %arg4: memref<1x1x2x16x4xf32, #tpu.memory_space<vmem>>, %arg5: memref<9x4x2xf32, #tpu.memory_space<vmem>>, %arg6: memref<1x2xf32, #tpu.memory_space<vmem>>, %arg7: memref<9x2x4xf32, #tpu.memory_space<vmem>>, %arg8: memref<1x4xf32, #tpu.memory_space<vmem>>, %arg9: memref<1x8x16x4xf32, #tpu.memory_space<vmem>>, %arg10: memref<12x18x4xf32, #tpu.memory_space<vmem>>, %arg11: memref<10x18x2xf32, #tpu.memory_space<vmem>>) attributes {dimension_semantics = [#tpu.dimension_semantics<parallel>, #tpu.dimension_semantics<parallel>], iteration_bounds = array<i64: 2, 2>, scalar_prefetch = 0 : i64, scratch_operands = 2 : i64, tpu.core_type = #tpu.core_type<tc>, window_params = [{transform_indices = @transform_0, window_bounds = array<i64: 1, 8, 16, 4>}, {transform_indices = @transform_1, window_bounds = array<i64: 1, 1, 2, 16, 4>}, {transform_indices = @transform_2, window_bounds = array<i64: 1, 1, 2, 16, 4>}, {pipeline_mode = #tpu.pipeline_mode<synchronous>, transform_indices = @transform_3, window_bounds = array<i64: 9, 4, 2>}, {pipeline_mode = #tpu.pipeline_mode<synchronous>, transform_indices = @transform_4, window_bounds = array<i64: 1, 2>}, {pipeline_mode = #tpu.pipeline_mode<synchronous>, transform_indices = @transform_5, window_bounds = array<i64: 9, 2, 4>}, {pipeline_mode = #tpu.pipeline_mode<synchronous>, transform_indices = @transform_6, window_bounds = array<i64: 1, 4>}, {transform_indices = @transform_7, window_bounds = array<i64: 1, 8, 16, 4>}]} {
    %cst = arith.constant 0.000000e+00 : f32
    %0 = vector.broadcast %cst : f32 to vector<12x1x4xf32>
    %c0 = arith.constant 0 : index
    %c0_0 = arith.constant 0 : index
    %c0_1 = arith.constant 0 : index
    %1 = vector.load %arg10[%c0, %c0_0, %c0_1] : memref<12x18x4xf32, #tpu.memory_space<vmem>>, vector<12x1x4xf32>
    tpu.vector_store %arg10[%c0, %c0_0, %c0_1], %0 {strides = array<i32>} : memref<12x18x4xf32, #tpu.memory_space<vmem>>, vector<12x1x4xf32>,
    %cst_2 = arith.constant 0.000000e+00 : f32
    %2 = vector.broadcast %cst_2 : f32 to vector<12x1x4xf32>
    %c0_3 = arith.constant 0 : index
    %c17 = arith.constant 17 : index
    %c0_4 = arith.constant 0 : index
    %3 = vector.load %arg10[%c0_3, %c17, %c0_4] : memref<12x18x4xf32, #tpu.memory_space<vmem>>, vector<12x1x4xf32>
    tpu.vector_store %arg10[%c0_3, %c17, %c0_4], %2 {strides = array<i32>} : memref<12x18x4xf32, #tpu.memory_space<vmem>>, vector<12x1x4xf32>,
    %c0_5 = arith.constant 0 : index
    %c0_6 = arith.constant 0 : index
    %c0_7 = arith.constant 0 : index
    %c0_8 = arith.constant 0 : index
    %c0_9 = arith.constant 0 : index
    %4 = vector.load %arg3[%c0_5, %c0_6, %c0_7, %c0_8, %c0_9] : memref<1x1x2x16x4xf32, #tpu.memory_space<vmem>>, vector<1x1x2x16x4xf32>
    %5 = vector.shape_cast %4 : vector<1x1x2x16x4xf32> to vector<2x16x4xf32>
    %c0_10 = arith.constant 0 : index
    %c1 = arith.constant 1 : index
    %c0_11 = arith.constant 0 : index
    %6 = vector.load %arg10[%c0_10, %c1, %c0_11] : memref<12x18x4xf32, #tpu.memory_space<vmem>>, vector<2x16x4xf32>
    tpu.vector_store %arg10[%c0_10, %c1, %c0_11], %5 {strides = array<i32>} : memref<12x18x4xf32, #tpu.memory_space<vmem>>, vector<2x16x4xf32>,
    %c0_12 = arith.constant 0 : index
    %c0_13 = arith.constant 0 : index
    %c0_14 = arith.constant 0 : index
    %c0_15 = arith.constant 0 : index
    %7 = vector.load %arg2[%c0_12, %c0_13, %c0_14, %c0_15] : memref<1x8x16x4xf32, #tpu.memory_space<vmem>>, vector<1x8x16x4xf32>
    %8 = vector.shape_cast %7 : vector<1x8x16x4xf32> to vector<8x16x4xf32>
    %c2 = arith.constant 2 : index
    %c1_16 = arith.constant 1 : index
    %c0_17 = arith.constant 0 : index
    %9 = vector.load %arg10[%c2, %c1_16, %c0_17] : memref<12x18x4xf32, #tpu.memory_space<vmem>>, vector<8x16x4xf32>
    tpu.vector_store %arg10[%c2, %c1_16, %c0_17], %8 {strides = array<i32>} : memref<12x18x4xf32, #tpu.memory_space<vmem>>, vector<8x16x4xf32>,
    %c0_18 = arith.constant 0 : index
    %c0_19 = arith.constant 0 : index
    %c0_20 = arith.constant 0 : index
    %c0_21 = arith.constant 0 : index
    %c0_22 = arith.constant 0 : index
    %10 = vector.load %arg4[%c0_18, %c0_19, %c0_20, %c0_21, %c0_22] : memref<1x1x2x16x4xf32, #tpu.memory_space<vmem>>, vector<1x1x2x16x4xf32>
    %11 = vector.shape_cast %10 : vector<1x1x2x16x4xf32> to vector<2x16x4xf32>
    %c10 = arith.constant 10 : index
    %c1_23 = arith.constant 1 : index
    %c0_24 = arith.constant 0 : index
    %12 = vector.load %arg10[%c10, %c1_23, %c0_24] : memref<12x18x4xf32, #tpu.memory_space<vmem>>, vector<2x16x4xf32>
    tpu.vector_store %arg10[%c10, %c1_23, %c0_24], %11 {strides = array<i32>} : memref<12x18x4xf32, #tpu.memory_space<vmem>>, vector<2x16x4xf32>,
    %cst_25 = arith.constant 0.000000e+00 : f32
    %13 = vector.broadcast %cst_25 : f32 to vector<160x2xf32>
    %c0_26 = arith.constant 0 : index
    %c0_27 = arith.constant 0 : index
    %c0_28 = arith.constant 0 : index
    %14 = vector.load %arg10[%c0_26, %c0_27, %c0_28] : memref<12x18x4xf32, #tpu.memory_space<vmem>>, vector<10x16x4xf32>
    %15 = vector.shape_cast %14 : vector<10x16x4xf32> to vector<160x4xf32>
    %c0_29 = arith.constant 0 : index
    %c0_30 = arith.constant 0 : index
    %c0_31 = arith.constant 0 : index
    %16 = vector.load %arg5[%c0_29, %c0_30, %c0_31] : memref<9x4x2xf32, #tpu.memory_space<vmem>>, vector<1x4x2xf32>
    %17 = vector.shape_cast %16 : vector<1x4x2xf32> to vector<4x2xf32>
    %cst_32 = arith.constant dense<0.000000e+00> : vector<160x2xf32>
    %18 = tpu.matmul %15, %17, %cst_32 {dimension_numbers = #tpu.dot_dimension_numbers<[1], [0], [0], [1], [0, 0, 1, 1], [], []>} : vector<160x4xf32>, vector<4x2xf32>, vector<160x2xf32> -> vector<160x2xf32>
    %19 = arith.addf %13, %18 : vector<160x2xf32>
    %c0_33 = arith.constant 0 : index
    %c1_34 = arith.constant 1 : index
    %c0_35 = arith.constant 0 : index
    %20 = vector.load %arg10[%c0_33, %c1_34, %c0_35] : memref<12x18x4xf32, #tpu.memory_space<vmem>>, vector<10x16x4xf32>
    %21 = vector.shape_cast %20 : vector<10x16x4xf32> to vector<160x4xf32>
    %c1_36 = arith.constant 1 : index
    %c0_37 = arith.constant 0 : index
    %c0_38 = arith.constant 0 : index
    %22 = vector.load %arg5[%c1_36, %c0_37, %c0_38] : memref<9x4x2xf32, #tpu.memory_space<vmem>>, vector<1x4x2xf32>
    %23 = vector.shape_cast %22 : vector<1x4x2xf32> to vector<4x2xf32>
    %cst_39 = arith.constant dense<0.000000e+00> : vector<160x2xf32>
    %24 = tpu.matmul %21, %23, %cst_39 {dimension_numbers = #tpu.dot_dimension_numbers<[1], [0], [0], [1], [0, 0, 1, 1], [], []>} : vector<160x4xf32>, vector<4x2xf32>, vector<160x2xf32> -> vector<160x2xf32>
    %25 = arith.addf %19, %24 : vector<160x2xf32>
    %c0_40 = arith.constant 0 : index
    %c2_41 = arith.constant 2 : index
    %c0_42 = arith.constant 0 : index
    %26 = vector.load %arg10[%c0_40, %c2_41, %c0_42] : memref<12x18x4xf32, #tpu.memory_space<vmem>>, vector<10x16x4xf32>
    %27 = vector.shape_cast %26 : vector<10x16x4xf32> to vector<160x4xf32>
    %c2_43 = arith.constant 2 : index
    %c0_44 = arith.constant 0 : index
    %c0_45 = arith.constant 0 : index
    %28 = vector.load %arg5[%c2_43, %c0_44, %c0_45] : memref<9x4x2xf32, #tpu.memory_space<vmem>>, vector<1x4x2xf32>
    %29 = vector.shape_cast %28 : vector<1x4x2xf32> to vector<4x2xf32>
    %cst_46 = arith.constant dense<0.000000e+00> : vector<160x2xf32>
    %30 = tpu.matmul %27, %29, %cst_46 {dimension_numbers = #tpu.dot_dimension_numbers<[1], [0], [0], [1], [0, 0, 1, 1], [], []>} : vector<160x4xf32>, vector<4x2xf32>, vector<160x2xf32> -> vector<160x2xf32>
    %31 = arith.addf %25, %30 : vector<160x2xf32>
    %c1_47 = arith.constant 1 : index
    %c0_48 = arith.constant 0 : index
    %c0_49 = arith.constant 0 : index
    %32 = vector.load %arg10[%c1_47, %c0_48, %c0_49] : memref<12x18x4xf32, #tpu.memory_space<vmem>>, vector<10x16x4xf32>
    %33 = vector.shape_cast %32 : vector<10x16x4xf32> to vector<160x4xf32>
    %c3 = arith.constant 3 : index
    %c0_50 = arith.constant 0 : index
    %c0_51 = arith.constant 0 : index
    %34 = vector.load %arg5[%c3, %c0_50, %c0_51] : memref<9x4x2xf32, #tpu.memory_space<vmem>>, vector<1x4x2xf32>
    %35 = vector.shape_cast %34 : vector<1x4x2xf32> to vector<4x2xf32>
    %cst_52 = arith.constant dense<0.000000e+00> : vector<160x2xf32>
    %36 = tpu.matmul %33, %35, %cst_52 {dimension_numbers = #tpu.dot_dimension_numbers<[1], [0], [0], [1], [0, 0, 1, 1], [], []>} : vector<160x4xf32>, vector<4x2xf32>, vector<160x2xf32> -> vector<160x2xf32>
    %37 = arith.addf %31, %36 : vector<160x2xf32>
    %c1_53 = arith.constant 1 : index
    %c1_54 = arith.constant 1 : index
    %c0_55 = arith.constant 0 : index
    %38 = vector.load %arg10[%c1_53, %c1_54, %c0_55] : memref<12x18x4xf32, #tpu.memory_space<vmem>>, vector<10x16x4xf32>
    %39 = vector.shape_cast %38 : vector<10x16x4xf32> to vector<160x4xf32>
    %c4 = arith.constant 4 : index
    %c0_56 = arith.constant 0 : index
    %c0_57 = arith.constant 0 : index
    %40 = vector.load %arg5[%c4, %c0_56, %c0_57] : memref<9x4x2xf32, #tpu.memory_space<vmem>>, vector<1x4x2xf32>
    %41 = vector.shape_cast %40 : vector<1x4x2xf32> to vector<4x2xf32>
    %cst_58 = arith.constant dense<0.000000e+00> : vector<160x2xf32>
    %42 = tpu.matmul %39, %41, %cst_58 {dimension_numbers = #tpu.dot_dimension_numbers<[1], [0], [0], [1], [0, 0, 1, 1], [], []>} : vector<160x4xf32>, vector<4x2xf32>, vector<160x2xf32> -> vector<160x2xf32>
    %43 = arith.addf %37, %42 : vector<160x2xf32>
    %c1_59 = arith.constant 1 : index
    %c2_60 = arith.constant 2 : index
    %c0_61 = arith.constant 0 : index
    %44 = vector.load %arg10[%c1_59, %c2_60, %c0_61] : memref<12x18x4xf32, #tpu.memory_space<vmem>>, vector<10x16x4xf32>
    %45 = vector.shape_cast %44 : vector<10x16x4xf32> to vector<160x4xf32>
    %c5 = arith.constant 5 : index
    %c0_62 = arith.constant 0 : index
    %c0_63 = arith.constant 0 : index
    %46 = vector.load %arg5[%c5, %c0_62, %c0_63] : memref<9x4x2xf32, #tpu.memory_space<vmem>>, vector<1x4x2xf32>
    %47 = vector.shape_cast %46 : vector<1x4x2xf32> to vector<4x2xf32>
    %cst_64 = arith.constant dense<0.000000e+00> : vector<160x2xf32>
    %48 = tpu.matmul %45, %47, %cst_64 {dimension_numbers = #tpu.dot_dimension_numbers<[1], [0], [0], [1], [0, 0, 1, 1], [], []>} : vector<160x4xf32>, vector<4x2xf32>, vector<160x2xf32> -> vector<160x2xf32>
    %49 = arith.addf %43, %48 : vector<160x2xf32>
    %c2_65 = arith.constant 2 : index
    %c0_66 = arith.constant 0 : index
    %c0_67 = arith.constant 0 : index
    %50 = vector.load %arg10[%c2_65, %c0_66, %c0_67] : memref<12x18x4xf32, #tpu.memory_space<vmem>>, vector<10x16x4xf32>
    %51 = vector.shape_cast %50 : vector<10x16x4xf32> to vector<160x4xf32>
    %c6 = arith.constant 6 : index
    %c0_68 = arith.constant 0 : index
    %c0_69 = arith.constant 0 : index
    %52 = vector.load %arg5[%c6, %c0_68, %c0_69] : memref<9x4x2xf32, #tpu.memory_space<vmem>>, vector<1x4x2xf32>
    %53 = vector.shape_cast %52 : vector<1x4x2xf32> to vector<4x2xf32>
    %cst_70 = arith.constant dense<0.000000e+00> : vector<160x2xf32>
    %54 = tpu.matmul %51, %53, %cst_70 {dimension_numbers = #tpu.dot_dimension_numbers<[1], [0], [0], [1], [0, 0, 1, 1], [], []>} : vector<160x4xf32>, vector<4x2xf32>, vector<160x2xf32> -> vector<160x2xf32>
    %55 = arith.addf %49, %54 : vector<160x2xf32>
    %c2_71 = arith.constant 2 : index
    %c1_72 = arith.constant 1 : index
    %c0_73 = arith.constant 0 : index
    %56 = vector.load %arg10[%c2_71, %c1_72, %c0_73] : memref<12x18x4xf32, #tpu.memory_space<vmem>>, vector<10x16x4xf32>
    %57 = vector.shape_cast %56 : vector<10x16x4xf32> to vector<160x4xf32>
    %c7 = arith.constant 7 : index
    %c0_74 = arith.constant 0 : index
    %c0_75 = arith.constant 0 : index
    %58 = vector.load %arg5[%c7, %c0_74, %c0_75] : memref<9x4x2xf32, #tpu.memory_space<vmem>>, vector<1x4x2xf32>
    %59 = vector.shape_cast %58 : vector<1x4x2xf32> to vector<4x2xf32>
    %cst_76 = arith.constant dense<0.000000e+00> : vector<160x2xf32>
    %60 = tpu.matmul %57, %59, %cst_76 {dimension_numbers = #tpu.dot_dimension_numbers<[1], [0], [0], [1], [0, 0, 1, 1], [], []>} : vector<160x4xf32>, vector<4x2xf32>, vector<160x2xf32> -> vector<160x2xf32>
    %61 = arith.addf %55, %60 : vector<160x2xf32>
    %c2_77 = arith.constant 2 : index
    %c2_78 = arith.constant 2 : index
    %c0_79 = arith.constant 0 : index
    %62 = vector.load %arg10[%c2_77, %c2_78, %c0_79] : memref<12x18x4xf32, #tpu.memory_space<vmem>>, vector<10x16x4xf32>
    %63 = vector.shape_cast %62 : vector<10x16x4xf32> to vector<160x4xf32>
    %c8 = arith.constant 8 : index
    %c0_80 = arith.constant 0 : index
    %c0_81 = arith.constant 0 : index
    %64 = vector.load %arg5[%c8, %c0_80, %c0_81] : memref<9x4x2xf32, #tpu.memory_space<vmem>>, vector<1x4x2xf32>
    %65 = vector.shape_cast %64 : vector<1x4x2xf32> to vector<4x2xf32>
    %cst_82 = arith.constant dense<0.000000e+00> : vector<160x2xf32>
    %66 = tpu.matmul %63, %65, %cst_82 {dimension_numbers = #tpu.dot_dimension_numbers<[1], [0], [0], [1], [0, 0, 1, 1], [], []>} : vector<160x4xf32>, vector<4x2xf32>, vector<160x2xf32> -> vector<160x2xf32>
    %67 = arith.addf %61, %66 : vector<160x2xf32>
    %c0_83 = arith.constant 0 : index
    %c0_84 = arith.constant 0 : index
    %68 = vector.load %arg6[%c0_83, %c0_84] : memref<1x2xf32, #tpu.memory_space<vmem>>, vector<1x2xf32>
    %69 = vector.broadcast %68 : vector<1x2xf32> to vector<160x2xf32>
    %70 = arith.addf %67, %69 : vector<160x2xf32>
    %71 = vector.shape_cast %70 : vector<160x2xf32> to vector<10x16x2xf32>
    %72 = tpu.iota {dimensions = array<i32: 0>} : vector<10x1x1xi32>
    %c0_i32 = arith.constant 0 : i32
    %73 = vector.broadcast %c0_i32 : i32 to vector<10x1x1xi32>
    %74 = arith.cmpi sgt, %72, %73 : vector<10x1x1xi32>
    %c0_i32_85 = arith.constant 0 : i32
    %75 = arith.cmpi sgt, %arg1, %c0_i32_85 : i32
    %76 = vector.broadcast %75 : i1 to vector<10x1x1xi1>
    %77 = arith.ori %74, %76 : vector<10x1x1xi1>
    %c9_i32 = arith.constant 9 : i32
    %78 = vector.broadcast %c9_i32 : i32 to vector<10x1x1xi32>
    %79 = arith.cmpi slt, %72, %78 : vector<10x1x1xi32>
    %c1_i32 = arith.constant 1 : i32
    %80 = arith.cmpi slt, %arg1, %c1_i32 : i32
    %81 = vector.broadcast %80 : i1 to vector<10x1x1xi1>
    %82 = arith.ori %79, %81 : vector<10x1x1xi1>
    %83 = arith.andi %77, %82 : vector<10x1x1xi1>
    %cst_86 = arith.constant 0.000000e+00 : f32
    %84 = vector.shape_cast %83 : vector<10x1x1xi1> to vector<10x1x1xi1>
    %85 = vector.broadcast %84 : vector<10x1x1xi1> to vector<10x16x2xi1>
    %86 = vector.broadcast %cst_86 : f32 to vector<10x16x2xf32>
    %87 = arith.select %85, %71, %86 : vector<10x16x2xi1>, vector<10x16x2xf32>
    %cst_87 = arith.constant 0.000000e+00 : f32
    %88 = vector.broadcast %cst_87 : f32 to vector<10x1x2xf32>
    %c0_88 = arith.constant 0 : index
    %c0_89 = arith.constant 0 : index
    %c0_90 = arith.constant 0 : index
    %89 = vector.load %arg11[%c0_88, %c0_89, %c0_90] : memref<10x18x2xf32, #tpu.memory_space<vmem>>, vector<10x1x2xf32>
    tpu.vector_store %arg11[%c0_88, %c0_89, %c0_90], %88 {strides = array<i32>} : memref<10x18x2xf32, #tpu.memory_space<vmem>>, vector<10x1x2xf32>,
    %cst_91 = arith.constant 0.000000e+00 : f32
    %90 = vector.broadcast %cst_91 : f32 to vector<10x1x2xf32>
    %c0_92 = arith.constant 0 : index
    %c17_93 = arith.constant 17 : index
    %c0_94 = arith.constant 0 : index
    %91 = vector.load %arg11[%c0_92, %c17_93, %c0_94] : memref<10x18x2xf32, #tpu.memory_space<vmem>>, vector<10x1x2xf32>
    tpu.vector_store %arg11[%c0_92, %c17_93, %c0_94], %90 {strides = array<i32>} : memref<10x18x2xf32, #tpu.memory_space<vmem>>, vector<10x1x2xf32>,
    %c0_95 = arith.constant 0 : index
    %c1_96 = arith.constant 1 : index
    %c0_97 = arith.constant 0 : index
    %92 = vector.load %arg11[%c0_95, %c1_96, %c0_97] : memref<10x18x2xf32, #tpu.memory_space<vmem>>, vector<10x16x2xf32>
    tpu.vector_store %arg11[%c0_95, %c1_96, %c0_97], %87 {strides = array<i32>} : memref<10x18x2xf32, #tpu.memory_space<vmem>>, vector<10x16x2xf32>,
    %cst_98 = arith.constant 0.000000e+00 : f32
    %93 = vector.broadcast %cst_98 : f32 to vector<128x4xf32>
    %c0_99 = arith.constant 0 : index
    %c0_100 = arith.constant 0 : index
    %c0_101 = arith.constant 0 : index
    %94 = vector.load %arg11[%c0_99, %c0_100, %c0_101] : memref<10x18x2xf32, #tpu.memory_space<vmem>>, vector<8x16x2xf32>
    %95 = vector.shape_cast %94 : vector<8x16x2xf32> to vector<128x2xf32>
    %c0_102 = arith.constant 0 : index
    %c0_103 = arith.constant 0 : index
    %c0_104 = arith.constant 0 : index
    %96 = vector.load %arg7[%c0_102, %c0_103, %c0_104] : memref<9x2x4xf32, #tpu.memory_space<vmem>>, vector<1x2x4xf32>
    %97 = vector.shape_cast %96 : vector<1x2x4xf32> to vector<2x4xf32>
    %cst_105 = arith.constant dense<0.000000e+00> : vector<128x4xf32>
    %98 = tpu.matmul %95, %97, %cst_105 {dimension_numbers = #tpu.dot_dimension_numbers<[1], [0], [0], [1], [0, 0, 1, 1], [], []>} : vector<128x2xf32>, vector<2x4xf32>, vector<128x4xf32> -> vector<128x4xf32>
    %99 = arith.addf %93, %98 : vector<128x4xf32>
    %c0_106 = arith.constant 0 : index
    %c1_107 = arith.constant 1 : index
    %c0_108 = arith.constant 0 : index
    %100 = vector.load %arg11[%c0_106, %c1_107, %c0_108] : memref<10x18x2xf32, #tpu.memory_space<vmem>>, vector<8x16x2xf32>
    %101 = vector.shape_cast %100 : vector<8x16x2xf32> to vector<128x2xf32>
    %c1_109 = arith.constant 1 : index
    %c0_110 = arith.constant 0 : index
    %c0_111 = arith.constant 0 : index
    %102 = vector.load %arg7[%c1_109, %c0_110, %c0_111] : memref<9x2x4xf32, #tpu.memory_space<vmem>>, vector<1x2x4xf32>
    %103 = vector.shape_cast %102 : vector<1x2x4xf32> to vector<2x4xf32>
    %cst_112 = arith.constant dense<0.000000e+00> : vector<128x4xf32>
    %104 = tpu.matmul %101, %103, %cst_112 {dimension_numbers = #tpu.dot_dimension_numbers<[1], [0], [0], [1], [0, 0, 1, 1], [], []>} : vector<128x2xf32>, vector<2x4xf32>, vector<128x4xf32> -> vector<128x4xf32>
    %105 = arith.addf %99, %104 : vector<128x4xf32>
    %c0_113 = arith.constant 0 : index
    %c2_114 = arith.constant 2 : index
    %c0_115 = arith.constant 0 : index
    %106 = vector.load %arg11[%c0_113, %c2_114, %c0_115] : memref<10x18x2xf32, #tpu.memory_space<vmem>>, vector<8x16x2xf32>
    %107 = vector.shape_cast %106 : vector<8x16x2xf32> to vector<128x2xf32>
    %c2_116 = arith.constant 2 : index
    %c0_117 = arith.constant 0 : index
    %c0_118 = arith.constant 0 : index
    %108 = vector.load %arg7[%c2_116, %c0_117, %c0_118] : memref<9x2x4xf32, #tpu.memory_space<vmem>>, vector<1x2x4xf32>
    %109 = vector.shape_cast %108 : vector<1x2x4xf32> to vector<2x4xf32>
    %cst_119 = arith.constant dense<0.000000e+00> : vector<128x4xf32>
    %110 = tpu.matmul %107, %109, %cst_119 {dimension_numbers = #tpu.dot_dimension_numbers<[1], [0], [0], [1], [0, 0, 1, 1], [], []>} : vector<128x2xf32>, vector<2x4xf32>, vector<128x4xf32> -> vector<128x4xf32>
    %111 = arith.addf %105, %110 : vector<128x4xf32>
    %c1_120 = arith.constant 1 : index
    %c0_121 = arith.constant 0 : index
    %c0_122 = arith.constant 0 : index
    %112 = vector.load %arg11[%c1_120, %c0_121, %c0_122] : memref<10x18x2xf32, #tpu.memory_space<vmem>>, vector<8x16x2xf32>
    %113 = vector.shape_cast %112 : vector<8x16x2xf32> to vector<128x2xf32>
    %c3_123 = arith.constant 3 : index
    %c0_124 = arith.constant 0 : index
    %c0_125 = arith.constant 0 : index
    %114 = vector.load %arg7[%c3_123, %c0_124, %c0_125] : memref<9x2x4xf32, #tpu.memory_space<vmem>>, vector<1x2x4xf32>
    %115 = vector.shape_cast %114 : vector<1x2x4xf32> to vector<2x4xf32>
    %cst_126 = arith.constant dense<0.000000e+00> : vector<128x4xf32>
    %116 = tpu.matmul %113, %115, %cst_126 {dimension_numbers = #tpu.dot_dimension_numbers<[1], [0], [0], [1], [0, 0, 1, 1], [], []>} : vector<128x2xf32>, vector<2x4xf32>, vector<128x4xf32> -> vector<128x4xf32>
    %117 = arith.addf %111, %116 : vector<128x4xf32>
    %c1_127 = arith.constant 1 : index
    %c1_128 = arith.constant 1 : index
    %c0_129 = arith.constant 0 : index
    %118 = vector.load %arg11[%c1_127, %c1_128, %c0_129] : memref<10x18x2xf32, #tpu.memory_space<vmem>>, vector<8x16x2xf32>
    %119 = vector.shape_cast %118 : vector<8x16x2xf32> to vector<128x2xf32>
    %c4_130 = arith.constant 4 : index
    %c0_131 = arith.constant 0 : index
    %c0_132 = arith.constant 0 : index
    %120 = vector.load %arg7[%c4_130, %c0_131, %c0_132] : memref<9x2x4xf32, #tpu.memory_space<vmem>>, vector<1x2x4xf32>
    %121 = vector.shape_cast %120 : vector<1x2x4xf32> to vector<2x4xf32>
    %cst_133 = arith.constant dense<0.000000e+00> : vector<128x4xf32>
    %122 = tpu.matmul %119, %121, %cst_133 {dimension_numbers = #tpu.dot_dimension_numbers<[1], [0], [0], [1], [0, 0, 1, 1], [], []>} : vector<128x2xf32>, vector<2x4xf32>, vector<128x4xf32> -> vector<128x4xf32>
    %123 = arith.addf %117, %122 : vector<128x4xf32>
    %c1_134 = arith.constant 1 : index
    %c2_135 = arith.constant 2 : index
    %c0_136 = arith.constant 0 : index
    %124 = vector.load %arg11[%c1_134, %c2_135, %c0_136] : memref<10x18x2xf32, #tpu.memory_space<vmem>>, vector<8x16x2xf32>
    %125 = vector.shape_cast %124 : vector<8x16x2xf32> to vector<128x2xf32>
    %c5_137 = arith.constant 5 : index
    %c0_138 = arith.constant 0 : index
    %c0_139 = arith.constant 0 : index
    %126 = vector.load %arg7[%c5_137, %c0_138, %c0_139] : memref<9x2x4xf32, #tpu.memory_space<vmem>>, vector<1x2x4xf32>
    %127 = vector.shape_cast %126 : vector<1x2x4xf32> to vector<2x4xf32>
    %cst_140 = arith.constant dense<0.000000e+00> : vector<128x4xf32>
    %128 = tpu.matmul %125, %127, %cst_140 {dimension_numbers = #tpu.dot_dimension_numbers<[1], [0], [0], [1], [0, 0, 1, 1], [], []>} : vector<128x2xf32>, vector<2x4xf32>, vector<128x4xf32> -> vector<128x4xf32>
    %129 = arith.addf %123, %128 : vector<128x4xf32>
    %c2_141 = arith.constant 2 : index
    %c0_142 = arith.constant 0 : index
    %c0_143 = arith.constant 0 : index
    %130 = vector.load %arg11[%c2_141, %c0_142, %c0_143] : memref<10x18x2xf32, #tpu.memory_space<vmem>>, vector<8x16x2xf32>
    %131 = vector.shape_cast %130 : vector<8x16x2xf32> to vector<128x2xf32>
    %c6_144 = arith.constant 6 : index
    %c0_145 = arith.constant 0 : index
    %c0_146 = arith.constant 0 : index
    %132 = vector.load %arg7[%c6_144, %c0_145, %c0_146] : memref<9x2x4xf32, #tpu.memory_space<vmem>>, vector<1x2x4xf32>
    %133 = vector.shape_cast %132 : vector<1x2x4xf32> to vector<2x4xf32>
    %cst_147 = arith.constant dense<0.000000e+00> : vector<128x4xf32>
    %134 = tpu.matmul %131, %133, %cst_147 {dimension_numbers = #tpu.dot_dimension_numbers<[1], [0], [0], [1], [0, 0, 1, 1], [], []>} : vector<128x2xf32>, vector<2x4xf32>, vector<128x4xf32> -> vector<128x4xf32>
    %135 = arith.addf %129, %134 : vector<128x4xf32>
    %c2_148 = arith.constant 2 : index
    %c1_149 = arith.constant 1 : index
    %c0_150 = arith.constant 0 : index
    %136 = vector.load %arg11[%c2_148, %c1_149, %c0_150] : memref<10x18x2xf32, #tpu.memory_space<vmem>>, vector<8x16x2xf32>
    %137 = vector.shape_cast %136 : vector<8x16x2xf32> to vector<128x2xf32>
    %c7_151 = arith.constant 7 : index
    %c0_152 = arith.constant 0 : index
    %c0_153 = arith.constant 0 : index
    %138 = vector.load %arg7[%c7_151, %c0_152, %c0_153] : memref<9x2x4xf32, #tpu.memory_space<vmem>>, vector<1x2x4xf32>
    %139 = vector.shape_cast %138 : vector<1x2x4xf32> to vector<2x4xf32>
    %cst_154 = arith.constant dense<0.000000e+00> : vector<128x4xf32>
    %140 = tpu.matmul %137, %139, %cst_154 {dimension_numbers = #tpu.dot_dimension_numbers<[1], [0], [0], [1], [0, 0, 1, 1], [], []>} : vector<128x2xf32>, vector<2x4xf32>, vector<128x4xf32> -> vector<128x4xf32>
    %141 = arith.addf %135, %140 : vector<128x4xf32>
    %c2_155 = arith.constant 2 : index
    %c2_156 = arith.constant 2 : index
    %c0_157 = arith.constant 0 : index
    %142 = vector.load %arg11[%c2_155, %c2_156, %c0_157] : memref<10x18x2xf32, #tpu.memory_space<vmem>>, vector<8x16x2xf32>
    %143 = vector.shape_cast %142 : vector<8x16x2xf32> to vector<128x2xf32>
    %c8_158 = arith.constant 8 : index
    %c0_159 = arith.constant 0 : index
    %c0_160 = arith.constant 0 : index
    %144 = vector.load %arg7[%c8_158, %c0_159, %c0_160] : memref<9x2x4xf32, #tpu.memory_space<vmem>>, vector<1x2x4xf32>
    %145 = vector.shape_cast %144 : vector<1x2x4xf32> to vector<2x4xf32>
    %cst_161 = arith.constant dense<0.000000e+00> : vector<128x4xf32>
    %146 = tpu.matmul %143, %145, %cst_161 {dimension_numbers = #tpu.dot_dimension_numbers<[1], [0], [0], [1], [0, 0, 1, 1], [], []>} : vector<128x2xf32>, vector<2x4xf32>, vector<128x4xf32> -> vector<128x4xf32>
    %147 = arith.addf %141, %146 : vector<128x4xf32>
    %c0_162 = arith.constant 0 : index
    %c0_163 = arith.constant 0 : index
    %148 = vector.load %arg8[%c0_162, %c0_163] : memref<1x4xf32, #tpu.memory_space<vmem>>, vector<1x4xf32>
    %149 = vector.broadcast %148 : vector<1x4xf32> to vector<128x4xf32>
    %150 = arith.addf %147, %149 : vector<128x4xf32>
    %cst_164 = arith.constant 0.000000e+00 : f32
    %151 = vector.broadcast %cst_164 : f32 to vector<128x4xf32>
    %152 = arith.maximumf %150, %151 : vector<128x4xf32>
    %153 = vector.shape_cast %152 : vector<128x4xf32> to vector<8x16x4xf32>
    %c0_165 = arith.constant 0 : index
    %c0_166 = arith.constant 0 : index
    %c0_167 = arith.constant 0 : index
    %c0_168 = arith.constant 0 : index
    %154 = vector.load %arg2[%c0_165, %c0_166, %c0_167, %c0_168] : memref<1x8x16x4xf32, #tpu.memory_space<vmem>>, vector<1x8x16x4xf32>
    %155 = vector.shape_cast %154 : vector<1x8x16x4xf32> to vector<8x16x4xf32>
    %156 = arith.addf %153, %155 : vector<8x16x4xf32>
    %c0_169 = arith.constant 0 : index
    %c0_170 = arith.constant 0 : index
    %c0_171 = arith.constant 0 : index
    %c0_172 = arith.constant 0 : index
    %157 = vector.load %arg9[%c0_169, %c0_170, %c0_171, %c0_172] : memref<1x8x16x4xf32, #tpu.memory_space<vmem>>, vector<1x8x16x4xf32>
    %158 = vector.shape_cast %157 : vector<1x8x16x4xf32> to vector<8x16x4xf32>
    %159 = vector.shape_cast %156 : vector<8x16x4xf32> to vector<1x8x16x4xf32>
    tpu.vector_store %arg9[%c0_169, %c0_170, %c0_171, %c0_172], %159 {strides = array<i32>} : memref<1x8x16x4xf32, #tpu.memory_space<vmem>>, vector<1x8x16x4xf32>,
    return
  }
  func.func @transform_0(%arg0: i32, %arg1: i32) -> (i32, i32, i32, i32) {
    %c0_i32 = arith.constant 0 : i32
    %c0_i32_0 = arith.constant 0 : i32
    %c0_i32_1 = arith.constant 0 : i32
    return %arg0, %arg1, %c0_i32, %c0_i32_0 : i32, i32, i32, i32
  }
  func.func @transform_1(%arg0: i32, %arg1: i32) -> (i32, i32, i32, i32, i32) {
    %c0_i32 = arith.constant 0 : i32
    %c0_i32_0 = arith.constant 0 : i32
    %c0_i32_1 = arith.constant 0 : i32
    %c0_i32_2 = arith.constant 0 : i32
    return %arg0, %arg1, %c0_i32, %c0_i32_0, %c0_i32_1 : i32, i32, i32, i32, i32
  }
  func.func @transform_2(%arg0: i32, %arg1: i32) -> (i32, i32, i32, i32, i32) {
    %c0_i32 = arith.constant 0 : i32
    %c0_i32_0 = arith.constant 0 : i32
    %c0_i32_1 = arith.constant 0 : i32
    %c0_i32_2 = arith.constant 0 : i32
    return %arg0, %arg1, %c0_i32, %c0_i32_0, %c0_i32_1 : i32, i32, i32, i32, i32
  }
  func.func @transform_3(%arg0: i32, %arg1: i32) -> (i32, i32, i32) {
    %c0_i32 = arith.constant 0 : i32
    %c0_i32_0 = arith.constant 0 : i32
    %c0_i32_1 = arith.constant 0 : i32
    %c0_i32_2 = arith.constant 0 : i32
    return %c0_i32, %c0_i32_0, %c0_i32_1 : i32, i32, i32
  }
  func.func @transform_4(%arg0: i32, %arg1: i32) -> (i32, i32) {
    %c0_i32 = arith.constant 0 : i32
    %c0_i32_0 = arith.constant 0 : i32
    %c0_i32_1 = arith.constant 0 : i32
    return %c0_i32, %c0_i32_0 : i32, i32
  }
  func.func @transform_5(%arg0: i32, %arg1: i32) -> (i32, i32, i32) {
    %c0_i32 = arith.constant 0 : i32
    %c0_i32_0 = arith.constant 0 : i32
    %c0_i32_1 = arith.constant 0 : i32
    %c0_i32_2 = arith.constant 0 : i32
    return %c0_i32, %c0_i32_0, %c0_i32_1 : i32, i32, i32
  }
  func.func @transform_6(%arg0: i32, %arg1: i32) -> (i32, i32) {
    %c0_i32 = arith.constant 0 : i32
    %c0_i32_0 = arith.constant 0 : i32
    %c0_i32_1 = arith.constant 0 : i32
    return %c0_i32, %c0_i32_0 : i32, i32
  }
  func.func @transform_7(%arg0: i32, %arg1: i32) -> (i32, i32, i32, i32) {
    %c0_i32 = arith.constant 0 : i32
    %c0_i32_0 = arith.constant 0 : i32
    %c0_i32_1 = arith.constant 0 : i32
    return %arg0, %arg1, %c0_i32, %c0_i32_0 : i32, i32, i32, i32
  }
}

</mosaic_0001>

<llo_original>
// kernel: tpu_custom_call.1
$region0: #{tpu_custom_call.1}
  #allocation0 [shape = 'u32[]', space=smem, size = 0x4, offset = 0x4, fixed_abs, tag = 'smem constant byte address 0x4 - core index']
  #allocation1 [shape = 'u32[144,128]{1,0:T(1,128)}', space=vmem, size = 0x12000, scoped, tag = 'internal scratch']
  #allocation2 [shape = 'f32[12,18,4]{2,1,0:T(8,128)}', space=vmem, size = 0x24000, scoped, tag = 'scratch operand']
  #allocation3 [shape = 'f32[10,18,2]{2,1,0:T(8,128)}', space=vmem, size = 0x1e000, scoped, tag = 'scratch operand']
  %s0 = inlined_call_operand.vmem [shape: f32[2,16,16,4], index: 0, kind: input, shape index: {}]
  %s1 = inlined_call_operand.vmem [shape: f32[2,2,2,16,4], index: 1, kind: input, shape index: {}]
  %s2 = inlined_call_operand.vmem [shape: f32[2,2,2,16,4], index: 2, kind: input, shape index: {}]
  %s3 = inlined_call_operand.vmem [shape: f32[9,4,2], index: 3, kind: input, shape index: {}]
  %s4 = inlined_call_operand.vmem [shape: f32[1,2], index: 4, kind: input, shape index: {}]
  %s5 = inlined_call_operand.vmem [shape: f32[9,2,4], index: 5, kind: input, shape index: {}]
  %s6 = inlined_call_operand.vmem [shape: f32[1,4], index: 6, kind: input, shape index: {}]
  %s7 = inlined_call_operand.vmem [shape: f32[2,16,16,4], index: 7, kind: output, shape index: {}]
  %s8 = sld [smem:[#allocation0]]
  $region61: #{tpu_custom_call.1} parent=0
    _
  %s10 = ssub.s32 1, %s8
  %s11 = scalar_select 0, %s10, %s8
  loop: start=0, step=1, limit=6
  $region2: #{tpu_custom_call.1} parent=0 // loop_pre_header
    _
  $region3: #{tpu_custom_call.1} parent=0 // loop_header
    %s13 = sphi 0, %s17
    %p14 = scmp.ge.s32.totalorder %s13, 6
    %s20 = sphi 0, %s32
    %s21 = sphi 0, %s28
    %s22 = sphi 0, %s20
    %s23 = sphi 0, %s21
    %s24 = sphi 0, %s22
    %s25 = sphi 0, %s23
    %s37 = sphi 0, %s39
    %s40 = sphi 0, %s37
    %s41 = sphi 0, %s40
    %s57 = sphi 0, %s41
    %s65 = sphi 0, %s67
    %s68 = sphi 0, %s65
    %s69 = sphi 0, %s68
    %s85 = sphi 0, %s69
    %s93 = sphi 0, %s95
    %s96 = sphi 0, %s93
    %s97 = sphi 0, %s96
    %s113 = sphi 0, %s97
    %s117 = sphi 0, %s117
    %s119 = sphi 0, %s117
    %s120 = sphi 0, %s119
    %s134 = sphi 0, %s120
    %s138 = sphi 0, %s138
    %s140 = sphi 0, %s138
    %s141 = sphi 0, %s140
    %s155 = sphi 0, %s141
    %s159 = sphi 0, %s159
    %s161 = sphi 0, %s159
    %s162 = sphi 0, %s161
    %s176 = sphi 0, %s162
    %s180 = sphi 0, %s180
    %s182 = sphi 0, %s180
    %s183 = sphi 0, %s182
    %s197 = sphi 0, %s183
    %s205 = sphi 0, %s207
    %s208 = sphi 0, %s205
    %s209 = sphi 0, %s208
    %s225 = sphi 0, %s209
  $region4: #{tpu_custom_call.1} parent=0 // loop_header_branch
    %16 = sbr.rel (%p14) target = $region8
  $region5: #{tpu_custom_call.1} parent=0 // loop_body
    %s18 = ssub.s32 %s13, 1
    %s19 = ssub.s32 %s13, 2
    %s26 = sadd.s32 1, %s21
    %p27 = scmp.ge.s32.totalorder %s26, 2
    %s28 = scalar_select %p27, 0, %s26
    %s29 = sadd.s32 1, %s20
    %s30 = scalar_select %p27, %s29, %s20
    %p31 = scmp.ge.s32.totalorder %s30, 2
    %s32 = scalar_select %p31, 0, %s30
    %s33 = ssub.s32 %s20, %s32
    %s34 = ssub.s32 %s21, %s28
    %s35 = sor.u32 %s33, %s34
    %p36 = scmp.eq.s32.totalorder %s35, 0
    %s38 = sadd.s32 %s37, 1
    %s39 = scalar_select %p36, %s37, %s38
    %p42 = pneg %p36
    %p43 = scmp.eq.s32.totalorder %s13, 3
    %p44 = por %p42, %p43
    %p45 = scmp.ne.s32.totalorder %s37, %s40
    %p46 = scmp.eq.s32.totalorder %s13, 0
    %p47 = por %p45, %p46
    %p48 = scmp.ne.s32.totalorder %s37, %s40
    %p49 = scmp.eq.s32.totalorder %s18, 3
    %p50 = por %p48, %p49
    %p51 = scmp.ne.s32.totalorder %s40, %s41
    %p52 = scmp.eq.s32.totalorder %s18, 0
    %p53 = por %p51, %p52
    %p54 = scmp.ne.s32.totalorder %s40, %s41
    %p55 = scmp.eq.s32.totalorder %s19, 3
    %p56 = por %p54, %p55
    %p58 = scmp.ne.s32.totalorder %s41, %s57
    %p59 = scmp.eq.s32.totalorder %s19, 0
    %p60 = por %p58, %p59
    %s61 = ssub.s32 %s20, %s32
    %s62 = ssub.s32 %s21, %s28
    %s63 = sor.u32 %s61, %s62
    %p64 = scmp.eq.s32.totalorder %s63, 0
    %s66 = sadd.s32 %s65, 1
    %s67 = scalar_select %p64, %s65, %s66
    %p70 = pneg %p64
    %p71 = scmp.eq.s32.totalorder %s13, 3
    %p72 = por %p70, %p71
    %p73 = scmp.ne.s32.totalorder %s65, %s68
    %p74 = scmp.eq.s32.totalorder %s13, 0
    %p75 = por %p73, %p74
    %p76 = scmp.ne.s32.totalorder %s65, %s68
    %p77 = scmp.eq.s32.totalorder %s18, 3
    %p78 = por %p76, %p77
    %p79 = scmp.ne.s32.totalorder %s68, %s69
    %p80 = scmp.eq.s32.totalorder %s18, 0
    %p81 = por %p79, %p80
    %p82 = scmp.ne.s32.totalorder %s68, %s69
    %p83 = scmp.eq.s32.totalorder %s19, 3
    %p84 = por %p82, %p83
    %p86 = scmp.ne.s32.totalorder %s69, %s85
    %p87 = scmp.eq.s32.totalorder %s19, 0
    %p88 = por %p86, %p87
    %s89 = ssub.s32 %s20, %s32
    %s90 = ssub.s32 %s21, %s28
    %s91 = sor.u32 %s89, %s90
    %p92 = scmp.eq.s32.totalorder %s91, 0
    %s94 = sadd.s32 %s93, 1
    %s95 = scalar_select %p92, %s93, %s94
    %p98 = pneg %p92
    %p99 = scmp.eq.s32.totalorder %s13, 3
    %p100 = por %p98, %p99
    %p101 = scmp.ne.s32.totalorder %s93, %s96
    %p102 = scmp.eq.s32.totalorder %s13, 0
    %p103 = por %p101, %p102
    %p104 = scmp.ne.s32.totalorder %s93, %s96
    %p105 = scmp.eq.s32.totalorder %s18, 3
    %p106 = por %p104, %p105
    %p107 = scmp.ne.s32.totalorder %s96, %s97
    %p108 = scmp.eq.s32.totalorder %s18, 0
    %p109 = por %p107, %p108
    %p110 = scmp.ne.s32.totalorder %s96, %s97
    %p111 = scmp.eq.s32.totalorder %s19, 3
    %p112 = por %p110, %p111
    %p114 = scmp.ne.s32.totalorder %s97, %s113
    %p115 = scmp.eq.s32.totalorder %s19, 0
    %p116 = por %p114, %p115
    %s118 = sadd.s32 %s117, 1
    %p121 = scmp.eq.s32.totalorder %s13, 3
    %p122 = scmp.ne.s32.totalorder %s117, %s119
    %p123 = scmp.eq.s32.totalorder %s13, 0
    %p124 = por %p122, %p123
    %p125 = scmp.ne.s32.totalorder %s117, %s119
    %p126 = scmp.eq.s32.totalorder %s18, 3
    %p127 = por %p125, %p126
    %p128 = scmp.ne.s32.totalorder %s119, %s120
    %p129 = scmp.eq.s32.totalorder %s18, 0
    %p130 = por %p128, %p129
    %p131 = scmp.ne.s32.totalorder %s119, %s120
    %p132 = scmp.eq.s32.totalorder %s19, 3
    %p133 = por %p131, %p132
    %p135 = scmp.ne.s32.totalorder %s120, %s134
    %p136 = scmp.eq.s32.totalorder %s19, 0
    %p137 = por %p135, %p136
    %s139 = sadd.s32 %s138, 1
    %p142 = scmp.eq.s32.totalorder %s13, 3
    %p143 = scmp.ne.s32.totalorder %s138, %s140
    %p144 = scmp.eq.s32.totalorder %s13, 0
    %p145 = por %p143, %p144
    %p146 = scmp.ne.s32.totalorder %s138, %s140
    %p147 = scmp.eq.s32.totalorder %s18, 3
    %p148 = por %p146, %p147
    %p149 = scmp.ne.s32.totalorder %s140, %s141
    %p150 = scmp.eq.s32.totalorder %s18, 0
    %p151 = por %p149, %p150
    %p152 = scmp.ne.s32.totalorder %s140, %s141
    %p153 = scmp.eq.s32.totalorder %s19, 3
    %p154 = por %p152, %p153
    %p156 = scmp.ne.s32.totalorder %s141, %s155
    %p157 = scmp.eq.s32.totalorder %s19, 0
    %p158 = por %p156, %p157
    %s160 = sadd.s32 %s159, 1
    %p163 = scmp.eq.s32.totalorder %s13, 3
    %p164 = scmp.ne.s32.totalorder %s159, %s161
    %p165 = scmp.eq.s32.totalorder %s13, 0
    %p166 = por %p164, %p165
    %p167 = scmp.ne.s32.totalorder %s159, %s161
    %p168 = scmp.eq.s32.totalorder %s18, 3
    %p169 = por %p167, %p168
    %p170 = scmp.ne.s32.totalorder %s161, %s162
    %p171 = scmp.eq.s32.totalorder %s18, 0
    %p172 = por %p170, %p171
    %p173 = scmp.ne.s32.totalorder %s161, %s162
    %p174 = scmp.eq.s32.totalorder %s19, 3
    %p175 = por %p173, %p174
    %p177 = scmp.ne.s32.totalorder %s162, %s176
    %p178 = scmp.eq.s32.totalorder %s19, 0
    %p179 = por %p177, %p178
    %s181 = sadd.s32 %s180, 1
    %p184 = scmp.eq.s32.totalorder %s13, 3
    %p185 = scmp.ne.s32.totalorder %s180, %s182
    %p186 = scmp.eq.s32.totalorder %s13, 0
    %p187 = por %p185, %p186
    %p188 = scmp.ne.s32.totalorder %s180, %s182
    %p189 = scmp.eq.s32.totalorder %s18, 3
    %p190 = por %p188, %p189
    %p191 = scmp.ne.s32.totalorder %s182, %s183
    %p192 = scmp.eq.s32.totalorder %s18, 0
    %p193 = por %p191, %p192
    %p194 = scmp.ne.s32.totalorder %s182, %s183
    %p195 = scmp.eq.s32.totalorder %s19, 3
    %p196 = por %p194, %p195
    %p198 = scmp.ne.s32.totalorder %s183, %s197
    %p199 = scmp.eq.s32.totalorder %s19, 0
    %p200 = por %p198, %p199
    %s201 = ssub.s32 %s20, %s32
    %s202 = ssub.s32 %s21, %s28
    %s203 = sor.u32 %s201, %s202
    %p204 = scmp.eq.s32.totalorder %s203, 0
    %s206 = sadd.s32 %s205, 1
    %s207 = scalar_select %p204, %s205, %s206
    %p210 = pneg %p204
    %p211 = scmp.eq.s32.totalorder %s13, 3
    %p212 = por %p210, %p211
    %p213 = scmp.ne.s32.totalorder %s205, %s208
    %p214 = scmp.eq.s32.totalorder %s13, 0
    %p215 = por %p213, %p214
    %p216 = scmp.ne.s32.totalorder %s205, %s208
    %p217 = scmp.eq.s32.totalorder %s18, 3
    %p218 = por %p216, %p217
    %p219 = scmp.ne.s32.totalorder %s208, %s209
    %p220 = scmp.eq.s32.totalorder %s18, 0
    %p221 = por %p219, %p220
    %p222 = scmp.ne.s32.totalorder %s208, %s209
    %p223 = scmp.eq.s32.totalorder %s19, 3
    %p224 = por %p222, %p223
    %p226 = scmp.ne.s32.totalorder %s209, %s225
    %p227 = scmp.eq.s32.totalorder %s19, 0
    %p228 = por %p226, %p227
    %p229 = scmp.le.s32.totalorder 1, %s13
    %p230 = scmp.lt.s32.totalorder %s13, 5
    %p231 = pnand %p229, %p230
    %p232 = pneg %p231
    // Predicated region
    $region9: #{tpu_custom_call.1} parent=5 // pred_check
      _
    $region10: #{tpu_custom_call.1} parent=5 // pred_check_branch
      %234 = sbr.rel (%p231) target = $region12
    $region11: #{tpu_custom_call.1} parent=5 // pred_region
      %s235 = ssub.s32 %s13, 1
      // Predicated region
      $region13: #{tpu_custom_call.1} parent=11 // pred_check
        %p236 = pneg %p130
      $region14: #{tpu_custom_call.1} parent=11 // pred_check_branch
        %238 = sbr.rel (%p236) target = $region16
      $region15: #{tpu_custom_call.1} parent=11 // pred_region
        _
      $region16: #{tpu_custom_call.1} parent=11 // pred_fallthru
        _
      // Predicated region
      $region17: #{tpu_custom_call.1} parent=11 // pred_check
        %p239 = pneg %p151
      $region18: #{tpu_custom_call.1} parent=11 // pred_check_branch
        %241 = sbr.rel (%p239) target = $region20
      $region19: #{tpu_custom_call.1} parent=11 // pred_region
        _
      $region20: #{tpu_custom_call.1} parent=11 // pred_fallthru
        _
      // Predicated region
      $region21: #{tpu_custom_call.1} parent=11 // pred_check
        %p242 = pneg %p172
      $region22: #{tpu_custom_call.1} parent=11 // pred_check_branch
        %244 = sbr.rel (%p242) target = $region24
      $region23: #{tpu_custom_call.1} parent=11 // pred_region
        _
      $region24: #{tpu_custom_call.1} parent=11 // pred_fallthru
        _
      // Predicated region
      $region25: #{tpu_custom_call.1} parent=11 // pred_check
        %p245 = pneg %p193
      $region26: #{tpu_custom_call.1} parent=11 // pred_check_branch
        %247 = sbr.rel (%p245) target = $region28
      $region27: #{tpu_custom_call.1} parent=11 // pred_region
        _
      $region28: #{tpu_custom_call.1} parent=11 // pred_fallthru
        _
    $region12: #{tpu_custom_call.1} parent=5 // pred_fallthru
      _
    %p248 = scmp.lt.s32.totalorder %s13, 4
    // Predicated region
    $region29: #{tpu_custom_call.1} parent=5 // pred_check
      %p249 = pneg %p248
    $region30: #{tpu_custom_call.1} parent=5 // pred_check_branch
      %251 = sbr.rel (%p249) target = $region32
    $region31: #{tpu_custom_call.1} parent=5 // pred_region
      // Predicated region
      $region33: #{tpu_custom_call.1} parent=31 // pred_check
        %p252 = pneg %p47
      $region34: #{tpu_custom_call.1} parent=31 // pred_check_branch
        %254 = sbr.rel (%p252) target = $region36
      $region35: #{tpu_custom_call.1} parent=31 // pred_region
        %s255 = smul.u32 8, %s21
        %p256 = scmp.lt.s32.totalorder %s20, 1
        %s257 = scalar_select %p256, %s20, 1
        %p258 = scmp.lt.s32.totalorder %s255, 15
        %s259 = scalar_select %p258, %s255, 15
        %s260 = smul.addr %s259, 2
        %s261 = smul.addr %s257, 32
        %s262 = sadd.s32 %s260, %s261
        %s263 = smul.addr %s262, 8
        %s264 = scalar_lea.vmem %s0, %s263
        %s265 = smul.u32 8, %s21
      $region36: #{tpu_custom_call.1} parent=31 // pred_fallthru
        _
      // Predicated region
      $region37: #{tpu_custom_call.1} parent=31 // pred_check
        %p266 = pneg %p75
      $region38: #{tpu_custom_call.1} parent=31 // pred_check_branch
        %268 = sbr.rel (%p266) target = $region40
      $region39: #{tpu_custom_call.1} parent=31 // pred_region
        %p269 = scmp.lt.s32.totalorder %s20, 1
        %s270 = scalar_select %p269, %s20, 1
        %p271 = scmp.lt.s32.totalorder %s21, 1
        %s272 = scalar_select %p271, %s21, 1
        %s273 = smul.addr %s272, 4
        %s274 = smul.addr %s270, 8
        %s275 = sadd.s32 %s273, %s274
        %s276 = smul.addr %s275, 8
        %s277 = scalar_lea.vmem %s1, %s276
      $region40: #{tpu_custom_call.1} parent=31 // pred_fallthru
        _
      // Predicated region
      $region41: #{tpu_custom_call.1} parent=31 // pred_check
        %p278 = pneg %p103
      $region42: #{tpu_custom_call.1} parent=31 // pred_check_branch
        %280 = sbr.rel (%p278) target = $region44
      $region43: #{tpu_custom_call.1} parent=31 // pred_region
        %p281 = scmp.lt.s32.totalorder %s20, 1
        %s282 = scalar_select %p281, %s20, 1
        %p283 = scmp.lt.s32.totalorder %s21, 1
        %s284 = scalar_select %p283, %s21, 1
        %s285 = smul.addr %s284, 4
        %s286 = smul.addr %s282, 8
        %s287 = sadd.s32 %s285, %s286
        %s288 = smul.addr %s287, 8
        %s289 = scalar_lea.vmem %s2, %s288
      $region44: #{tpu_custom_call.1} parent=31 // pred_fallthru
        _
    $region32: #{tpu_custom_call.1} parent=5 // pred_fallthru
      _
    %p290 = scmp.le.s32.totalorder 1, %s13
    %p291 = scmp.lt.s32.totalorder %s13, 5
    %p292 = pnand %p290, %p291
    %p293 = pneg %p292
    // Predicated region
    $region45: #{tpu_custom_call.1} parent=5 // pred_check
      _
    $region46: #{tpu_custom_call.1} parent=5 // pred_check_branch
      %295 = sbr.rel (%p292) target = $region48
    $region47: #{tpu_custom_call.1} parent=5 // pred_region
      %s296 = ssub.s32 %s13, 1
      %s297 = smul.u32 8, %s23
      %p298 = scmp.lt.s32.totalorder %s22, 1
      %s299 = scalar_select %p298, %s22, 1
      %p300 = scmp.lt.s32.totalorder %s297, 15
      %s301 = scalar_select %p300, %s297, 15
      %s302 = smul.addr %s301, 2
      %s303 = smul.addr %s299, 32
      %s304 = sadd.s32 %s302, %s303
      %s305 = smul.addr %s304, 8
      %s306 = scalar_lea.vmem %s0, %s305
      %p307 = pneg %p53
      %p308 = pneg %p50
      %p309 = scmp.lt.s32.totalorder %s22, 1
      %s310 = scalar_select %p309, %s22, 1
      %p311 = scmp.lt.s32.totalorder %s23, 1
      %s312 = scalar_select %p311, %s23, 1
      %s313 = smul.addr %s312, 4
      %s314 = smul.addr %s310, 8
      %s315 = sadd.s32 %s313, %s314
      %s316 = smul.addr %s315, 8
      %s317 = scalar_lea.vmem %s1, %s316
      %p318 = pneg %p81
      %p319 = pneg %p78
      %p320 = scmp.lt.s32.totalorder %s22, 1
      %s321 = scalar_select %p320, %s22, 1
      %p322 = scmp.lt.s32.totalorder %s23, 1
      %s323 = scalar_select %p322, %s23, 1
      %s324 = smul.addr %s323, 4
      %s325 = smul.addr %s321, 8
      %s326 = sadd.s32 %s324, %s325
      %s327 = smul.addr %s326, 8
      %s328 = scalar_lea.vmem %s2, %s327
      %p329 = pneg %p109
      %p330 = pneg %p106
      %p331 = pneg %p130
      %p332 = pneg %p127
      %p333 = pneg %p151
      %p334 = pneg %p148
      %p335 = pneg %p172
      %p336 = pneg %p169
      %p337 = pneg %p193
      %p338 = pneg %p190
      %p339 = pneg %p221
      %p340 = pneg %p218
      %s341 = smul.u32 8, %s23
      %p342 = scmp.lt.s32.totalorder %s22, 1
      %s343 = scalar_select %p342, %s22, 1
      %p344 = scmp.lt.s32.totalorder %s341, 15
      %s345 = scalar_select %p344, %s341, 15
      %s346 = smul.addr %s345, 2
      %s347 = smul.addr %s343, 32
      %s348 = sadd.s32 %s346, %s347
      %s349 = smul.addr %s348, 8
      %s350 = scalar_lea.vmem %s7, %s349
      %s351 = smul.u32 8, %s23
      %p352 = scmp.lt.s32.totalorder %s22, 1
      %s353 = scalar_select %p352, %s22, 1
      %p354 = scmp.lt.s32.totalorder %s351, 15
      %s355 = scalar_select %p354, %s351, 15
      %s356 = smul.addr %s355, 2
      %s357 = smul.addr %s353, 32
      %s358 = sadd.s32 %s356, %s357
      %s359 = smul.addr %s358, 8
      %s360 = scalar_lea.vmem %s0, %s359
      %s361 = smul.u32 8, %s23
      %p362 = scmp.lt.s32.totalorder %s22, 1
      %s363 = scalar_select %p362, %s22, 1
      %p364 = scmp.lt.s32.totalorder %s23, 1
      %s365 = scalar_select %p364, %s23, 1
      %s366 = smul.addr %s365, 4
      %s367 = smul.addr %s363, 8
      %s368 = sadd.s32 %s366, %s367
      %s369 = smul.addr %s368, 8
      %s370 = scalar_lea.vmem %s1, %s369
      %p371 = scmp.lt.s32.totalorder %s22, 1
      %s372 = scalar_select %p371, %s22, 1
      %p373 = scmp.lt.s32.totalorder %s23, 1
      %s374 = scalar_select %p373, %s23, 1
      %s375 = smul.addr %s374, 4
      %s376 = smul.addr %s372, 8
      %s377 = sadd.s32 %s375, %s376
      %s378 = smul.addr %s377, 8
      %s379 = scalar_lea.vmem %s2, %s378
      %s380 = smul.u32 8, %s23
      %p381 = scmp.lt.s32.totalorder %s22, 1
      %s382 = scalar_select %p381, %s22, 1
      %p383 = scmp.lt.s32.totalorder %s380, 15
      %s384 = scalar_select %p383, %s380, 15
      %s385 = smul.addr %s384, 2
      %s386 = smul.addr %s382, 32
      %s387 = sadd.s32 %s385, %s386
      %s388 = smul.addr %s387, 8
      %s389 = scalar_lea.vmem %s7, %s388
      %s390 = smul.u32 8, %s23
      %vm391 = vcmask 24576
      %392 = vst.msk [vmem:[#allocation2] sm:$0x1] %vm391, 0.0
      %393 = vst.msk [vmem:[#allocation2 + $0x18] sm:$0x1] %vm391, 0.0
      %394 = vst.msk [vmem:[#allocation2 + $0x30] sm:$0x1] %vm391, 0.0
      %395 = vst.msk [vmem:[#allocation2 + $0x48] sm:$0x1] %vm391, 0.0
      %396 = vst.msk [vmem:[#allocation2 + $0x60] sm:$0x1] %vm391, 0.0
      %397 = vst.msk [vmem:[#allocation2 + $0x78] sm:$0x1] %vm391, 0.0
      %398 = vst.msk [vmem:[#allocation2 + $0x90] sm:$0x1] %vm391, 0.0
      %399 = vst.msk [vmem:[#allocation2 + $0xa8] sm:$0x1] %vm391, 0.0
      %400 = vst.msk [vmem:[#allocation2 + $0xc0] sm:$0x1] %vm391, 0.0
      %401 = vst.msk [vmem:[#allocation2 + $0xd8] sm:$0x1] %vm391, 0.0
      %402 = vst.msk [vmem:[#allocation2 + $0xf0] sm:$0x1] %vm391, 0.0
      %403 = vst.msk [vmem:[#allocation2 + $0x108] sm:$0x1] %vm391, 0.0
      %404 = vst.msk [vmem:[#allocation2 + $0x11] sm:$0x1] %vm391, 0.0
      %405 = vst.msk [vmem:[#allocation2 + $0x29] sm:$0x1] %vm391, 0.0
      %406 = vst.msk [vmem:[#allocation2 + $0x41] sm:$0x1] %vm391, 0.0
      %407 = vst.msk [vmem:[#allocation2 + $0x59] sm:$0x1] %vm391, 0.0
      %408 = vst.msk [vmem:[#allocation2 + $0x71] sm:$0x1] %vm391, 0.0
      %409 = vst.msk [vmem:[#allocation2 + $0x89] sm:$0x1] %vm391, 0.0
      %410 = vst.msk [vmem:[#allocation2 + $0xa1] sm:$0x1] %vm391, 0.0
      %411 = vst.msk [vmem:[#allocation2 + $0xb9] sm:$0x1] %vm391, 0.0
      %412 = vst.msk [vmem:[#allocation2 + $0xd1] sm:$0x1] %vm391, 0.0
      %413 = vst.msk [vmem:[#allocation2 + $0xe9] sm:$0x1] %vm391, 0.0
      %414 = vst.msk [vmem:[#allocation2 + $0x101] sm:$0x1] %vm391, 0.0
      %415 = vst.msk [vmem:[#allocation2 + $0x119] sm:$0x1] %vm391, 0.0
      %v416 = vld [vmem:[%s370] sm:$0xff]
      %v417 = vld [vmem:[%s370 + $0x8] sm:$0xff]
      %v418 = vld [vmem:[%s370 + $0x10] sm:$0xff]
      %v419 = vld [vmem:[%s370 + $0x18] sm:$0xff]
      %vm420 = vcmask 31744
      %421 = vst.msk [vmem:[#allocation2 + $0x1] sm:$0xff] %vm420, %v416
      %422 = vst.msk [vmem:[#allocation2 + $0x9] sm:$0xff] %vm420, %v417
      %423 = vst.msk [vmem:[#allocation2 + $0x19] sm:$0xff] %vm420, %v418
      %424 = vst.msk [vmem:[#allocation2 + $0x21] sm:$0xff] %vm420, %v419
      %v425 = vld [vmem:[%s360] sm:$0xff]
      %v426 = vld [vmem:[%s360 + $0x8] sm:$0xff]
      %v427 = vld [vmem:[%s360 + $0x10] sm:$0xff]
      %v428 = vld [vmem:[%s360 + $0x18] sm:$0xff]
      %v429 = vld [vmem:[%s360 + $0x20] sm:$0xff]
      %v430 = vld [vmem:[%s360 + $0x28] sm:$0xff]
      %v431 = vld [vmem:[%s360 + $0x30] sm:$0xff]
      %v432 = vld [vmem:[%s360 + $0x38] sm:$0xff]
      %v433 = vld [vmem:[%s360 + $0x40] sm:$0xff]
      %v434 = vld [vmem:[%s360 + $0x48] sm:$0xff]
      %v435 = vld [vmem:[%s360 + $0x50] sm:$0xff]
      %v436 = vld [vmem:[%s360 + $0x58] sm:$0xff]
      %v437 = vld [vmem:[%s360 + $0x60] sm:$0xff]
      %v438 = vld [vmem:[%s360 + $0x68] sm:$0xff]
      %v439 = vld [vmem:[%s360 + $0x70] sm:$0xff]
      %v440 = vld [vmem:[%s360 + $0x78] sm:$0xff]
      %s441 = scalar_lea.vmem [#allocation2], 48
      %442 = vst.msk [vmem:[%s441 + $0x1] sm:$0xff] %vm420, %v425
      %443 = vst.msk [vmem:[%s441 + $0x9] sm:$0xff] %vm420, %v426
      %444 = vst.msk [vmem:[%s441 + $0x19] sm:$0xff] %vm420, %v427
      %445 = vst.msk [vmem:[%s441 + $0x21] sm:$0xff] %vm420, %v428
      %446 = vst.msk [vmem:[%s441 + $0x31] sm:$0xff] %vm420, %v429
      %447 = vst.msk [vmem:[%s441 + $0x39] sm:$0xff] %vm420, %v430
      %448 = vst.msk [vmem:[%s441 + $0x49] sm:$0xff] %vm420, %v431
      %449 = vst.msk [vmem:[%s441 + $0x51] sm:$0xff] %vm420, %v432
      %450 = vst.msk [vmem:[%s441 + $0x61] sm:$0xff] %vm420, %v433
      %451 = vst.msk [vmem:[%s441 + $0x69] sm:$0xff] %vm420, %v434
      %452 = vst.msk [vmem:[%s441 + $0x79] sm:$0xff] %vm420, %v435
      %453 = vst.msk [vmem:[%s441 + $0x81] sm:$0xff] %vm420, %v436
      %454 = vst.msk [vmem:[%s441 + $0x91] sm:$0xff] %vm420, %v437
      %455 = vst.msk [vmem:[%s441 + $0x99] sm:$0xff] %vm420, %v438
      %456 = vst.msk [vmem:[%s441 + $0xa9] sm:$0xff] %vm420, %v439
      %457 = vst.msk [vmem:[%s441 + $0xb1] sm:$0xff] %vm420, %v440
      %v458 = vld [vmem:[%s379] sm:$0xff]
      %v459 = vld [vmem:[%s379 + $0x8] sm:$0xff]
      %v460 = vld [vmem:[%s379 + $0x10] sm:$0xff]
      %v461 = vld [vmem:[%s379 + $0x18] sm:$0xff]
      %s462 = scalar_lea.vmem [#allocation2], 240
      %463 = vst.msk [vmem:[%s462 + $0x1] sm:$0xff] %vm420, %v458
      %464 = vst.msk [vmem:[%s462 + $0x9] sm:$0xff] %vm420, %v459
      %465 = vst.msk [vmem:[%s462 + $0x19] sm:$0xff] %vm420, %v460
      %466 = vst.msk [vmem:[%s462 + $0x21] sm:$0xff] %vm420, %v461
      %v467 = vld [vmem:[#allocation2] sm:$0xff]
      %v468 = vld [vmem:[#allocation2 + $0x8] sm:$0xff]
      %v469 = vld [vmem:[#allocation2 + $0x18] sm:$0xff]
      %v470 = vld [vmem:[#allocation2 + $0x20] sm:$0xff]
      %v471 = vld [vmem:[#allocation2 + $0x30] sm:$0xff]
      %v472 = vld [vmem:[#allocation2 + $0x38] sm:$0xff]
      %v473 = vld [vmem:[#allocation2 + $0x48] sm:$0xff]
      %v474 = vld [vmem:[#allocation2 + $0x50] sm:$0xff]
      %v475 = vld [vmem:[#allocation2 + $0x60] sm:$0xff]
      %v476 = vld [vmem:[#allocation2 + $0x68] sm:$0xff]
      %v477 = vld [vmem:[#allocation2 + $0x78] sm:$0xff]
      %v478 = vld [vmem:[#allocation2 + $0x80] sm:$0xff]
      %v479 = vld [vmem:[#allocation2 + $0x90] sm:$0xff]
      %v480 = vld [vmem:[#allocation2 + $0x98] sm:$0xff]
      %v481 = vld [vmem:[#allocation2 + $0xa8] sm:$0xff]
      %v482 = vld [vmem:[#allocation2 + $0xb0] sm:$0xff]
      %v483 = vld [vmem:[#allocation2 + $0xc0] sm:$0xff]
      %v484 = vld [vmem:[#allocation2 + $0xc8] sm:$0xff]
      %v485 = vld [vmem:[#allocation2 + $0xd8] sm:$0xff]
      %v486 = vld [vmem:[#allocation2 + $0xe0] sm:$0xff]
      %v487 = vld [vmem:[%s3] sm:$0xf]
      %v488 = vld [vmem:[#allocation2 + $0x1] sm:$0xff]
      %v489 = vld [vmem:[#allocation2 + $0x9] sm:$0xff]
      %v490 = vld [vmem:[#allocation2 + $0x19] sm:$0xff]
      %v491 = vld [vmem:[#allocation2 + $0x21] sm:$0xff]
      %v492 = vld [vmem:[#allocation2 + $0x31] sm:$0xff]
      %v493 = vld [vmem:[#allocation2 + $0x39] sm:$0xff]
      %v494 = vld [vmem:[#allocation2 + $0x49] sm:$0xff]
      %v495 = vld [vmem:[#allocation2 + $0x51] sm:$0xff]
      %v496 = vld [vmem:[#allocation2 + $0x61] sm:$0xff]
      %v497 = vld [vmem:[#allocation2 + $0x69] sm:$0xff]
      %v498 = vld [vmem:[#allocation2 + $0x79] sm:$0xff]
      %v499 = vld [vmem:[#allocation2 + $0x81] sm:$0xff]
      %v500 = vld [vmem:[#allocation2 + $0x91] sm:$0xff]
      %v501 = vld [vmem:[#allocation2 + $0x99] sm:$0xff]
      %v502 = vld [vmem:[#allocation2 + $0xa9] sm:$0xff]
      %v503 = vld [vmem:[#allocation2 + $0xb1] sm:$0xff]
      %v504 = vld [vmem:[#allocation2 + $0xc1] sm:$0xff]
      %v505 = vld [vmem:[#allocation2 + $0xc9] sm:$0xff]
      %v506 = vld [vmem:[#allocation2 + $0xd9] sm:$0xff]
      %v507 = vld [vmem:[#allocation2 + $0xe1] sm:$0xff]
      %s508 = scalar_lea.vmem %s3, 4
      %v509 = vld [vmem:[%s508] sm:$0xf]
      %v511 = vsel %vm420, %v488, 0
      %v514 = vsel %vm420, %v489, 0
      %v517 = vsel %vm420, %v490, 0
      %v520 = vsel %vm420, %v491, 0
      %v523 = vsel %vm420, %v492, 0
      %v526 = vsel %vm420, %v493, 0
      %v529 = vsel %vm420, %v494, 0
      %v532 = vsel %vm420, %v495, 0
      %v535 = vsel %vm420, %v496, 0
      %v538 = vsel %vm420, %v497, 0
      %v541 = vsel %vm420, %v498, 0
      %v544 = vsel %vm420, %v499, 0
      %v547 = vsel %vm420, %v500, 0
      %v550 = vsel %vm420, %v501, 0
      %v553 = vsel %vm420, %v502, 0
      %v556 = vsel %vm420, %v503, 0
      %v559 = vsel %vm420, %v504, 0
      %v562 = vsel %vm420, %v505, 0
      %v565 = vsel %vm420, %v506, 0
      %v568 = vsel %vm420, %v507, 0
      %vm570 = vcmask 1043456
      %v572 = vsel %vm570, %v509, 0
      %574 = vmatprep.subr.mxu0 0.0
      %575 = vmatpush1.msra.mxu0 0.0
      %576 = vmatprep.subr.mxu0 0.0
      %577 = vmatpush1.msra.mxu0 0.0
      %578 = vmatprep.subr.mxu0 0.0
      %579 = vmatpush1.msra.mxu0 0.0
      %580 = vmatprep.subr.mxu0 0.0
      %581 = vmatpush1.msra.mxu0 0.0
      %582 = vmatprep.subr.mxu0 0.0
      %583 = vmatpush1.msra.mxu0 0.0
      %584 = vmatprep.subr.mxu0 0.0
      %585 = vmatpush1.msra.mxu0 0.0
      %586 = vmatprep.subr.mxu0 0.0
      %587 = vmatpush1.msra.mxu0 0.0
      %588 = vmatprep.subr.mxu0 0.0
      %589 = vmatpush1.msra.mxu0 0.0
      %590 = vmatprep.subr.mxu0 0.0
      %591 = vmatpush1.msra.mxu0 0.0
      %592 = vmatprep.subr.mxu0 0.0
      %593 = vmatpush1.msra.mxu0 0.0
      %594 = vmatprep.subr.mxu0 0.0
      %595 = vmatpush1.msra.mxu0 0.0
      %596 = vmatprep.subr.mxu0 0.0
      %597 = vmatpush1.msra.mxu0 0.0
      %598 = vmatprep.subr.mxu0 0.0
      %599 = vmatpush1.msra.mxu0 0.0
      %600 = vmatprep.subr.mxu0 0.0
      %601 = vmatpush1.msra.mxu0 0.0
      %602 = vmatprep.subr.mxu0 0.0
      %603 = vmatpush1.msra.mxu0 0.0
      %604 = vmatprep.subr.mxu0 0.0
      %605 = vmatpush1.msra.mxu0 %v572
      %606 = vmatprep.subr.mxu0 0.0
      %607 = vmatpush2.msra.mxu0 0.0
      %608 = vmatprep.subr.mxu0 0.0
      %609 = vmatpush2.msra.mxu0 0.0
      %610 = vmatprep.subr.mxu0 0.0
      %611 = vmatpush2.msra.mxu0 0.0
      %612 = vmatprep.subr.mxu0 0.0
      %613 = vmatpush2.msra.mxu0 0.0
      %614 = vmatprep.subr.mxu0 0.0
      %615 = vmatpush2.msra.mxu0 0.0
      %616 = vmatprep.subr.mxu0 0.0
      %617 = vmatpush2.msra.mxu0 0.0
      %618 = vmatprep.subr.mxu0 0.0
      %619 = vmatpush2.msra.mxu0 0.0
      %620 = vmatprep.subr.mxu0 0.0
      %621 = vmatpush2.msra.mxu0 0.0
      %622 = vmatprep.subr.mxu0 0.0
      %623 = vmatpush2.msra.mxu0 0.0
      %624 = vmatprep.subr.mxu0 0.0
      %625 = vmatpush2.msra.mxu0 0.0
      %626 = vmatprep.subr.mxu0 0.0
      %627 = vmatpush2.msra.mxu0 0.0
      %628 = vmatprep.subr.mxu0 0.0
      %629 = vmatpush2.msra.mxu0 0.0
      %630 = vmatprep.subr.mxu0 0.0
      %631 = vmatpush2.msra.mxu0 0.0
      %632 = vmatprep.subr.mxu0 0.0
      %633 = vmatpush2.msra.mxu0 0.0
      %634 = vmatprep.subr.mxu0 0.0
      %635 = vmatpush2.msra.mxu0 0.0
      %636 = vmatprep.subr.mxu0 0.0
      %637 = vmatpush2.msra.mxu0 0.0
      %638 = vmatprep.mubr.f32.mxu0 0.0
      %639 = vmatmul.mubr.f32.gmra.mxu0 %v511
      %v640 = vpop.f32.mrf.mxu0
      %v641 = vadd.f32 0.0, %v640
      %v642 = vpop.f32.mrf.mxu0
      %643 = vmatprep.mubr.f32.mxu0 0.0
      %644 = vmatmul.mubr.f32.gmra.mxu0 %v514
      %v645 = vpop.f32.mrf.mxu0
      %v646 = vadd.f32 0.0, %v645
      %v647 = vpop.f32.mrf.mxu0
      %648 = vmatprep.mubr.f32.mxu0 0.0
      %649 = vmatmul.mubr.f32.gmra.mxu0 %v517
      %v650 = vpop.f32.mrf.mxu0
      %v651 = vadd.f32 0.0, %v650
      %v652 = vpop.f32.mrf.mxu0
      %653 = vmatprep.mubr.f32.mxu0 0.0
      %654 = vmatmul.mubr.f32.gmra.mxu0 %v520
      %v655 = vpop.f32.mrf.mxu0
      %v656 = vadd.f32 0.0, %v655
      %v657 = vpop.f32.mrf.mxu0
      %658 = vmatprep.mubr.f32.mxu0 0.0
      %659 = vmatmul.mubr.f32.gmra.mxu0 %v523
      %v660 = vpop.f32.mrf.mxu0
      %v661 = vadd.f32 0.0, %v660
      %v662 = vpop.f32.mrf.mxu0
      %663 = vmatprep.mubr.f32.mxu0 0.0
      %664 = vmatmul.mubr.f32.gmra.mxu0 %v526
      %v665 = vpop.f32.mrf.mxu0
      %v666 = vadd.f32 0.0, %v665
      %v667 = vpop.f32.mrf.mxu0
      %668 = vmatprep.mubr.f32.mxu0 0.0
      %669 = vmatmul.mubr.f32.gmra.mxu0 %v529
      %v670 = vpop.f32.mrf.mxu0
      %v671 = vadd.f32 0.0, %v670
      %v672 = vpop.f32.mrf.mxu0
      %673 = vmatprep.mubr.f32.mxu0 0.0
      %674 = vmatmul.mubr.f32.gmra.mxu0 %v532
      %v675 = vpop.f32.mrf.mxu0
      %v676 = vadd.f32 0.0, %v675
      %v677 = vpop.f32.mrf.mxu0
      %678 = vmatprep.mubr.f32.mxu0 0.0
      %679 = vmatmul.mubr.f32.gmra.mxu0 %v535
      %v680 = vpop.f32.mrf.mxu0
      %v681 = vadd.f32 0.0, %v680
      %v682 = vpop.f32.mrf.mxu0
      %683 = vmatprep.mubr.f32.mxu0 0.0
      %684 = vmatmul.mubr.f32.gmra.mxu0 %v538
      %v685 = vpop.f32.mrf.mxu0
      %v686 = vadd.f32 0.0, %v685
      %v687 = vpop.f32.mrf.mxu0
      %688 = vmatprep.mubr.f32.mxu0 0.0
      %689 = vmatmul.mubr.f32.gmra.mxu0 %v541
      %v690 = vpop.f32.mrf.mxu0
      %v691 = vadd.f32 0.0, %v690
      %v692 = vpop.f32.mrf.mxu0
      %693 = vmatprep.mubr.f32.mxu0 0.0
      %694 = vmatmul.mubr.f32.gmra.mxu0 %v544
      %v695 = vpop.f32.mrf.mxu0
      %v696 = vadd.f32 0.0, %v695
      %v697 = vpop.f32.mrf.mxu0
      %698 = vmatprep.mubr.f32.mxu0 0.0
      %699 = vmatmul.mubr.f32.gmra.mxu0 %v547
      %v700 = vpop.f32.mrf.mxu0
      %v701 = vadd.f32 0.0, %v700
      %v702 = vpop.f32.mrf.mxu0
      %703 = vmatprep.mubr.f32.mxu0 0.0
      %704 = vmatmul.mubr.f32.gmra.mxu0 %v550
      %v705 = vpop.f32.mrf.mxu0
      %v706 = vadd.f32 0.0, %v705
      %v707 = vpop.f32.mrf.mxu0
      %708 = vmatprep.mubr.f32.mxu0 0.0
      %709 = vmatmul.mubr.f32.gmra.mxu0 %v553
      %v710 = vpop.f32.mrf.mxu0
      %v711 = vadd.f32 0.0, %v710
      %v712 = vpop.f32.mrf.mxu0
      %713 = vmatprep.mubr.f32.mxu0 0.0
      %714 = vmatmul.mubr.f32.gmra.mxu0 %v556
      %v715 = vpop.f32.mrf.mxu0
      %v716 = vadd.f32 0.0, %v715
      %v717 = vpop.f32.mrf.mxu0
      %718 = vmatprep.mubr.f32.mxu0 0.0
      %719 = vmatmul.mubr.f32.gmra.mxu0 %v559
      %v720 = vpop.f32.mrf.mxu0
      %v721 = vadd.f32 0.0, %v720
      %v722 = vpop.f32.mrf.mxu0
      %723 = vmatprep.mubr.f32.mxu0 0.0
      %724 = vmatmul.mubr.f32.gmra.mxu0 %v562
      %v725 = vpop.f32.mrf.mxu0
      %v726 = vadd.f32 0.0, %v725
      %v727 = vpop.f32.mrf.mxu0
      %728 = vmatprep.mubr.f32.mxu0 0.0
      %729 = vmatmul.mubr.f32.gmra.mxu0 %v565
      %v730 = vpop.f32.mrf.mxu0
      %v731 = vadd.f32 0.0, %v730
      %v732 = vpop.f32.mrf.mxu0
      %733 = vmatprep.mubr.f32.mxu0 0.0
      %734 = vmatmul.mubr.f32.gmra.mxu0 %v568
      %v735 = vpop.f32.mrf.mxu0
      %v736 = vadd.f32 0.0, %v735
      %v737 = vpop.f32.mrf.mxu0
      %738 = vdwg.mxu0
      %v740 = vsel %vm420, %v467, 0
      %v743 = vsel %vm420, %v468, 0
      %v746 = vsel %vm420, %v469, 0
      %v749 = vsel %vm420, %v470, 0
      %v752 = vsel %vm420, %v471, 0
      %v755 = vsel %vm420, %v472, 0
      %v758 = vsel %vm420, %v473, 0
      %v761 = vsel %vm420, %v474, 0
      %v764 = vsel %vm420, %v475, 0
      %v767 = vsel %vm420, %v476, 0
      %v770 = vsel %vm420, %v477, 0
      %v773 = vsel %vm420, %v478, 0
      %v776 = vsel %vm420, %v479, 0
      %v779 = vsel %vm420, %v480, 0
      %v782 = vsel %vm420, %v481, 0
      %v785 = vsel %vm420, %v482, 0
      %v788 = vsel %vm420, %v483, 0
      %v791 = vsel %vm420, %v484, 0
      %v794 = vsel %vm420, %v485, 0
      %v797 = vsel %vm420, %v486, 0
      %v800 = vsel %vm570, %v487, 0
      %802 = vmatprep.subr.mxu0 0.0
      %803 = vmatpush1.msra.mxu0 0.0
      %804 = vmatprep.subr.mxu0 0.0
      %805 = vmatpush1.msra.mxu0 0.0
      %806 = vmatprep.subr.mxu0 0.0
      %807 = vmatpush1.msra.mxu0 0.0
      %808 = vmatprep.subr.mxu0 0.0
      %809 = vmatpush1.msra.mxu0 0.0
      %810 = vmatprep.subr.mxu0 0.0
      %811 = vmatpush1.msra.mxu0 0.0
      %812 = vmatprep.subr.mxu0 0.0
      %813 = vmatpush1.msra.mxu0 0.0
      %814 = vmatprep.subr.mxu0 0.0
      %815 = vmatpush1.msra.mxu0 0.0
      %816 = vmatprep.subr.mxu0 0.0
      %817 = vmatpush1.msra.mxu0 0.0
      %818 = vmatprep.subr.mxu0 0.0
      %819 = vmatpush1.msra.mxu0 0.0
      %820 = vmatprep.subr.mxu0 0.0
      %821 = vmatpush1.msra.mxu0 0.0
      %822 = vmatprep.subr.mxu0 0.0
      %823 = vmatpush1.msra.mxu0 0.0
      %824 = vmatprep.subr.mxu0 0.0
      %825 = vmatpush1.msra.mxu0 0.0
      %826 = vmatprep.subr.mxu0 0.0
      %827 = vmatpush1.msra.mxu0 0.0
      %828 = vmatprep.subr.mxu0 0.0
      %829 = vmatpush1.msra.mxu0 0.0
      %830 = vmatprep.subr.mxu0 0.0
      %831 = vmatpush1.msra.mxu0 0.0
      %832 = vmatprep.subr.mxu0 0.0
      %833 = vmatpush1.msra.mxu0 %v800
      %834 = vmatprep.subr.mxu0 0.0
      %835 = vmatpush2.msra.mxu0 0.0
      %836 = vmatprep.subr.mxu0 0.0
      %837 = vmatpush2.msra.mxu0 0.0
      %838 = vmatprep.subr.mxu0 0.0
      %839 = vmatpush2.msra.mxu0 0.0
      %840 = vmatprep.subr.mxu0 0.0
      %841 = vmatpush2.msra.mxu0 0.0
      %842 = vmatprep.subr.mxu0 0.0
      %843 = vmatpush2.msra.mxu0 0.0
      %844 = vmatprep.subr.mxu0 0.0
      %845 = vmatpush2.msra.mxu0 0.0
      %846 = vmatprep.subr.mxu0 0.0
      %847 = vmatpush2.msra.mxu0 0.0
      %848 = vmatprep.subr.mxu0 0.0
      %849 = vmatpush2.msra.mxu0 0.0
      %850 = vmatprep.subr.mxu0 0.0
      %851 = vmatpush2.msra.mxu0 0.0
      %852 = vmatprep.subr.mxu0 0.0
      %853 = vmatpush2.msra.mxu0 0.0
      %854 = vmatprep.subr.mxu0 0.0
      %855 = vmatpush2.msra.mxu0 0.0
      %856 = vmatprep.subr.mxu0 0.0
      %857 = vmatpush2.msra.mxu0 0.0
      %858 = vmatprep.subr.mxu0 0.0
      %859 = vmatpush2.msra.mxu0 0.0
      %860 = vmatprep.subr.mxu0 0.0
      %861 = vmatpush2.msra.mxu0 0.0
      %862 = vmatprep.subr.mxu0 0.0
      %863 = vmatpush2.msra.mxu0 0.0
      %864 = vmatprep.subr.mxu0 0.0
      %865 = vmatpush2.msra.mxu0 0.0
      %866 = vmatprep.mubr.f32.mxu0 0.0
      %867 = vmatmul.mubr.f32.gmra.mxu0 %v740
      %v868 = vpop.f32.mrf.mxu0
      %v869 = vadd.f32 %v641, %v868
      %v870 = vpop.f32.mrf.mxu0
      %871 = vmatprep.mubr.f32.mxu0 0.0
      %872 = vmatmul.mubr.f32.gmra.mxu0 %v743
      %v873 = vpop.f32.mrf.mxu0
      %v874 = vadd.f32 %v646, %v873
      %v875 = vpop.f32.mrf.mxu0
      %876 = vmatprep.mubr.f32.mxu0 0.0
      %877 = vmatmul.mubr.f32.gmra.mxu0 %v746
      %v878 = vpop.f32.mrf.mxu0
      %v879 = vadd.f32 %v651, %v878
      %v880 = vpop.f32.mrf.mxu0
      %881 = vmatprep.mubr.f32.mxu0 0.0
      %882 = vmatmul.mubr.f32.gmra.mxu0 %v749
      %v883 = vpop.f32.mrf.mxu0
      %v884 = vadd.f32 %v656, %v883
      %v885 = vpop.f32.mrf.mxu0
      %886 = vmatprep.mubr.f32.mxu0 0.0
      %887 = vmatmul.mubr.f32.gmra.mxu0 %v752
      %v888 = vpop.f32.mrf.mxu0
      %v889 = vadd.f32 %v661, %v888
      %v890 = vpop.f32.mrf.mxu0
      %891 = vmatprep.mubr.f32.mxu0 0.0
      %892 = vmatmul.mubr.f32.gmra.mxu0 %v755
      %v893 = vpop.f32.mrf.mxu0
      %v894 = vadd.f32 %v666, %v893
      %v895 = vpop.f32.mrf.mxu0
      %896 = vmatprep.mubr.f32.mxu0 0.0
      %897 = vmatmul.mubr.f32.gmra.mxu0 %v758
      %v898 = vpop.f32.mrf.mxu0
      %v899 = vadd.f32 %v671, %v898
      %v900 = vpop.f32.mrf.mxu0
      %901 = vmatprep.mubr.f32.mxu0 0.0
      %902 = vmatmul.mubr.f32.gmra.mxu0 %v761
      %v903 = vpop.f32.mrf.mxu0
      %v904 = vadd.f32 %v676, %v903
      %v905 = vpop.f32.mrf.mxu0
      %906 = vmatprep.mubr.f32.mxu0 0.0
      %907 = vmatmul.mubr.f32.gmra.mxu0 %v764
      %v908 = vpop.f32.mrf.mxu0
      %v909 = vadd.f32 %v681, %v908
      %v910 = vpop.f32.mrf.mxu0
      %911 = vmatprep.mubr.f32.mxu0 0.0
      %912 = vmatmul.mubr.f32.gmra.mxu0 %v767
      %v913 = vpop.f32.mrf.mxu0
      %v914 = vadd.f32 %v686, %v913
      %v915 = vpop.f32.mrf.mxu0
      %916 = vmatprep.mubr.f32.mxu0 0.0
      %917 = vmatmul.mubr.f32.gmra.mxu0 %v770
      %v918 = vpop.f32.mrf.mxu0
      %v919 = vadd.f32 %v691, %v918
      %v920 = vpop.f32.mrf.mxu0
      %921 = vmatprep.mubr.f32.mxu0 0.0
      %922 = vmatmul.mubr.f32.gmra.mxu0 %v773
      %v923 = vpop.f32.mrf.mxu0
      %v924 = vadd.f32 %v696, %v923
      %v925 = vpop.f32.mrf.mxu0
      %926 = vmatprep.mubr.f32.mxu0 0.0
      %927 = vmatmul.mubr.f32.gmra.mxu0 %v776
      %v928 = vpop.f32.mrf.mxu0
      %v929 = vadd.f32 %v701, %v928
      %v930 = vpop.f32.mrf.mxu0
      %931 = vmatprep.mubr.f32.mxu0 0.0
      %932 = vmatmul.mubr.f32.gmra.mxu0 %v779
      %v933 = vpop.f32.mrf.mxu0
      %v934 = vadd.f32 %v706, %v933
      %v935 = vpop.f32.mrf.mxu0
      %936 = vmatprep.mubr.f32.mxu0 0.0
      %937 = vmatmul.mubr.f32.gmra.mxu0 %v782
      %v938 = vpop.f32.mrf.mxu0
      %v939 = vadd.f32 %v711, %v938
      %v940 = vpop.f32.mrf.mxu0
      %941 = vmatprep.mubr.f32.mxu0 0.0
      %942 = vmatmul.mubr.f32.gmra.mxu0 %v785
      %v943 = vpop.f32.mrf.mxu0
      %v944 = vadd.f32 %v716, %v943
      %v945 = vpop.f32.mrf.mxu0
      %946 = vmatprep.mubr.f32.mxu0 0.0
      %947 = vmatmul.mubr.f32.gmra.mxu0 %v788
      %v948 = vpop.f32.mrf.mxu0
      %v949 = vadd.f32 %v721, %v948
      %v950 = vpop.f32.mrf.mxu0
      %951 = vmatprep.mubr.f32.mxu0 0.0
      %952 = vmatmul.mubr.f32.gmra.mxu0 %v791
      %v953 = vpop.f32.mrf.mxu0
      %v954 = vadd.f32 %v726, %v953
      %v955 = vpop.f32.mrf.mxu0
      %956 = vmatprep.mubr.f32.mxu0 0.0
      %957 = vmatmul.mubr.f32.gmra.mxu0 %v794
      %v958 = vpop.f32.mrf.mxu0
      %v959 = vadd.f32 %v731, %v958
      %v960 = vpop.f32.mrf.mxu0
      %961 = vmatprep.mubr.f32.mxu0 0.0
      %962 = vmatmul.mubr.f32.gmra.mxu0 %v797
      %v963 = vpop.f32.mrf.mxu0
      %v964 = vadd.f32 %v736, %v963
      %v965 = vpop.f32.mrf.mxu0
      %966 = vdwg.mxu0
      %v967 = vld [vmem:[#allocation2 + $0x2] sm:$0xff]
      %v968 = vld [vmem:[#allocation2 + $0xa] sm:$0xff]
      %v969 = vld [vmem:[#allocation2 + $0x1a] sm:$0xff]
      %v970 = vld [vmem:[#allocation2 + $0x22] sm:$0xff]
      %v971 = vld [vmem:[#allocation2 + $0x32] sm:$0xff]
      %v972 = vld [vmem:[#allocation2 + $0x3a] sm:$0xff]
      %v973 = vld [vmem:[#allocation2 + $0x4a] sm:$0xff]
      %v974 = vld [vmem:[#allocation2 + $0x52] sm:$0xff]
      %v975 = vld [vmem:[#allocation2 + $0x62] sm:$0xff]
      %v976 = vld [vmem:[#allocation2 + $0x6a] sm:$0xff]
      %v977 = vld [vmem:[#allocation2 + $0x7a] sm:$0xff]
      %v978 = vld [vmem:[#allocation2 + $0x82] sm:$0xff]
      %v979 = vld [vmem:[#allocation2 + $0x92] sm:$0xff]
      %v980 = vld [vmem:[#allocation2 + $0x9a] sm:$0xff]
      %v981 = vld [vmem:[#allocation2 + $0xaa] sm:$0xff]
      %v982 = vld [vmem:[#allocation2 + $0xb2] sm:$0xff]
      %v983 = vld [vmem:[#allocation2 + $0xc2] sm:$0xff]
      %v984 = vld [vmem:[#allocation2 + $0xca] sm:$0xff]
      %v985 = vld [vmem:[#allocation2 + $0xda] sm:$0xff]
      %v986 = vld [vmem:[#allocation2 + $0xe2] sm:$0xff]
      %s987 = scalar_lea.vmem %s3, 8
      %v988 = vld [vmem:[%s987] sm:$0xf]
      %v990 = vsel %vm420, %v967, 0
      %v993 = vsel %vm420, %v968, 0
      %v996 = vsel %vm420, %v969, 0
      %v999 = vsel %vm420, %v970, 0
      %v1002 = vsel %vm420, %v971, 0
      %v1005 = vsel %vm420, %v972, 0
      %v1008 = vsel %vm420, %v973, 0
      %v1011 = vsel %vm420, %v974, 0
      %v1014 = vsel %vm420, %v975, 0
      %v1017 = vsel %vm420, %v976, 0
      %v1020 = vsel %vm420, %v977, 0
      %v1023 = vsel %vm420, %v978, 0
      %v1026 = vsel %vm420, %v979, 0
      %v1029 = vsel %vm420, %v980, 0
      %v1032 = vsel %vm420, %v981, 0
      %v1035 = vsel %vm420, %v982, 0
      %v1038 = vsel %vm420, %v983, 0
      %v1041 = vsel %vm420, %v984, 0
      %v1044 = vsel %vm420, %v985, 0
      %v1047 = vsel %vm420, %v986, 0
      %v1050 = vsel %vm570, %v988, 0
      %1052 = vmatprep.subr.mxu0 0.0
      %1053 = vmatpush1.msra.mxu0 0.0
      %1054 = vmatprep.subr.mxu0 0.0
      %1055 = vmatpush1.msra.mxu0 0.0
      %1056 = vmatprep.subr.mxu0 0.0
      %1057 = vmatpush1.msra.mxu0 0.0
      %1058 = vmatprep.subr.mxu0 0.0
      %1059 = vmatpush1.msra.mxu0 0.0
      %1060 = vmatprep.subr.mxu0 0.0
      %1061 = vmatpush1.msra.mxu0 0.0
      %1062 = vmatprep.subr.mxu0 0.0
      %1063 = vmatpush1.msra.mxu0 0.0
      %1064 = vmatprep.subr.mxu0 0.0
      %1065 = vmatpush1.msra.mxu0 0.0
      %1066 = vmatprep.subr.mxu0 0.0
      %1067 = vmatpush1.msra.mxu0 0.0
      %1068 = vmatprep.subr.mxu0 0.0
      %1069 = vmatpush1.msra.mxu0 0.0
      %1070 = vmatprep.subr.mxu0 0.0
      %1071 = vmatpush1.msra.mxu0 0.0
      %1072 = vmatprep.subr.mxu0 0.0
      %1073 = vmatpush1.msra.mxu0 0.0
      %1074 = vmatprep.subr.mxu0 0.0
      %1075 = vmatpush1.msra.mxu0 0.0
      %1076 = vmatprep.subr.mxu0 0.0
      %1077 = vmatpush1.msra.mxu0 0.0
      %1078 = vmatprep.subr.mxu0 0.0
      %1079 = vmatpush1.msra.mxu0 0.0
      %1080 = vmatprep.subr.mxu0 0.0
      %1081 = vmatpush1.msra.mxu0 0.0
      %1082 = vmatprep.subr.mxu0 0.0
      %1083 = vmatpush1.msra.mxu0 %v1050
      %1084 = vmatprep.subr.mxu0 0.0
      %1085 = vmatpush2.msra.mxu0 0.0
      %1086 = vmatprep.subr.mxu0 0.0
      %1087 = vmatpush2.msra.mxu0 0.0
      %1088 = vmatprep.subr.mxu0 0.0
      %1089 = vmatpush2.msra.mxu0 0.0
      %1090 = vmatprep.subr.mxu0 0.0
      %1091 = vmatpush2.msra.mxu0 0.0
      %1092 = vmatprep.subr.mxu0 0.0
      %1093 = vmatpush2.msra.mxu0 0.0
      %1094 = vmatprep.subr.mxu0 0.0
      %1095 = vmatpush2.msra.mxu0 0.0
      %1096 = vmatprep.subr.mxu0 0.0
      %1097 = vmatpush2.msra.mxu0 0.0
      %1098 = vmatprep.subr.mxu0 0.0
      %1099 = vmatpush2.msra.mxu0 0.0
      %1100 = vmatprep.subr.mxu0 0.0
      %1101 = vmatpush2.msra.mxu0 0.0
      %1102 = vmatprep.subr.mxu0 0.0
      %1103 = vmatpush2.msra.mxu0 0.0
      %1104 = vmatprep.subr.mxu0 0.0
      %1105 = vmatpush2.msra.mxu0 0.0
      %1106 = vmatprep.subr.mxu0 0.0
      %1107 = vmatpush2.msra.mxu0 0.0
      %1108 = vmatprep.subr.mxu0 0.0
      %1109 = vmatpush2.msra.mxu0 0.0
      %1110 = vmatprep.subr.mxu0 0.0
      %1111 = vmatpush2.msra.mxu0 0.0
      %1112 = vmatprep.subr.mxu0 0.0
      %1113 = vmatpush2.msra.mxu0 0.0
      %1114 = vmatprep.subr.mxu0 0.0
      %1115 = vmatpush2.msra.mxu0 0.0
      %1116 = vmatprep.mubr.f32.mxu0 0.0
      %1117 = vmatmul.mubr.f32.gmra.mxu0 %v990
      %v1118 = vpop.f32.mrf.mxu0
      %v1119 = vadd.f32 0.0, %v1118
      %v1120 = vpop.f32.mrf.mxu0
      %1121 = vmatprep.mubr.f32.mxu0 0.0
      %1122 = vmatmul.mubr.f32.gmra.mxu0 %v993
      %v1123 = vpop.f32.mrf.mxu0
      %v1124 = vadd.f32 0.0, %v1123
      %v1125 = vpop.f32.mrf.mxu0
      %1126 = vmatprep.mubr.f32.mxu0 0.0
      %1127 = vmatmul.mubr.f32.gmra.mxu0 %v996
      %v1128 = vpop.f32.mrf.mxu0
      %v1129 = vadd.f32 0.0, %v1128
      %v1130 = vpop.f32.mrf.mxu0
      %1131 = vmatprep.mubr.f32.mxu0 0.0
      %1132 = vmatmul.mubr.f32.gmra.mxu0 %v999
      %v1133 = vpop.f32.mrf.mxu0
      %v1134 = vadd.f32 0.0, %v1133
      %v1135 = vpop.f32.mrf.mxu0
      %1136 = vmatprep.mubr.f32.mxu0 0.0
      %1137 = vmatmul.mubr.f32.gmra.mxu0 %v1002
      %v1138 = vpop.f32.mrf.mxu0
      %v1139 = vadd.f32 0.0, %v1138
      %v1140 = vpop.f32.mrf.mxu0
      %1141 = vmatprep.mubr.f32.mxu0 0.0
      %1142 = vmatmul.mubr.f32.gmra.mxu0 %v1005
      %v1143 = vpop.f32.mrf.mxu0
      %v1144 = vadd.f32 0.0, %v1143
      %v1145 = vpop.f32.mrf.mxu0
      %1146 = vmatprep.mubr.f32.mxu0 0.0
      %1147 = vmatmul.mubr.f32.gmra.mxu0 %v1008
      %v1148 = vpop.f32.mrf.mxu0
      %v1149 = vadd.f32 0.0, %v1148
      %v1150 = vpop.f32.mrf.mxu0
      %1151 = vmatprep.mubr.f32.mxu0 0.0
      %1152 = vmatmul.mubr.f32.gmra.mxu0 %v1011
      %v1153 = vpop.f32.mrf.mxu0
      %v1154 = vadd.f32 0.0, %v1153
      %v1155 = vpop.f32.mrf.mxu0
      %1156 = vmatprep.mubr.f32.mxu0 0.0
      %1157 = vmatmul.mubr.f32.gmra.mxu0 %v1014
      %v1158 = vpop.f32.mrf.mxu0
      %v1159 = vadd.f32 0.0, %v1158
      %v1160 = vpop.f32.mrf.mxu0
      %1161 = vmatprep.mubr.f32.mxu0 0.0
      %1162 = vmatmul.mubr.f32.gmra.mxu0 %v1017
      %v1163 = vpop.f32.mrf.mxu0
      %v1164 = vadd.f32 0.0, %v1163
      %v1165 = vpop.f32.mrf.mxu0
      %1166 = vmatprep.mubr.f32.mxu0 0.0
      %1167 = vmatmul.mubr.f32.gmra.mxu0 %v1020
      %v1168 = vpop.f32.mrf.mxu0
      %v1169 = vadd.f32 0.0, %v1168
      %v1170 = vpop.f32.mrf.mxu0
      %1171 = vmatprep.mubr.f32.mxu0 0.0
      %1172 = vmatmul.mubr.f32.gmra.mxu0 %v1023
      %v1173 = vpop.f32.mrf.mxu0
      %v1174 = vadd.f32 0.0, %v1173
      %v1175 = vpop.f32.mrf.mxu0
      %1176 = vmatprep.mubr.f32.mxu0 0.0
      %1177 = vmatmul.mubr.f32.gmra.mxu0 %v1026
      %v1178 = vpop.f32.mrf.mxu0
      %v1179 = vadd.f32 0.0, %v1178
      %v1180 = vpop.f32.mrf.mxu0
      %1181 = vmatprep.mubr.f32.mxu0 0.0
      %1182 = vmatmul.mubr.f32.gmra.mxu0 %v1029
      %v1183 = vpop.f32.mrf.mxu0
      %v1184 = vadd.f32 0.0, %v1183
      %v1185 = vpop.f32.mrf.mxu0
      %1186 = vmatprep.mubr.f32.mxu0 0.0
      %1187 = vmatmul.mubr.f32.gmra.mxu0 %v1032
      %v1188 = vpop.f32.mrf.mxu0
      %v1189 = vadd.f32 0.0, %v1188
      %v1190 = vpop.f32.mrf.mxu0
      %1191 = vmatprep.mubr.f32.mxu0 0.0
      %1192 = vmatmul.mubr.f32.gmra.mxu0 %v1035
      %v1193 = vpop.f32.mrf.mxu0
      %v1194 = vadd.f32 0.0, %v1193
      %v1195 = vpop.f32.mrf.mxu0
      %1196 = vmatprep.mubr.f32.mxu0 0.0
      %1197 = vmatmul.mubr.f32.gmra.mxu0 %v1038
      %v1198 = vpop.f32.mrf.mxu0
      %v1199 = vadd.f32 0.0, %v1198
      %v1200 = vpop.f32.mrf.mxu0
      %1201 = vmatprep.mubr.f32.mxu0 0.0
      %1202 = vmatmul.mubr.f32.gmra.mxu0 %v1041
      %v1203 = vpop.f32.mrf.mxu0
      %v1204 = vadd.f32 0.0, %v1203
      %v1205 = vpop.f32.mrf.mxu0
      %1206 = vmatprep.mubr.f32.mxu0 0.0
      %1207 = vmatmul.mubr.f32.gmra.mxu0 %v1044
      %v1208 = vpop.f32.mrf.mxu0
      %v1209 = vadd.f32 0.0, %v1208
      %v1210 = vpop.f32.mrf.mxu0
      %1211 = vmatprep.mubr.f32.mxu0 0.0
      %1212 = vmatmul.mubr.f32.gmra.mxu0 %v1047
      %v1213 = vpop.f32.mrf.mxu0
      %v1214 = vadd.f32 0.0, %v1213
      %v1215 = vpop.f32.mrf.mxu0
      %1216 = vdwg.mxu0
      %v1217 = vadd.f32 %v869, %v1119
      %v1218 = vadd.f32 %v874, %v1124
      %v1219 = vadd.f32 %v879, %v1129
      %v1220 = vadd.f32 %v884, %v1134
      %v1221 = vadd.f32 %v889, %v1139
      %v1222 = vadd.f32 %v894, %v1144
      %v1223 = vadd.f32 %v899, %v1149
      %v1224 = vadd.f32 %v904, %v1154
      %v1225 = vadd.f32 %v909, %v1159
      %v1226 = vadd.f32 %v914, %v1164
      %v1227 = vadd.f32 %v919, %v1169
      %v1228 = vadd.f32 %v924, %v1174
      %v1229 = vadd.f32 %v929, %v1179
      %v1230 = vadd.f32 %v934, %v1184
      %v1231 = vadd.f32 %v939, %v1189
      %v1232 = vadd.f32 %v944, %v1194
      %v1233 = vadd.f32 %v949, %v1199
      %v1234 = vadd.f32 %v954, %v1204
      %v1235 = vadd.f32 %v959, %v1209
      %v1236 = vadd.f32 %v964, %v1214
      %s1237 = scalar_lea.vmem [#allocation2], 24
      %v1238 = vld [vmem:[%s1237] sm:$0xff]
      %v1239 = vld [vmem:[%s1237 + $0x8] sm:$0xff]
      %v1240 = vld [vmem:[%s1237 + $0x18] sm:$0xff]
      %v1241 = vld [vmem:[%s1237 + $0x20] sm:$0xff]
      %v1242 = vld [vmem:[%s1237 + $0x30] sm:$0xff]
      %v1243 = vld [vmem:[%s1237 + $0x38] sm:$0xff]
      %v1244 = vld [vmem:[%s1237 + $0x48] sm:$0xff]
      %v1245 = vld [vmem:[%s1237 + $0x50] sm:$0xff]
      %v1246 = vld [vmem:[%s1237 + $0x60] sm:$0xff]
      %v1247 = vld [vmem:[%s1237 + $0x68] sm:$0xff]
      %v1248 = vld [vmem:[%s1237 + $0x78] sm:$0xff]
      %v1249 = vld [vmem:[%s1237 + $0x80] sm:$0xff]
      %v1250 = vld [vmem:[%s1237 + $0x90] sm:$0xff]
      %v1251 = vld [vmem:[%s1237 + $0x98] sm:$0xff]
      %v1252 = vld [vmem:[%s1237 + $0xa8] sm:$0xff]
      %v1253 = vld [vmem:[%s1237 + $0xb0] sm:$0xff]
      %v1254 = vld [vmem:[%s1237 + $0xc0] sm:$0xff]
      %v1255 = vld [vmem:[%s1237 + $0xc8] sm:$0xff]
      %v1256 = vld [vmem:[%s1237 + $0xd8] sm:$0xff]
      %v1257 = vld [vmem:[%s1237 + $0xe0] sm:$0xff]
      %s1258 = scalar_lea.vmem %s3, 12
      %v1259 = vld [vmem:[%s1258] sm:$0xf]
      %v1261 = vsel %vm420, %v1238, 0
      %v1264 = vsel %vm420, %v1239, 0
      %v1267 = vsel %vm420, %v1240, 0
      %v1270 = vsel %vm420, %v1241, 0
      %v1273 = vsel %vm420, %v1242, 0
      %v1276 = vsel %vm420, %v1243, 0
      %v1279 = vsel %vm420, %v1244, 0
      %v1282 = vsel %vm420, %v1245, 0
      %v1285 = vsel %vm420, %v1246, 0
      %v1288 = vsel %vm420, %v1247, 0
      %v1291 = vsel %vm420, %v1248, 0
      %v1294 = vsel %vm420, %v1249, 0
      %v1297 = vsel %vm420, %v1250, 0
      %v1300 = vsel %vm420, %v1251, 0
      %v1303 = vsel %vm420, %v1252, 0
      %v1306 = vsel %vm420, %v1253, 0
      %v1309 = vsel %vm420, %v1254, 0
      %v1312 = vsel %vm420, %v1255, 0
      %v1315 = vsel %vm420, %v1256, 0
      %v1318 = vsel %vm420, %v1257, 0
      %v1321 = vsel %vm570, %v1259, 0
      %1323 = vmatprep.subr.mxu0 0.0
      %1324 = vmatpush1.msra.mxu0 0.0
      %1325 = vmatprep.subr.mxu0 0.0
      %1326 = vmatpush1.msra.mxu0 0.0
      %1327 = vmatprep.subr.mxu0 0.0
      %1328 = vmatpush1.msra.mxu0 0.0
      %1329 = vmatprep.subr.mxu0 0.0
      %1330 = vmatpush1.msra.mxu0 0.0
      %1331 = vmatprep.subr.mxu0 0.0
      %1332 = vmatpush1.msra.mxu0 0.0
      %1333 = vmatprep.subr.mxu0 0.0
      %1334 = vmatpush1.msra.mxu0 0.0
      %1335 = vmatprep.subr.mxu0 0.0
      %1336 = vmatpush1.msra.mxu0 0.0
      %1337 = vmatprep.subr.mxu0 0.0
      %1338 = vmatpush1.msra.mxu0 0.0
      %1339 = vmatprep.subr.mxu0 0.0
      %1340 = vmatpush1.msra.mxu0 0.0
      %1341 = vmatprep.subr.mxu0 0.0
      %1342 = vmatpush1.msra.mxu0 0.0
      %1343 = vmatprep.subr.mxu0 0.0
      %1344 = vmatpush1.msra.mxu0 0.0
      %1345 = vmatprep.subr.mxu0 0.0
      %1346 = vmatpush1.msra.mxu0 0.0
      %1347 = vmatprep.subr.mxu0 0.0
      %1348 = vmatpush1.msra.mxu0 0.0
      %1349 = vmatprep.subr.mxu0 0.0
      %1350 = vmatpush1.msra.mxu0 0.0
      %1351 = vmatprep.subr.mxu0 0.0
      %1352 = vmatpush1.msra.mxu0 0.0
      %1353 = vmatprep.subr.mxu0 0.0
      %1354 = vmatpush1.msra.mxu0 %v1321
      %1355 = vmatprep.subr.mxu0 0.0
      %1356 = vmatpush2.msra.mxu0 0.0
      %1357 = vmatprep.subr.mxu0 0.0
      %1358 = vmatpush2.msra.mxu0 0.0
      %1359 = vmatprep.subr.mxu0 0.0
      %1360 = vmatpush2.msra.mxu0 0.0
      %1361 = vmatprep.subr.mxu0 0.0
      %1362 = vmatpush2.msra.mxu0 0.0
      %1363 = vmatprep.subr.mxu0 0.0
      %1364 = vmatpush2.msra.mxu0 0.0
      %1365 = vmatprep.subr.mxu0 0.0
      %1366 = vmatpush2.msra.mxu0 0.0
      %1367 = vmatprep.subr.mxu0 0.0
      %1368 = vmatpush2.msra.mxu0 0.0
      %1369 = vmatprep.subr.mxu0 0.0
      %1370 = vmatpush2.msra.mxu0 0.0
      %1371 = vmatprep.subr.mxu0 0.0
      %1372 = vmatpush2.msra.mxu0 0.0
      %1373 = vmatprep.subr.mxu0 0.0
      %1374 = vmatpush2.msra.mxu0 0.0
      %1375 = vmatprep.subr.mxu0 0.0
      %1376 = vmatpush2.msra.mxu0 0.0
      %1377 = vmatprep.subr.mxu0 0.0
      %1378 = vmatpush2.msra.mxu0 0.0
      %1379 = vmatprep.subr.mxu0 0.0
      %1380 = vmatpush2.msra.mxu0 0.0
      %1381 = vmatprep.subr.mxu0 0.0
      %1382 = vmatpush2.msra.mxu0 0.0
      %1383 = vmatprep.subr.mxu0 0.0
      %1384 = vmatpush2.msra.mxu0 0.0
      %1385 = vmatprep.subr.mxu0 0.0
      %1386 = vmatpush2.msra.mxu0 0.0
      %1387 = vmatprep.mubr.f32.mxu0 0.0
      %1388 = vmatmul.mubr.f32.gmra.mxu0 %v1261
      %v1389 = vpop.f32.mrf.mxu0
      %v1390 = vadd.f32 0.0, %v1389
      %v1391 = vpop.f32.mrf.mxu0
      %1392 = vmatprep.mubr.f32.mxu0 0.0
      %1393 = vmatmul.mubr.f32.gmra.mxu0 %v1264
      %v1394 = vpop.f32.mrf.mxu0
      %v1395 = vadd.f32 0.0, %v1394
      %v1396 = vpop.f32.mrf.mxu0
      %1397 = vmatprep.mubr.f32.mxu0 0.0
      %1398 = vmatmul.mubr.f32.gmra.mxu0 %v1267
      %v1399 = vpop.f32.mrf.mxu0
      %v1400 = vadd.f32 0.0, %v1399
      %v1401 = vpop.f32.mrf.mxu0
      %1402 = vmatprep.mubr.f32.mxu0 0.0
      %1403 = vmatmul.mubr.f32.gmra.mxu0 %v1270
      %v1404 = vpop.f32.mrf.mxu0
      %v1405 = vadd.f32 0.0, %v1404
      %v1406 = vpop.f32.mrf.mxu0
      %1407 = vmatprep.mubr.f32.mxu0 0.0
      %1408 = vmatmul.mubr.f32.gmra.mxu0 %v1273
      %v1409 = vpop.f32.mrf.mxu0
      %v1410 = vadd.f32 0.0, %v1409
      %v1411 = vpop.f32.mrf.mxu0
      %1412 = vmatprep.mubr.f32.mxu0 0.0
      %1413 = vmatmul.mubr.f32.gmra.mxu0 %v1276
      %v1414 = vpop.f32.mrf.mxu0
      %v1415 = vadd.f32 0.0, %v1414
      %v1416 = vpop.f32.mrf.mxu0
      %1417 = vmatprep.mubr.f32.mxu0 0.0
      %1418 = vmatmul.mubr.f32.gmra.mxu0 %v1279
      %v1419 = vpop.f32.mrf.mxu0
      %v1420 = vadd.f32 0.0, %v1419
      %v1421 = vpop.f32.mrf.mxu0
      %1422 = vmatprep.mubr.f32.mxu0 0.0
      %1423 = vmatmul.mubr.f32.gmra.mxu0 %v1282
      %v1424 = vpop.f32.mrf.mxu0
      %v1425 = vadd.f32 0.0, %v1424
      %v1426 = vpop.f32.mrf.mxu0
      %1427 = vmatprep.mubr.f32.mxu0 0.0
      %1428 = vmatmul.mubr.f32.gmra.mxu0 %v1285
      %v1429 = vpop.f32.mrf.mxu0
      %v1430 = vadd.f32 0.0, %v1429
      %v1431 = vpop.f32.mrf.mxu0
      %1432 = vmatprep.mubr.f32.mxu0 0.0
      %1433 = vmatmul.mubr.f32.gmra.mxu0 %v1288
      %v1434 = vpop.f32.mrf.mxu0
      %v1435 = vadd.f32 0.0, %v1434
      %v1436 = vpop.f32.mrf.mxu0
      %1437 = vmatprep.mubr.f32.mxu0 0.0
      %1438 = vmatmul.mubr.f32.gmra.mxu0 %v1291
      %v1439 = vpop.f32.mrf.mxu0
      %v1440 = vadd.f32 0.0, %v1439
      %v1441 = vpop.f32.mrf.mxu0
      %1442 = vmatprep.mubr.f32.mxu0 0.0
      %1443 = vmatmul.mubr.f32.gmra.mxu0 %v1294
      %v1444 = vpop.f32.mrf.mxu0
      %v1445 = vadd.f32 0.0, %v1444
      %v1446 = vpop.f32.mrf.mxu0
      %1447 = vmatprep.mubr.f32.mxu0 0.0
      %1448 = vmatmul.mubr.f32.gmra.mxu0 %v1297
      %v1449 = vpop.f32.mrf.mxu0
      %v1450 = vadd.f32 0.0, %v1449
      %v1451 = vpop.f32.mrf.mxu0
      %1452 = vmatprep.mubr.f32.mxu0 0.0
      %1453 = vmatmul.mubr.f32.gmra.mxu0 %v1300
      %v1454 = vpop.f32.mrf.mxu0
      %v1455 = vadd.f32 0.0, %v1454
      %v1456 = vpop.f32.mrf.mxu0
      %1457 = vmatprep.mubr.f32.mxu0 0.0
      %1458 = vmatmul.mubr.f32.gmra.mxu0 %v1303
      %v1459 = vpop.f32.mrf.mxu0
      %v1460 = vadd.f32 0.0, %v1459
      %v1461 = vpop.f32.mrf.mxu0
      %1462 = vmatprep.mubr.f32.mxu0 0.0
      %1463 = vmatmul.mubr.f32.gmra.mxu0 %v1306
      %v1464 = vpop.f32.mrf.mxu0
      %v1465 = vadd.f32 0.0, %v1464
      %v1466 = vpop.f32.mrf.mxu0
      %1467 = vmatprep.mubr.f32.mxu0 0.0
      %1468 = vmatmul.mubr.f32.gmra.mxu0 %v1309
      %v1469 = vpop.f32.mrf.mxu0
      %v1470 = vadd.f32 0.0, %v1469
      %v1471 = vpop.f32.mrf.mxu0
      %1472 = vmatprep.mubr.f32.mxu0 0.0
      %1473 = vmatmul.mubr.f32.gmra.mxu0 %v1312
      %v1474 = vpop.f32.mrf.mxu0
      %v1475 = vadd.f32 0.0, %v1474
      %v1476 = vpop.f32.mrf.mxu0
      %1477 = vmatprep.mubr.f32.mxu0 0.0
      %1478 = vmatmul.mubr.f32.gmra.mxu0 %v1315
      %v1479 = vpop.f32.mrf.mxu0
      %v1480 = vadd.f32 0.0, %v1479
      %v1481 = vpop.f32.mrf.mxu0
      %1482 = vmatprep.mubr.f32.mxu0 0.0
      %1483 = vmatmul.mubr.f32.gmra.mxu0 %v1318
      %v1484 = vpop.f32.mrf.mxu0
      %v1485 = vadd.f32 0.0, %v1484
      %v1486 = vpop.f32.mrf.mxu0
      %1487 = vdwg.mxu0
      %v1488 = vadd.f32 %v1217, %v1390
      %v1489 = vadd.f32 %v1218, %v1395
      %v1490 = vadd.f32 %v1219, %v1400
      %v1491 = vadd.f32 %v1220, %v1405
      %v1492 = vadd.f32 %v1221, %v1410
      %v1493 = vadd.f32 %v1222, %v1415
      %v1494 = vadd.f32 %v1223, %v1420
      %v1495 = vadd.f32 %v1224, %v1425
      %v1496 = vadd.f32 %v1225, %v1430
      %v1497 = vadd.f32 %v1226, %v1435
      %v1498 = vadd.f32 %v1227, %v1440
      %v1499 = vadd.f32 %v1228, %v1445
      %v1500 = vadd.f32 %v1229, %v1450
      %v1501 = vadd.f32 %v1230, %v1455
      %v1502 = vadd.f32 %v1231, %v1460
      %v1503 = vadd.f32 %v1232, %v1465
      %v1504 = vadd.f32 %v1233, %v1470
      %v1505 = vadd.f32 %v1234, %v1475
      %v1506 = vadd.f32 %v1235, %v1480
      %v1507 = vadd.f32 %v1236, %v1485
      %v1508 = vld [vmem:[%s1237 + $0x1] sm:$0xff]
      %v1509 = vld [vmem:[%s1237 + $0x9] sm:$0xff]
      %v1510 = vld [vmem:[%s1237 + $0x19] sm:$0xff]
      %v1511 = vld [vmem:[%s1237 + $0x21] sm:$0xff]
      %v1512 = vld [vmem:[%s1237 + $0x31] sm:$0xff]
      %v1513 = vld [vmem:[%s1237 + $0x39] sm:$0xff]
      %v1514 = vld [vmem:[%s1237 + $0x49] sm:$0xff]
      %v1515 = vld [vmem:[%s1237 + $0x51] sm:$0xff]
      %v1516 = vld [vmem:[%s1237 + $0x61] sm:$0xff]
      %v1517 = vld [vmem:[%s1237 + $0x69] sm:$0xff]
      %v1518 = vld [vmem:[%s1237 + $0x79] sm:$0xff]
      %v1519 = vld [vmem:[%s1237 + $0x81] sm:$0xff]
      %v1520 = vld [vmem:[%s1237 + $0x91] sm:$0xff]
      %v1521 = vld [vmem:[%s1237 + $0x99] sm:$0xff]
      %v1522 = vld [vmem:[%s1237 + $0xa9] sm:$0xff]
      %v1523 = vld [vmem:[%s1237 + $0xb1] sm:$0xff]
      %v1524 = vld [vmem:[%s1237 + $0xc1] sm:$0xff]
      %v1525 = vld [vmem:[%s1237 + $0xc9] sm:$0xff]
      %v1526 = vld [vmem:[%s1237 + $0xd9] sm:$0xff]
      %v1527 = vld [vmem:[%s1237 + $0xe1] sm:$0xff]
      %s1528 = scalar_lea.vmem %s3, 16
      %v1529 = vld [vmem:[%s1528] sm:$0xf]
      %v1531 = vsel %vm420, %v1508, 0
      %v1534 = vsel %vm420, %v1509, 0
      %v1537 = vsel %vm420, %v1510, 0
      %v1540 = vsel %vm420, %v1511, 0
      %v1543 = vsel %vm420, %v1512, 0
      %v1546 = vsel %vm420, %v1513, 0
      %v1549 = vsel %vm420, %v1514, 0
      %v1552 = vsel %vm420, %v1515, 0
      %v1555 = vsel %vm420, %v1516, 0
      %v1558 = vsel %vm420, %v1517, 0
      %v1561 = vsel %vm420, %v1518, 0
      %v1564 = vsel %vm420, %v1519, 0
      %v1567 = vsel %vm420, %v1520, 0
      %v1570 = vsel %vm420, %v1521, 0
      %v1573 = vsel %vm420, %v1522, 0
      %v1576 = vsel %vm420, %v1523, 0
      %v1579 = vsel %vm420, %v1524, 0
      %v1582 = vsel %vm420, %v1525, 0
      %v1585 = vsel %vm420, %v1526, 0
      %v1588 = vsel %vm420, %v1527, 0
      %v1591 = vsel %vm570, %v1529, 0
      %1593 = vmatprep.subr.mxu0 0.0
      %1594 = vmatpush1.msra.mxu0 0.0
      %1595 = vmatprep.subr.mxu0 0.0
      %1596 = vmatpush1.msra.mxu0 0.0
      %1597 = vmatprep.subr.mxu0 0.0
      %1598 = vmatpush1.msra.mxu0 0.0
      %1599 = vmatprep.subr.mxu0 0.0
      %1600 = vmatpush1.msra.mxu0 0.0
      %1601 = vmatprep.subr.mxu0 0.0
      %1602 = vmatpush1.msra.mxu0 0.0
      %1603 = vmatprep.subr.mxu0 0.0
      %1604 = vmatpush1.msra.mxu0 0.0
      %1605 = vmatprep.subr.mxu0 0.0
      %1606 = vmatpush1.msra.mxu0 0.0
      %1607 = vmatprep.subr.mxu0 0.0
      %1608 = vmatpush1.msra.mxu0 0.0
      %1609 = vmatprep.subr.mxu0 0.0
      %1610 = vmatpush1.msra.mxu0 0.0
      %1611 = vmatprep.subr.mxu0 0.0
      %1612 = vmatpush1.msra.mxu0 0.0
      %1613 = vmatprep.subr.mxu0 0.0
      %1614 = vmatpush1.msra.mxu0 0.0
      %1615 = vmatprep.subr.mxu0 0.0
      %1616 = vmatpush1.msra.mxu0 0.0
      %1617 = vmatprep.subr.mxu0 0.0
      %1618 = vmatpush1.msra.mxu0 0.0
      %1619 = vmatprep.subr.mxu0 0.0
      %1620 = vmatpush1.msra.mxu0 0.0
      %1621 = vmatprep.subr.mxu0 0.0
      %1622 = vmatpush1.msra.mxu0 0.0
      %1623 = vmatprep.subr.mxu0 0.0
      %1624 = vmatpush1.msra.mxu0 %v1591
      %1625 = vmatprep.subr.mxu0 0.0
      %1626 = vmatpush2.msra.mxu0 0.0
      %1627 = vmatprep.subr.mxu0 0.0
      %1628 = vmatpush2.msra.mxu0 0.0
      %1629 = vmatprep.subr.mxu0 0.0
      %1630 = vmatpush2.msra.mxu0 0.0
      %1631 = vmatprep.subr.mxu0 0.0
      %1632 = vmatpush2.msra.mxu0 0.0
      %1633 = vmatprep.subr.mxu0 0.0
      %1634 = vmatpush2.msra.mxu0 0.0
      %1635 = vmatprep.subr.mxu0 0.0
      %1636 = vmatpush2.msra.mxu0 0.0
      %1637 = vmatprep.subr.mxu0 0.0
      %1638 = vmatpush2.msra.mxu0 0.0
      %1639 = vmatprep.subr.mxu0 0.0
      %1640 = vmatpush2.msra.mxu0 0.0
      %1641 = vmatprep.subr.mxu0 0.0
      %1642 = vmatpush2.msra.mxu0 0.0
      %1643 = vmatprep.subr.mxu0 0.0
      %1644 = vmatpush2.msra.mxu0 0.0
      %1645 = vmatprep.subr.mxu0 0.0
      %1646 = vmatpush2.msra.mxu0 0.0
      %1647 = vmatprep.subr.mxu0 0.0
      %1648 = vmatpush2.msra.mxu0 0.0
      %1649 = vmatprep.subr.mxu0 0.0
      %1650 = vmatpush2.msra.mxu0 0.0
      %1651 = vmatprep.subr.mxu0 0.0
      %1652 = vmatpush2.msra.mxu0 0.0
      %1653 = vmatprep.subr.mxu0 0.0
      %1654 = vmatpush2.msra.mxu0 0.0
      %1655 = vmatprep.subr.mxu0 0.0
      %1656 = vmatpush2.msra.mxu0 0.0
      %1657 = vmatprep.mubr.f32.mxu0 0.0
      %1658 = vmatmul.mubr.f32.gmra.mxu0 %v1531
      %v1659 = vpop.f32.mrf.mxu0
      %v1660 = vadd.f32 0.0, %v1659
      %v1661 = vpop.f32.mrf.mxu0
      %1662 = vmatprep.mubr.f32.mxu0 0.0
      %1663 = vmatmul.mubr.f32.gmra.mxu0 %v1534
      %v1664 = vpop.f32.mrf.mxu0
      %v1665 = vadd.f32 0.0, %v1664
      %v1666 = vpop.f32.mrf.mxu0
      %1667 = vmatprep.mubr.f32.mxu0 0.0
      %1668 = vmatmul.mubr.f32.gmra.mxu0 %v1537
      %v1669 = vpop.f32.mrf.mxu0
      %v1670 = vadd.f32 0.0, %v1669
      %v1671 = vpop.f32.mrf.mxu0
      %1672 = vmatprep.mubr.f32.mxu0 0.0
      %1673 = vmatmul.mubr.f32.gmra.mxu0 %v1540
      %v1674 = vpop.f32.mrf.mxu0
      %v1675 = vadd.f32 0.0, %v1674
      %v1676 = vpop.f32.mrf.mxu0
      %1677 = vmatprep.mubr.f32.mxu0 0.0
      %1678 = vmatmul.mubr.f32.gmra.mxu0 %v1543
      %v1679 = vpop.f32.mrf.mxu0
      %v1680 = vadd.f32 0.0, %v1679
      %v1681 = vpop.f32.mrf.mxu0
      %1682 = vmatprep.mubr.f32.mxu0 0.0
      %1683 = vmatmul.mubr.f32.gmra.mxu0 %v1546
      %v1684 = vpop.f32.mrf.mxu0
      %v1685 = vadd.f32 0.0, %v1684
      %v1686 = vpop.f32.mrf.mxu0
      %1687 = vmatprep.mubr.f32.mxu0 0.0
      %1688 = vmatmul.mubr.f32.gmra.mxu0 %v1549
      %v1689 = vpop.f32.mrf.mxu0
      %v1690 = vadd.f32 0.0, %v1689
      %v1691 = vpop.f32.mrf.mxu0
      %1692 = vmatprep.mubr.f32.mxu0 0.0
      %1693 = vmatmul.mubr.f32.gmra.mxu0 %v1552
      %v1694 = vpop.f32.mrf.mxu0
      %v1695 = vadd.f32 0.0, %v1694
      %v1696 = vpop.f32.mrf.mxu0
      %1697 = vmatprep.mubr.f32.mxu0 0.0
      %1698 = vmatmul.mubr.f32.gmra.mxu0 %v1555
      %v1699 = vpop.f32.mrf.mxu0
      %v1700 = vadd.f32 0.0, %v1699
      %v1701 = vpop.f32.mrf.mxu0
      %1702 = vmatprep.mubr.f32.mxu0 0.0
      %1703 = vmatmul.mubr.f32.gmra.mxu0 %v1558
      %v1704 = vpop.f32.mrf.mxu0
      %v1705 = vadd.f32 0.0, %v1704
      %v1706 = vpop.f32.mrf.mxu0
      %1707 = vmatprep.mubr.f32.mxu0 0.0
      %1708 = vmatmul.mubr.f32.gmra.mxu0 %v1561
      %v1709 = vpop.f32.mrf.mxu0
      %v1710 = vadd.f32 0.0, %v1709
      %v1711 = vpop.f32.mrf.mxu0
      %1712 = vmatprep.mubr.f32.mxu0 0.0
      %1713 = vmatmul.mubr.f32.gmra.mxu0 %v1564
      %v1714 = vpop.f32.mrf.mxu0
      %v1715 = vadd.f32 0.0, %v1714
      %v1716 = vpop.f32.mrf.mxu0
      %1717 = vmatprep.mubr.f32.mxu0 0.0
      %1718 = vmatmul.mubr.f32.gmra.mxu0 %v1567
      %v1719 = vpop.f32.mrf.mxu0
      %v1720 = vadd.f32 0.0, %v1719
      %v1721 = vpop.f32.mrf.mxu0
      %1722 = vmatprep.mubr.f32.mxu0 0.0
      %1723 = vmatmul.mubr.f32.gmra.mxu0 %v1570
      %v1724 = vpop.f32.mrf.mxu0
      %v1725 = vadd.f32 0.0, %v1724
      %v1726 = vpop.f32.mrf.mxu0
      %1727 = vmatprep.mubr.f32.mxu0 0.0
      %1728 = vmatmul.mubr.f32.gmra.mxu0 %v1573
      %v1729 = vpop.f32.mrf.mxu0
      %v1730 = vadd.f32 0.0, %v1729
      %v1731 = vpop.f32.mrf.mxu0
      %1732 = vmatprep.mubr.f32.mxu0 0.0
      %1733 = vmatmul.mubr.f32.gmra.mxu0 %v1576
      %v1734 = vpop.f32.mrf.mxu0
      %v1735 = vadd.f32 0.0, %v1734
      %v1736 = vpop.f32.mrf.mxu0
      %1737 = vmatprep.mubr.f32.mxu0 0.0
      %1738 = vmatmul.mubr.f32.gmra.mxu0 %v1579
      %v1739 = vpop.f32.mrf.mxu0
      %v1740 = vadd.f32 0.0, %v1739
      %v1741 = vpop.f32.mrf.mxu0
      %1742 = vmatprep.mubr.f32.mxu0 0.0
      %1743 = vmatmul.mubr.f32.gmra.mxu0 %v1582
      %v1744 = vpop.f32.mrf.mxu0
      %v1745 = vadd.f32 0.0, %v1744
      %v1746 = vpop.f32.mrf.mxu0
      %1747 = vmatprep.mubr.f32.mxu0 0.0
      %1748 = vmatmul.mubr.f32.gmra.mxu0 %v1585
      %v1749 = vpop.f32.mrf.mxu0
      %v1750 = vadd.f32 0.0, %v1749
      %v1751 = vpop.f32.mrf.mxu0
      %1752 = vmatprep.mubr.f32.mxu0 0.0
      %1753 = vmatmul.mubr.f32.gmra.mxu0 %v1588
      %v1754 = vpop.f32.mrf.mxu0
      %v1755 = vadd.f32 0.0, %v1754
      %v1756 = vpop.f32.mrf.mxu0
      %1757 = vdwg.mxu0
      %v1758 = vadd.f32 %v1488, %v1660
      %v1759 = vadd.f32 %v1489, %v1665
      %v1760 = vadd.f32 %v1490, %v1670
      %v1761 = vadd.f32 %v1491, %v1675
      %v1762 = vadd.f32 %v1492, %v1680
      %v1763 = vadd.f32 %v1493, %v1685
      %v1764 = vadd.f32 %v1494, %v1690
      %v1765 = vadd.f32 %v1495, %v1695
      %v1766 = vadd.f32 %v1496, %v1700
      %v1767 = vadd.f32 %v1497, %v1705
      %v1768 = vadd.f32 %v1498, %v1710
      %v1769 = vadd.f32 %v1499, %v1715
      %v1770 = vadd.f32 %v1500, %v1720
      %v1771 = vadd.f32 %v1501, %v1725
      %v1772 = vadd.f32 %v1502, %v1730
      %v1773 = vadd.f32 %v1503, %v1735
      %v1774 = vadd.f32 %v1504, %v1740
      %v1775 = vadd.f32 %v1505, %v1745
      %v1776 = vadd.f32 %v1506, %v1750
      %v1777 = vadd.f32 %v1507, %v1755
      %v1778 = vld [vmem:[%s1237 + $0x2] sm:$0xff]
      %v1779 = vld [vmem:[%s1237 + $0xa] sm:$0xff]
      %v1780 = vld [vmem:[%s1237 + $0x1a] sm:$0xff]
      %v1781 = vld [vmem:[%s1237 + $0x22] sm:$0xff]
      %v1782 = vld [vmem:[%s1237 + $0x32] sm:$0xff]
      %v1783 = vld [vmem:[%s1237 + $0x3a] sm:$0xff]
      %v1784 = vld [vmem:[%s1237 + $0x4a] sm:$0xff]
      %v1785 = vld [vmem:[%s1237 + $0x52] sm:$0xff]
      %v1786 = vld [vmem:[%s1237 + $0x62] sm:$0xff]
      %v1787 = vld [vmem:[%s1237 + $0x6a] sm:$0xff]
      %v1788 = vld [vmem:[%s1237 + $0x7a] sm:$0xff]
      %v1789 = vld [vmem:[%s1237 + $0x82] sm:$0xff]
      %v1790 = vld [vmem:[%s1237 + $0x92] sm:$0xff]
      %v1791 = vld [vmem:[%s1237 + $0x9a] sm:$0xff]
      %v1792 = vld [vmem:[%s1237 + $0xaa] sm:$0xff]
      %v1793 = vld [vmem:[%s1237 + $0xb2] sm:$0xff]
      %v1794 = vld [vmem:[%s1237 + $0xc2] sm:$0xff]
      %v1795 = vld [vmem:[%s1237 + $0xca] sm:$0xff]
      %v1796 = vld [vmem:[%s1237 + $0xda] sm:$0xff]
      %v1797 = vld [vmem:[%s1237 + $0xe2] sm:$0xff]
      %s1798 = scalar_lea.vmem %s3, 20
      %v1799 = vld [vmem:[%s1798] sm:$0xf]
      %v1801 = vsel %vm420, %v1778, 0
      %v1804 = vsel %vm420, %v1779, 0
      %v1807 = vsel %vm420, %v1780, 0
      %v1810 = vsel %vm420, %v1781, 0
      %v1813 = vsel %vm420, %v1782, 0
      %v1816 = vsel %vm420, %v1783, 0
      %v1819 = vsel %vm420, %v1784, 0
      %v1822 = vsel %vm420, %v1785, 0
      %v1825 = vsel %vm420, %v1786, 0
      %v1828 = vsel %vm420, %v1787, 0
      %v1831 = vsel %vm420, %v1788, 0
      %v1834 = vsel %vm420, %v1789, 0
      %v1837 = vsel %vm420, %v1790, 0
      %v1840 = vsel %vm420, %v1791, 0
      %v1843 = vsel %vm420, %v1792, 0
      %v1846 = vsel %vm420, %v1793, 0
      %v1849 = vsel %vm420, %v1794, 0
      %v1852 = vsel %vm420, %v1795, 0
      %v1855 = vsel %vm420, %v1796, 0
      %v1858 = vsel %vm420, %v1797, 0
      %v1861 = vsel %vm570, %v1799, 0
      %1863 = vmatprep.subr.mxu0 0.0
      %1864 = vmatpush1.msra.mxu0 0.0
      %1865 = vmatprep.subr.mxu0 0.0
      %1866 = vmatpush1.msra.mxu0 0.0
      %1867 = vmatprep.subr.mxu0 0.0
      %1868 = vmatpush1.msra.mxu0 0.0
      %1869 = vmatprep.subr.mxu0 0.0
      %1870 = vmatpush1.msra.mxu0 0.0
      %1871 = vmatprep.subr.mxu0 0.0
      %1872 = vmatpush1.msra.mxu0 0.0
      %1873 = vmatprep.subr.mxu0 0.0
      %1874 = vmatpush1.msra.mxu0 0.0
      %1875 = vmatprep.subr.mxu0 0.0
      %1876 = vmatpush1.msra.mxu0 0.0
      %1877 = vmatprep.subr.mxu0 0.0
      %1878 = vmatpush1.msra.mxu0 0.0
      %1879 = vmatprep.subr.mxu0 0.0
      %1880 = vmatpush1.msra.mxu0 0.0
      %1881 = vmatprep.subr.mxu0 0.0
      %1882 = vmatpush1.msra.mxu0 0.0
      %1883 = vmatprep.subr.mxu0 0.0
      %1884 = vmatpush1.msra.mxu0 0.0
      %1885 = vmatprep.subr.mxu0 0.0
      %1886 = vmatpush1.msra.mxu0 0.0
      %1887 = vmatprep.subr.mxu0 0.0
      %1888 = vmatpush1.msra.mxu0 0.0
      %1889 = vmatprep.subr.mxu0 0.0
      %1890 = vmatpush1.msra.mxu0 0.0
      %1891 = vmatprep.subr.mxu0 0.0
      %1892 = vmatpush1.msra.mxu0 0.0
      %1893 = vmatprep.subr.mxu0 0.0
      %1894 = vmatpush1.msra.mxu0 %v1861
      %1895 = vmatprep.subr.mxu0 0.0
      %1896 = vmatpush2.msra.mxu0 0.0
      %1897 = vmatprep.subr.mxu0 0.0
      %1898 = vmatpush2.msra.mxu0 0.0
      %1899 = vmatprep.subr.mxu0 0.0
      %1900 = vmatpush2.msra.mxu0 0.0
      %1901 = vmatprep.subr.mxu0 0.0
      %1902 = vmatpush2.msra.mxu0 0.0
      %1903 = vmatprep.subr.mxu0 0.0
      %1904 = vmatpush2.msra.mxu0 0.0
      %1905 = vmatprep.subr.mxu0 0.0
      %1906 = vmatpush2.msra.mxu0 0.0
      %1907 = vmatprep.subr.mxu0 0.0
      %1908 = vmatpush2.msra.mxu0 0.0
      %1909 = vmatprep.subr.mxu0 0.0
      %1910 = vmatpush2.msra.mxu0 0.0
      %1911 = vmatprep.subr.mxu0 0.0
      %1912 = vmatpush2.msra.mxu0 0.0
      %1913 = vmatprep.subr.mxu0 0.0
      %1914 = vmatpush2.msra.mxu0 0.0
      %1915 = vmatprep.subr.mxu0 0.0
      %1916 = vmatpush2.msra.mxu0 0.0
      %1917 = vmatprep.subr.mxu0 0.0
      %1918 = vmatpush2.msra.mxu0 0.0
      %1919 = vmatprep.subr.mxu0 0.0
      %1920 = vmatpush2.msra.mxu0 0.0
      %1921 = vmatprep.subr.mxu0 0.0
      %1922 = vmatpush2.msra.mxu0 0.0
      %1923 = vmatprep.subr.mxu0 0.0
      %1924 = vmatpush2.msra.mxu0 0.0
      %1925 = vmatprep.subr.mxu0 0.0
      %1926 = vmatpush2.msra.mxu0 0.0
      %1927 = vmatprep.mubr.f32.mxu0 0.0
      %1928 = vmatmul.mubr.f32.gmra.mxu0 %v1801
      %v1929 = vpop.f32.mrf.mxu0
      %v1930 = vadd.f32 0.0, %v1929
      %v1931 = vpop.f32.mrf.mxu0
      %1932 = vmatprep.mubr.f32.mxu0 0.0
      %1933 = vmatmul.mubr.f32.gmra.mxu0 %v1804
      %v1934 = vpop.f32.mrf.mxu0
      %v1935 = vadd.f32 0.0, %v1934
      %v1936 = vpop.f32.mrf.mxu0
      %1937 = vmatprep.mubr.f32.mxu0 0.0
      %1938 = vmatmul.mubr.f32.gmra.mxu0 %v1807
      %v1939 = vpop.f32.mrf.mxu0
      %v1940 = vadd.f32 0.0, %v1939
      %v1941 = vpop.f32.mrf.mxu0
      %1942 = vmatprep.mubr.f32.mxu0 0.0
      %1943 = vmatmul.mubr.f32.gmra.mxu0 %v1810
      %v1944 = vpop.f32.mrf.mxu0
      %v1945 = vadd.f32 0.0, %v1944
      %v1946 = vpop.f32.mrf.mxu0
      %1947 = vmatprep.mubr.f32.mxu0 0.0
      %1948 = vmatmul.mubr.f32.gmra.mxu0 %v1813
      %v1949 = vpop.f32.mrf.mxu0
      %v1950 = vadd.f32 0.0, %v1949
      %v1951 = vpop.f32.mrf.mxu0
      %1952 = vmatprep.mubr.f32.mxu0 0.0
      %1953 = vmatmul.mubr.f32.gmra.mxu0 %v1816
      %v1954 = vpop.f32.mrf.mxu0
      %v1955 = vadd.f32 0.0, %v1954
      %v1956 = vpop.f32.mrf.mxu0
      %1957 = vmatprep.mubr.f32.mxu0 0.0
      %1958 = vmatmul.mubr.f32.gmra.mxu0 %v1819
      %v1959 = vpop.f32.mrf.mxu0
      %v1960 = vadd.f32 0.0, %v1959
      %v1961 = vpop.f32.mrf.mxu0
      %1962 = vmatprep.mubr.f32.mxu0 0.0
      %1963 = vmatmul.mubr.f32.gmra.mxu0 %v1822
      %v1964 = vpop.f32.mrf.mxu0
      %v1965 = vadd.f32 0.0, %v1964
      %v1966 = vpop.f32.mrf.mxu0
      %1967 = vmatprep.mubr.f32.mxu0 0.0
      %1968 = vmatmul.mubr.f32.gmra.mxu0 %v1825
      %v1969 = vpop.f32.mrf.mxu0
      %v1970 = vadd.f32 0.0, %v1969
      %v1971 = vpop.f32.mrf.mxu0
      %1972 = vmatprep.mubr.f32.mxu0 0.0
      %1973 = vmatmul.mubr.f32.gmra.mxu0 %v1828
      %v1974 = vpop.f32.mrf.mxu0
      %v1975 = vadd.f32 0.0, %v1974
      %v1976 = vpop.f32.mrf.mxu0
      %1977 = vmatprep.mubr.f32.mxu0 0.0
      %1978 = vmatmul.mubr.f32.gmra.mxu0 %v1831
      %v1979 = vpop.f32.mrf.mxu0
      %v1980 = vadd.f32 0.0, %v1979
      %v1981 = vpop.f32.mrf.mxu0
      %1982 = vmatprep.mubr.f32.mxu0 0.0
      %1983 = vmatmul.mubr.f32.gmra.mxu0 %v1834
      %v1984 = vpop.f32.mrf.mxu0
      %v1985 = vadd.f32 0.0, %v1984
      %v1986 = vpop.f32.mrf.mxu0
      %1987 = vmatprep.mubr.f32.mxu0 0.0
      %1988 = vmatmul.mubr.f32.gmra.mxu0 %v1837
      %v1989 = vpop.f32.mrf.mxu0
      %v1990 = vadd.f32 0.0, %v1989
      %v1991 = vpop.f32.mrf.mxu0
      %1992 = vmatprep.mubr.f32.mxu0 0.0
      %1993 = vmatmul.mubr.f32.gmra.mxu0 %v1840
      %v1994 = vpop.f32.mrf.mxu0
      %v1995 = vadd.f32 0.0, %v1994
      %v1996 = vpop.f32.mrf.mxu0
      %1997 = vmatprep.mubr.f32.mxu0 0.0
      %1998 = vmatmul.mubr.f32.gmra.mxu0 %v1843
      %v1999 = vpop.f32.mrf.mxu0
      %v2000 = vadd.f32 0.0, %v1999
      %v2001 = vpop.f32.mrf.mxu0
      %2002 = vmatprep.mubr.f32.mxu0 0.0
      %2003 = vmatmul.mubr.f32.gmra.mxu0 %v1846
      %v2004 = vpop.f32.mrf.mxu0
      %v2005 = vadd.f32 0.0, %v2004
      %v2006 = vpop.f32.mrf.mxu0
      %2007 = vmatprep.mubr.f32.mxu0 0.0
      %2008 = vmatmul.mubr.f32.gmra.mxu0 %v1849
      %v2009 = vpop.f32.mrf.mxu0
      %v2010 = vadd.f32 0.0, %v2009
      %v2011 = vpop.f32.mrf.mxu0
      %2012 = vmatprep.mubr.f32.mxu0 0.0
      %2013 = vmatmul.mubr.f32.gmra.mxu0 %v1852
      %v2014 = vpop.f32.mrf.mxu0
      %v2015 = vadd.f32 0.0, %v2014
      %v2016 = vpop.f32.mrf.mxu0
      %2017 = vmatprep.mubr.f32.mxu0 0.0
      %2018 = vmatmul.mubr.f32.gmra.mxu0 %v1855
      %v2019 = vpop.f32.mrf.mxu0
      %v2020 = vadd.f32 0.0, %v2019
      %v2021 = vpop.f32.mrf.mxu0
      %2022 = vmatprep.mubr.f32.mxu0 0.0
      %2023 = vmatmul.mubr.f32.gmra.mxu0 %v1858
      %v2024 = vpop.f32.mrf.mxu0
      %v2025 = vadd.f32 0.0, %v2024
      %v2026 = vpop.f32.mrf.mxu0
      %2027 = vdwg.mxu0
      %v2028 = vadd.f32 %v1758, %v1930
      %v2029 = vadd.f32 %v1759, %v1935
      %v2030 = vadd.f32 %v1760, %v1940
      %v2031 = vadd.f32 %v1761, %v1945
      %v2032 = vadd.f32 %v1762, %v1950
      %v2033 = vadd.f32 %v1763, %v1955
      %v2034 = vadd.f32 %v1764, %v1960
      %v2035 = vadd.f32 %v1765, %v1965
      %v2036 = vadd.f32 %v1766, %v1970
      %v2037 = vadd.f32 %v1767, %v1975
      %v2038 = vadd.f32 %v1768, %v1980
      %v2039 = vadd.f32 %v1769, %v1985
      %v2040 = vadd.f32 %v1770, %v1990
      %v2041 = vadd.f32 %v1771, %v1995
      %v2042 = vadd.f32 %v1772, %v2000
      %v2043 = vadd.f32 %v1773, %v2005
      %v2044 = vadd.f32 %v1774, %v2010
      %v2045 = vadd.f32 %v1775, %v2015
      %v2046 = vadd.f32 %v1776, %v2020
      %v2047 = vadd.f32 %v1777, %v2025
      %v2048 = vld [vmem:[%s441] sm:$0xff]
      %v2049 = vld [vmem:[%s441 + $0x8] sm:$0xff]
      %v2050 = vld [vmem:[%s441 + $0x18] sm:$0xff]
      %v2051 = vld [vmem:[%s441 + $0x20] sm:$0xff]
      %v2052 = vld [vmem:[%s441 + $0x30] sm:$0xff]
      %v2053 = vld [vmem:[%s441 + $0x38] sm:$0xff]
      %v2054 = vld [vmem:[%s441 + $0x48] sm:$0xff]
      %v2055 = vld [vmem:[%s441 + $0x50] sm:$0xff]
      %v2056 = vld [vmem:[%s441 + $0x60] sm:$0xff]
      %v2057 = vld [vmem:[%s441 + $0x68] sm:$0xff]
      %v2058 = vld [vmem:[%s441 + $0x78] sm:$0xff]
      %v2059 = vld [vmem:[%s441 + $0x80] sm:$0xff]
      %v2060 = vld [vmem:[%s441 + $0x90] sm:$0xff]
      %v2061 = vld [vmem:[%s441 + $0x98] sm:$0xff]
      %v2062 = vld [vmem:[%s441 + $0xa8] sm:$0xff]
      %v2063 = vld [vmem:[%s441 + $0xb0] sm:$0xff]
      %v2064 = vld [vmem:[%s441 + $0xc0] sm:$0xff]
      %v2065 = vld [vmem:[%s441 + $0xc8] sm:$0xff]
      %v2066 = vld [vmem:[%s441 + $0xd8] sm:$0xff]
      %v2067 = vld [vmem:[%s441 + $0xe0] sm:$0xff]
      %s2068 = scalar_lea.vmem %s3, 24
      %v2069 = vld [vmem:[%s2068] sm:$0xf]
      %v2071 = vsel %vm420, %v2048, 0
      %v2074 = vsel %vm420, %v2049, 0
      %v2077 = vsel %vm420, %v2050, 0
      %v2080 = vsel %vm420, %v2051, 0
      %v2083 = vsel %vm420, %v2052, 0
      %v2086 = vsel %vm420, %v2053, 0
      %v2089 = vsel %vm420, %v2054, 0
      %v2092 = vsel %vm420, %v2055, 0
      %v2095 = vsel %vm420, %v2056, 0
      %v2098 = vsel %vm420, %v2057, 0
      %v2101 = vsel %vm420, %v2058, 0
      %v2104 = vsel %vm420, %v2059, 0
      %v2107 = vsel %vm420, %v2060, 0
      %v2110 = vsel %vm420, %v2061, 0
      %v2113 = vsel %vm420, %v2062, 0
      %v2116 = vsel %vm420, %v2063, 0
      %v2119 = vsel %vm420, %v2064, 0
      %v2122 = vsel %vm420, %v2065, 0
      %v2125 = vsel %vm420, %v2066, 0
      %v2128 = vsel %vm420, %v2067, 0
      %v2131 = vsel %vm570, %v2069, 0
      %2133 = vmatprep.subr.mxu0 0.0
      %2134 = vmatpush1.msra.mxu0 0.0
      %2135 = vmatprep.subr.mxu0 0.0
      %2136 = vmatpush1.msra.mxu0 0.0
      %2137 = vmatprep.subr.mxu0 0.0
      %2138 = vmatpush1.msra.mxu0 0.0
      %2139 = vmatprep.subr.mxu0 0.0
      %2140 = vmatpush1.msra.mxu0 0.0
      %2141 = vmatprep.subr.mxu0 0.0
      %2142 = vmatpush1.msra.mxu0 0.0
      %2143 = vmatprep.subr.mxu0 0.0
      %2144 = vmatpush1.msra.mxu0 0.0
      %2145 = vmatprep.subr.mxu0 0.0
      %2146 = vmatpush1.msra.mxu0 0.0
      %2147 = vmatprep.subr.mxu0 0.0
      %2148 = vmatpush1.msra.mxu0 0.0
      %2149 = vmatprep.subr.mxu0 0.0
      %2150 = vmatpush1.msra.mxu0 0.0
      %2151 = vmatprep.subr.mxu0 0.0
      %2152 = vmatpush1.msra.mxu0 0.0
      %2153 = vmatprep.subr.mxu0 0.0
      %2154 = vmatpush1.msra.mxu0 0.0
      %2155 = vmatprep.subr.mxu0 0.0
      %2156 = vmatpush1.msra.mxu0 0.0
      %2157 = vmatprep.subr.mxu0 0.0
      %2158 = vmatpush1.msra.mxu0 0.0
      %2159 = vmatprep.subr.mxu0 0.0
      %2160 = vmatpush1.msra.mxu0 0.0
      %2161 = vmatprep.subr.mxu0 0.0
      %2162 = vmatpush1.msra.mxu0 0.0
      %2163 = vmatprep.subr.mxu0 0.0
      %2164 = vmatpush1.msra.mxu0 %v2131
      %2165 = vmatprep.subr.mxu0 0.0
      %2166 = vmatpush2.msra.mxu0 0.0
      %2167 = vmatprep.subr.mxu0 0.0
      %2168 = vmatpush2.msra.mxu0 0.0
      %2169 = vmatprep.subr.mxu0 0.0
      %2170 = vmatpush2.msra.mxu0 0.0
      %2171 = vmatprep.subr.mxu0 0.0
      %2172 = vmatpush2.msra.mxu0 0.0
      %2173 = vmatprep.subr.mxu0 0.0
      %2174 = vmatpush2.msra.mxu0 0.0
      %2175 = vmatprep.subr.mxu0 0.0
      %2176 = vmatpush2.msra.mxu0 0.0
      %2177 = vmatprep.subr.mxu0 0.0
      %2178 = vmatpush2.msra.mxu0 0.0
      %2179 = vmatprep.subr.mxu0 0.0
      %2180 = vmatpush2.msra.mxu0 0.0
      %2181 = vmatprep.subr.mxu0 0.0
      %2182 = vmatpush2.msra.mxu0 0.0
      %2183 = vmatprep.subr.mxu0 0.0
      %2184 = vmatpush2.msra.mxu0 0.0
      %2185 = vmatprep.subr.mxu0 0.0
      %2186 = vmatpush2.msra.mxu0 0.0
      %2187 = vmatprep.subr.mxu0 0.0
      %2188 = vmatpush2.msra.mxu0 0.0
      %2189 = vmatprep.subr.mxu0 0.0
      %2190 = vmatpush2.msra.mxu0 0.0
      %2191 = vmatprep.subr.mxu0 0.0
      %2192 = vmatpush2.msra.mxu0 0.0
      %2193 = vmatprep.subr.mxu0 0.0
      %2194 = vmatpush2.msra.mxu0 0.0
      %2195 = vmatprep.subr.mxu0 0.0
      %2196 = vmatpush2.msra.mxu0 0.0
      %2197 = vmatprep.mubr.f32.mxu0 0.0
      %2198 = vmatmul.mubr.f32.gmra.mxu0 %v2071
      %v2199 = vpop.f32.mrf.mxu0
      %v2200 = vadd.f32 0.0, %v2199
      %v2201 = vpop.f32.mrf.mxu0
      %2202 = vmatprep.mubr.f32.mxu0 0.0
      %2203 = vmatmul.mubr.f32.gmra.mxu0 %v2074
      %v2204 = vpop.f32.mrf.mxu0
      %v2205 = vadd.f32 0.0, %v2204
      %v2206 = vpop.f32.mrf.mxu0
      %2207 = vmatprep.mubr.f32.mxu0 0.0
      %2208 = vmatmul.mubr.f32.gmra.mxu0 %v2077
      %v2209 = vpop.f32.mrf.mxu0
      %v2210 = vadd.f32 0.0, %v2209
      %v2211 = vpop.f32.mrf.mxu0
      %2212 = vmatprep.mubr.f32.mxu0 0.0
      %2213 = vmatmul.mubr.f32.gmra.mxu0 %v2080
      %v2214 = vpop.f32.mrf.mxu0
      %v2215 = vadd.f32 0.0, %v2214
      %v2216 = vpop.f32.mrf.mxu0
      %2217 = vmatprep.mubr.f32.mxu0 0.0
      %2218 = vmatmul.mubr.f32.gmra.mxu0 %v2083
      %v2219 = vpop.f32.mrf.mxu0
      %v2220 = vadd.f32 0.0, %v2219
      %v2221 = vpop.f32.mrf.mxu0
      %2222 = vmatprep.mubr.f32.mxu0 0.0
      %2223 = vmatmul.mubr.f32.gmra.mxu0 %v2086
      %v2224 = vpop.f32.mrf.mxu0
      %v2225 = vadd.f32 0.0, %v2224
      %v2226 = vpop.f32.mrf.mxu0
      %2227 = vmatprep.mubr.f32.mxu0 0.0
      %2228 = vmatmul.mubr.f32.gmra.mxu0 %v2089
      %v2229 = vpop.f32.mrf.mxu0
      %v2230 = vadd.f32 0.0, %v2229
      %v2231 = vpop.f32.mrf.mxu0
      %2232 = vmatprep.mubr.f32.mxu0 0.0
      %2233 = vmatmul.mubr.f32.gmra.mxu0 %v2092
      %v2234 = vpop.f32.mrf.mxu0
      %v2235 = vadd.f32 0.0, %v2234
      %v2236 = vpop.f32.mrf.mxu0
      %2237 = vmatprep.mubr.f32.mxu0 0.0
      %2238 = vmatmul.mubr.f32.gmra.mxu0 %v2095
      %v2239 = vpop.f32.mrf.mxu0
      %v2240 = vadd.f32 0.0, %v2239
      %v2241 = vpop.f32.mrf.mxu0
      %2242 = vmatprep.mubr.f32.mxu0 0.0
      %2243 = vmatmul.mubr.f32.gmra.mxu0 %v2098
      %v2244 = vpop.f32.mrf.mxu0
      %v2245 = vadd.f32 0.0, %v2244
      %v2246 = vpop.f32.mrf.mxu0
      %2247 = vmatprep.mubr.f32.mxu0 0.0
      %2248 = vmatmul.mubr.f32.gmra.mxu0 %v2101
      %v2249 = vpop.f32.mrf.mxu0
      %v2250 = vadd.f32 0.0, %v2249
      %v2251 = vpop.f32.mrf.mxu0
      %2252 = vmatprep.mubr.f32.mxu0 0.0
      %2253 = vmatmul.mubr.f32.gmra.mxu0 %v2104
      %v2254 = vpop.f32.mrf.mxu0
      %v2255 = vadd.f32 0.0, %v2254
      %v2256 = vpop.f32.mrf.mxu0
      %2257 = vmatprep.mubr.f32.mxu0 0.0
      %2258 = vmatmul.mubr.f32.gmra.mxu0 %v2107
      %v2259 = vpop.f32.mrf.mxu0
      %v2260 = vadd.f32 0.0, %v2259
      %v2261 = vpop.f32.mrf.mxu0
      %2262 = vmatprep.mubr.f32.mxu0 0.0
      %2263 = vmatmul.mubr.f32.gmra.mxu0 %v2110
      %v2264 = vpop.f32.mrf.mxu0
      %v2265 = vadd.f32 0.0, %v2264
      %v2266 = vpop.f32.mrf.mxu0
      %2267 = vmatprep.mubr.f32.mxu0 0.0
      %2268 = vmatmul.mubr.f32.gmra.mxu0 %v2113
      %v2269 = vpop.f32.mrf.mxu0
      %v2270 = vadd.f32 0.0, %v2269
      %v2271 = vpop.f32.mrf.mxu0
      %2272 = vmatprep.mubr.f32.mxu0 0.0
      %2273 = vmatmul.mubr.f32.gmra.mxu0 %v2116
      %v2274 = vpop.f32.mrf.mxu0
      %v2275 = vadd.f32 0.0, %v2274
      %v2276 = vpop.f32.mrf.mxu0
      %2277 = vmatprep.mubr.f32.mxu0 0.0
      %2278 = vmatmul.mubr.f32.gmra.mxu0 %v2119
      %v2279 = vpop.f32.mrf.mxu0
      %v2280 = vadd.f32 0.0, %v2279
      %v2281 = vpop.f32.mrf.mxu0
      %2282 = vmatprep.mubr.f32.mxu0 0.0
      %2283 = vmatmul.mubr.f32.gmra.mxu0 %v2122
      %v2284 = vpop.f32.mrf.mxu0
      %v2285 = vadd.f32 0.0, %v2284
      %v2286 = vpop.f32.mrf.mxu0
      %2287 = vmatprep.mubr.f32.mxu0 0.0
      %2288 = vmatmul.mubr.f32.gmra.mxu0 %v2125
      %v2289 = vpop.f32.mrf.mxu0
      %v2290 = vadd.f32 0.0, %v2289
      %v2291 = vpop.f32.mrf.mxu0
      %2292 = vmatprep.mubr.f32.mxu0 0.0
      %2293 = vmatmul.mubr.f32.gmra.mxu0 %v2128
      %v2294 = vpop.f32.mrf.mxu0
      %v2295 = vadd.f32 0.0, %v2294
      %v2296 = vpop.f32.mrf.mxu0
      %2297 = vdwg.mxu0
      %v2298 = vadd.f32 %v2028, %v2200
      %v2299 = vadd.f32 %v2029, %v2205
      %v2300 = vadd.f32 %v2030, %v2210
      %v2301 = vadd.f32 %v2031, %v2215
      %v2302 = vadd.f32 %v2032, %v2220
      %v2303 = vadd.f32 %v2033, %v2225
      %v2304 = vadd.f32 %v2034, %v2230
      %v2305 = vadd.f32 %v2035, %v2235
      %v2306 = vadd.f32 %v2036, %v2240
      %v2307 = vadd.f32 %v2037, %v2245
      %v2308 = vadd.f32 %v2038, %v2250
      %v2309 = vadd.f32 %v2039, %v2255
      %v2310 = vadd.f32 %v2040, %v2260
      %v2311 = vadd.f32 %v2041, %v2265
      %v2312 = vadd.f32 %v2042, %v2270
      %v2313 = vadd.f32 %v2043, %v2275
      %v2314 = vadd.f32 %v2044, %v2280
      %v2315 = vadd.f32 %v2045, %v2285
      %v2316 = vadd.f32 %v2046, %v2290
      %v2317 = vadd.f32 %v2047, %v2295
      %v2318 = vld [vmem:[%s441 + $0x1] sm:$0xff]
      %v2319 = vld [vmem:[%s441 + $0x9] sm:$0xff]
      %v2320 = vld [vmem:[%s441 + $0x19] sm:$0xff]
      %v2321 = vld [vmem:[%s441 + $0x21] sm:$0xff]
      %v2322 = vld [vmem:[%s441 + $0x31] sm:$0xff]
      %v2323 = vld [vmem:[%s441 + $0x39] sm:$0xff]
      %v2324 = vld [vmem:[%s441 + $0x49] sm:$0xff]
      %v2325 = vld [vmem:[%s441 + $0x51] sm:$0xff]
      %v2326 = vld [vmem:[%s441 + $0x61] sm:$0xff]
      %v2327 = vld [vmem:[%s441 + $0x69] sm:$0xff]
      %v2328 = vld [vmem:[%s441 + $0x79] sm:$0xff]
      %v2329 = vld [vmem:[%s441 + $0x81] sm:$0xff]
      %v2330 = vld [vmem:[%s441 + $0x91] sm:$0xff]
      %v2331 = vld [vmem:[%s441 + $0x99] sm:$0xff]
      %v2332 = vld [vmem:[%s441 + $0xa9] sm:$0xff]
      %v2333 = vld [vmem:[%s441 + $0xb1] sm:$0xff]
      %v2334 = vld [vmem:[%s441 + $0xc1] sm:$0xff]
      %v2335 = vld [vmem:[%s441 + $0xc9] sm:$0xff]
      %v2336 = vld [vmem:[%s441 + $0xd9] sm:$0xff]
      %v2337 = vld [vmem:[%s441 + $0xe1] sm:$0xff]
      %s2338 = scalar_lea.vmem %s3, 28
      %v2339 = vld [vmem:[%s2338] sm:$0xf]
      %v2341 = vsel %vm420, %v2318, 0
      %v2344 = vsel %vm420, %v2319, 0
      %v2347 = vsel %vm420, %v2320, 0
      %v2350 = vsel %vm420, %v2321, 0
      %v2353 = vsel %vm420, %v2322, 0
      %v2356 = vsel %vm420, %v2323, 0
      %v2359 = vsel %vm420, %v2324, 0
      %v2362 = vsel %vm420, %v2325, 0
      %v2365 = vsel %vm420, %v2326, 0
      %v2368 = vsel %vm420, %v2327, 0
      %v2371 = vsel %vm420, %v2328, 0
      %v2374 = vsel %vm420, %v2329, 0
      %v2377 = vsel %vm420, %v2330, 0
      %v2380 = vsel %vm420, %v2331, 0
      %v2383 = vsel %vm420, %v2332, 0
      %v2386 = vsel %vm420, %v2333, 0
      %v2389 = vsel %vm420, %v2334, 0
      %v2392 = vsel %vm420, %v2335, 0
      %v2395 = vsel %vm420, %v2336, 0
      %v2398 = vsel %vm420, %v2337, 0
      %v2401 = vsel %vm570, %v2339, 0
      %2403 = vmatprep.subr.mxu0 0.0
      %2404 = vmatpush1.msra.mxu0 0.0
      %2405 = vmatprep.subr.mxu0 0.0
      %2406 = vmatpush1.msra.mxu0 0.0
      %2407 = vmatprep.subr.mxu0 0.0
      %2408 = vmatpush1.msra.mxu0 0.0
      %2409 = vmatprep.subr.mxu0 0.0
      %2410 = vmatpush1.msra.mxu0 0.0
      %2411 = vmatprep.subr.mxu0 0.0
      %2412 = vmatpush1.msra.mxu0 0.0
      %2413 = vmatprep.subr.mxu0 0.0
      %2414 = vmatpush1.msra.mxu0 0.0
      %2415 = vmatprep.subr.mxu0 0.0
      %2416 = vmatpush1.msra.mxu0 0.0
      %2417 = vmatprep.subr.mxu0 0.0
      %2418 = vmatpush1.msra.mxu0 0.0
      %2419 = vmatprep.subr.mxu0 0.0
      %2420 = vmatpush1.msra.mxu0 0.0
      %2421 = vmatprep.subr.mxu0 0.0
      %2422 = vmatpush1.msra.mxu0 0.0
      %2423 = vmatprep.subr.mxu0 0.0
      %2424 = vmatpush1.msra.mxu0 0.0
      %2425 = vmatprep.subr.mxu0 0.0
      %2426 = vmatpush1.msra.mxu0 0.0
      %2427 = vmatprep.subr.mxu0 0.0
      %2428 = vmatpush1.msra.mxu0 0.0
      %2429 = vmatprep.subr.mxu0 0.0
      %2430 = vmatpush1.msra.mxu0 0.0
      %2431 = vmatprep.subr.mxu0 0.0
      %2432 = vmatpush1.msra.mxu0 0.0
      %2433 = vmatprep.subr.mxu0 0.0
      %2434 = vmatpush1.msra.mxu0 %v2401
      %2435 = vmatprep.subr.mxu0 0.0
      %2436 = vmatpush2.msra.mxu0 0.0
      %2437 = vmatprep.subr.mxu0 0.0
      %2438 = vmatpush2.msra.mxu0 0.0
      %2439 = vmatprep.subr.mxu0 0.0
      %2440 = vmatpush2.msra.mxu0 0.0
      %2441 = vmatprep.subr.mxu0 0.0
      %2442 = vmatpush2.msra.mxu0 0.0
      %2443 = vmatprep.subr.mxu0 0.0
      %2444 = vmatpush2.msra.mxu0 0.0
      %2445 = vmatprep.subr.mxu0 0.0
      %2446 = vmatpush2.msra.mxu0 0.0
      %2447 = vmatprep.subr.mxu0 0.0
      %2448 = vmatpush2.msra.mxu0 0.0
      %2449 = vmatprep.subr.mxu0 0.0
      %2450 = vmatpush2.msra.mxu0 0.0
      %2451 = vmatprep.subr.mxu0 0.0
      %2452 = vmatpush2.msra.mxu0 0.0
      %2453 = vmatprep.subr.mxu0 0.0
      %2454 = vmatpush2.msra.mxu0 0.0
      %2455 = vmatprep.subr.mxu0 0.0
      %2456 = vmatpush2.msra.mxu0 0.0
      %2457 = vmatprep.subr.mxu0 0.0
      %2458 = vmatpush2.msra.mxu0 0.0
      %2459 = vmatprep.subr.mxu0 0.0
      %2460 = vmatpush2.msra.mxu0 0.0
      %2461 = vmatprep.subr.mxu0 0.0
      %2462 = vmatpush2.msra.mxu0 0.0
      %2463 = vmatprep.subr.mxu0 0.0
      %2464 = vmatpush2.msra.mxu0 0.0
      %2465 = vmatprep.subr.mxu0 0.0
      %2466 = vmatpush2.msra.mxu0 0.0
      %2467 = vmatprep.mubr.f32.mxu0 0.0
      %2468 = vmatmul.mubr.f32.gmra.mxu0 %v2341
      %v2469 = vpop.f32.mrf.mxu0
      %v2470 = vadd.f32 0.0, %v2469
      %v2471 = vpop.f32.mrf.mxu0
      %2472 = vmatprep.mubr.f32.mxu0 0.0
      %2473 = vmatmul.mubr.f32.gmra.mxu0 %v2344
      %v2474 = vpop.f32.mrf.mxu0
      %v2475 = vadd.f32 0.0, %v2474
      %v2476 = vpop.f32.mrf.mxu0
      %2477 = vmatprep.mubr.f32.mxu0 0.0
      %2478 = vmatmul.mubr.f32.gmra.mxu0 %v2347
      %v2479 = vpop.f32.mrf.mxu0
      %v2480 = vadd.f32 0.0, %v2479
      %v2481 = vpop.f32.mrf.mxu0
      %2482 = vmatprep.mubr.f32.mxu0 0.0
      %2483 = vmatmul.mubr.f32.gmra.mxu0 %v2350
      %v2484 = vpop.f32.mrf.mxu0
      %v2485 = vadd.f32 0.0, %v2484
      %v2486 = vpop.f32.mrf.mxu0
      %2487 = vmatprep.mubr.f32.mxu0 0.0
      %2488 = vmatmul.mubr.f32.gmra.mxu0 %v2353
      %v2489 = vpop.f32.mrf.mxu0
      %v2490 = vadd.f32 0.0, %v2489
      %v2491 = vpop.f32.mrf.mxu0
      %2492 = vmatprep.mubr.f32.mxu0 0.0
      %2493 = vmatmul.mubr.f32.gmra.mxu0 %v2356
      %v2494 = vpop.f32.mrf.mxu0
      %v2495 = vadd.f32 0.0, %v2494
      %v2496 = vpop.f32.mrf.mxu0
      %2497 = vmatprep.mubr.f32.mxu0 0.0
      %2498 = vmatmul.mubr.f32.gmra.mxu0 %v2359
      %v2499 = vpop.f32.mrf.mxu0
      %v2500 = vadd.f32 0.0, %v2499
      %v2501 = vpop.f32.mrf.mxu0
      %2502 = vmatprep.mubr.f32.mxu0 0.0
      %2503 = vmatmul.mubr.f32.gmra.mxu0 %v2362
      %v2504 = vpop.f32.mrf.mxu0
      %v2505 = vadd.f32 0.0, %v2504
      %v2506 = vpop.f32.mrf.mxu0
      %2507 = vmatprep.mubr.f32.mxu0 0.0
      %2508 = vmatmul.mubr.f32.gmra.mxu0 %v2365
      %v2509 = vpop.f32.mrf.mxu0
      %v2510 = vadd.f32 0.0, %v2509
      %v2511 = vpop.f32.mrf.mxu0
      %2512 = vmatprep.mubr.f32.mxu0 0.0
      %2513 = vmatmul.mubr.f32.gmra.mxu0 %v2368
      %v2514 = vpop.f32.mrf.mxu0
      %v2515 = vadd.f32 0.0, %v2514
      %v2516 = vpop.f32.mrf.mxu0
      %2517 = vmatprep.mubr.f32.mxu0 0.0
      %2518 = vmatmul.mubr.f32.gmra.mxu0 %v2371
      %v2519 = vpop.f32.mrf.mxu0
      %v2520 = vadd.f32 0.0, %v2519
      %v2521 = vpop.f32.mrf.mxu0
      %2522 = vmatprep.mubr.f32.mxu0 0.0
      %2523 = vmatmul.mubr.f32.gmra.mxu0 %v2374
      %v2524 = vpop.f32.mrf.mxu0
      %v2525 = vadd.f32 0.0, %v2524
      %v2526 = vpop.f32.mrf.mxu0
      %2527 = vmatprep.mubr.f32.mxu0 0.0
      %2528 = vmatmul.mubr.f32.gmra.mxu0 %v2377
      %v2529 = vpop.f32.mrf.mxu0
      %v2530 = vadd.f32 0.0, %v2529
      %v2531 = vpop.f32.mrf.mxu0
      %2532 = vmatprep.mubr.f32.mxu0 0.0
      %2533 = vmatmul.mubr.f32.gmra.mxu0 %v2380
      %v2534 = vpop.f32.mrf.mxu0
      %v2535 = vadd.f32 0.0, %v2534
      %v2536 = vpop.f32.mrf.mxu0
      %2537 = vmatprep.mubr.f32.mxu0 0.0
      %2538 = vmatmul.mubr.f32.gmra.mxu0 %v2383
      %v2539 = vpop.f32.mrf.mxu0
      %v2540 = vadd.f32 0.0, %v2539
      %v2541 = vpop.f32.mrf.mxu0
      %2542 = vmatprep.mubr.f32.mxu0 0.0
      %2543 = vmatmul.mubr.f32.gmra.mxu0 %v2386
      %v2544 = vpop.f32.mrf.mxu0
      %v2545 = vadd.f32 0.0, %v2544
      %v2546 = vpop.f32.mrf.mxu0
      %2547 = vmatprep.mubr.f32.mxu0 0.0
      %2548 = vmatmul.mubr.f32.gmra.mxu0 %v2389
      %v2549 = vpop.f32.mrf.mxu0
      %v2550 = vadd.f32 0.0, %v2549
      %v2551 = vpop.f32.mrf.mxu0
      %2552 = vmatprep.mubr.f32.mxu0 0.0
      %2553 = vmatmul.mubr.f32.gmra.mxu0 %v2392
      %v2554 = vpop.f32.mrf.mxu0
      %v2555 = vadd.f32 0.0, %v2554
      %v2556 = vpop.f32.mrf.mxu0
      %2557 = vmatprep.mubr.f32.mxu0 0.0
      %2558 = vmatmul.mubr.f32.gmra.mxu0 %v2395
      %v2559 = vpop.f32.mrf.mxu0
      %v2560 = vadd.f32 0.0, %v2559
      %v2561 = vpop.f32.mrf.mxu0
      %2562 = vmatprep.mubr.f32.mxu0 0.0
      %2563 = vmatmul.mubr.f32.gmra.mxu0 %v2398
      %v2564 = vpop.f32.mrf.mxu0
      %v2565 = vadd.f32 0.0, %v2564
      %v2566 = vpop.f32.mrf.mxu0
      %2567 = vdwg.mxu0
      %v2568 = vadd.f32 %v2298, %v2470
      %v2569 = vadd.f32 %v2299, %v2475
      %v2570 = vadd.f32 %v2300, %v2480
      %v2571 = vadd.f32 %v2301, %v2485
      %v2572 = vadd.f32 %v2302, %v2490
      %v2573 = vadd.f32 %v2303, %v2495
      %v2574 = vadd.f32 %v2304, %v2500
      %v2575 = vadd.f32 %v2305, %v2505
      %v2576 = vadd.f32 %v2306, %v2510
      %v2577 = vadd.f32 %v2307, %v2515
      %v2578 = vadd.f32 %v2308, %v2520
      %v2579 = vadd.f32 %v2309, %v2525
      %v2580 = vadd.f32 %v2310, %v2530
      %v2581 = vadd.f32 %v2311, %v2535
      %v2582 = vadd.f32 %v2312, %v2540
      %v2583 = vadd.f32 %v2313, %v2545
      %v2584 = vadd.f32 %v2314, %v2550
      %v2585 = vadd.f32 %v2315, %v2555
      %v2586 = vadd.f32 %v2316, %v2560
      %v2587 = vadd.f32 %v2317, %v2565
      %v2588 = vld [vmem:[%s441 + $0x2] sm:$0xff]
      %v2589 = vld [vmem:[%s441 + $0xa] sm:$0xff]
      %v2590 = vld [vmem:[%s441 + $0x1a] sm:$0xff]
      %v2591 = vld [vmem:[%s441 + $0x22] sm:$0xff]
      %v2592 = vld [vmem:[%s441 + $0x32] sm:$0xff]
      %v2593 = vld [vmem:[%s441 + $0x3a] sm:$0xff]
      %v2594 = vld [vmem:[%s441 + $0x4a] sm:$0xff]
      %v2595 = vld [vmem:[%s441 + $0x52] sm:$0xff]
      %v2596 = vld [vmem:[%s441 + $0x62] sm:$0xff]
      %v2597 = vld [vmem:[%s441 + $0x6a] sm:$0xff]
      %v2598 = vld [vmem:[%s441 + $0x7a] sm:$0xff]
      %v2599 = vld [vmem:[%s441 + $0x82] sm:$0xff]
      %v2600 = vld [vmem:[%s441 + $0x92] sm:$0xff]
      %v2601 = vld [vmem:[%s441 + $0x9a] sm:$0xff]
      %v2602 = vld [vmem:[%s441 + $0xaa] sm:$0xff]
      %v2603 = vld [vmem:[%s441 + $0xb2] sm:$0xff]
      %v2604 = vld [vmem:[%s441 + $0xc2] sm:$0xff]
      %v2605 = vld [vmem:[%s441 + $0xca] sm:$0xff]
      %v2606 = vld [vmem:[%s441 + $0xda] sm:$0xff]
      %v2607 = vld [vmem:[%s441 + $0xe2] sm:$0xff]
      %s2608 = scalar_lea.vmem %s3, 32
      %v2609 = vld [vmem:[%s2608] sm:$0xf]
      %v2611 = vsel %vm420, %v2588, 0
      %v2614 = vsel %vm420, %v2589, 0
      %v2617 = vsel %vm420, %v2590, 0
      %v2620 = vsel %vm420, %v2591, 0
      %v2623 = vsel %vm420, %v2592, 0
      %v2626 = vsel %vm420, %v2593, 0
      %v2629 = vsel %vm420, %v2594, 0
      %v2632 = vsel %vm420, %v2595, 0
      %v2635 = vsel %vm420, %v2596, 0
      %v2638 = vsel %vm420, %v2597, 0
      %v2641 = vsel %vm420, %v2598, 0
      %v2644 = vsel %vm420, %v2599, 0
      %v2647 = vsel %vm420, %v2600, 0
      %v2650 = vsel %vm420, %v2601, 0
      %v2653 = vsel %vm420, %v2602, 0
      %v2656 = vsel %vm420, %v2603, 0
      %v2659 = vsel %vm420, %v2604, 0
      %v2662 = vsel %vm420, %v2605, 0
      %v2665 = vsel %vm420, %v2606, 0
      %v2668 = vsel %vm420, %v2607, 0
      %v2671 = vsel %vm570, %v2609, 0
      %2673 = vmatprep.subr.mxu0 0.0
      %2674 = vmatpush1.msra.mxu0 0.0
      %2675 = vmatprep.subr.mxu0 0.0
      %2676 = vmatpush1.msra.mxu0 0.0
      %2677 = vmatprep.subr.mxu0 0.0
      %2678 = vmatpush1.msra.mxu0 0.0
      %2679 = vmatprep.subr.mxu0 0.0
      %2680 = vmatpush1.msra.mxu0 0.0
      %2681 = vmatprep.subr.mxu0 0.0
      %2682 = vmatpush1.msra.mxu0 0.0
      %2683 = vmatprep.subr.mxu0 0.0
      %2684 = vmatpush1.msra.mxu0 0.0
      %2685 = vmatprep.subr.mxu0 0.0
      %2686 = vmatpush1.msra.mxu0 0.0
      %2687 = vmatprep.subr.mxu0 0.0
      %2688 = vmatpush1.msra.mxu0 0.0
      %2689 = vmatprep.subr.mxu0 0.0
      %2690 = vmatpush1.msra.mxu0 0.0
      %2691 = vmatprep.subr.mxu0 0.0
      %2692 = vmatpush1.msra.mxu0 0.0
      %2693 = vmatprep.subr.mxu0 0.0
      %2694 = vmatpush1.msra.mxu0 0.0
      %2695 = vmatprep.subr.mxu0 0.0
      %2696 = vmatpush1.msra.mxu0 0.0
      %2697 = vmatprep.subr.mxu0 0.0
      %2698 = vmatpush1.msra.mxu0 0.0
      %2699 = vmatprep.subr.mxu0 0.0
      %2700 = vmatpush1.msra.mxu0 0.0
      %2701 = vmatprep.subr.mxu0 0.0
      %2702 = vmatpush1.msra.mxu0 0.0
      %2703 = vmatprep.subr.mxu0 0.0
      %2704 = vmatpush1.msra.mxu0 %v2671
      %2705 = vmatprep.subr.mxu0 0.0
      %2706 = vmatpush2.msra.mxu0 0.0
      %2707 = vmatprep.subr.mxu0 0.0
      %2708 = vmatpush2.msra.mxu0 0.0
      %2709 = vmatprep.subr.mxu0 0.0
      %2710 = vmatpush2.msra.mxu0 0.0
      %2711 = vmatprep.subr.mxu0 0.0
      %2712 = vmatpush2.msra.mxu0 0.0
      %2713 = vmatprep.subr.mxu0 0.0
      %2714 = vmatpush2.msra.mxu0 0.0
      %2715 = vmatprep.subr.mxu0 0.0
      %2716 = vmatpush2.msra.mxu0 0.0
      %2717 = vmatprep.subr.mxu0 0.0
      %2718 = vmatpush2.msra.mxu0 0.0
      %2719 = vmatprep.subr.mxu0 0.0
      %2720 = vmatpush2.msra.mxu0 0.0
      %2721 = vmatprep.subr.mxu0 0.0
      %2722 = vmatpush2.msra.mxu0 0.0
      %2723 = vmatprep.subr.mxu0 0.0
      %2724 = vmatpush2.msra.mxu0 0.0
      %2725 = vmatprep.subr.mxu0 0.0
      %2726 = vmatpush2.msra.mxu0 0.0
      %2727 = vmatprep.subr.mxu0 0.0
      %2728 = vmatpush2.msra.mxu0 0.0
      %2729 = vmatprep.subr.mxu0 0.0
      %2730 = vmatpush2.msra.mxu0 0.0
      %2731 = vmatprep.subr.mxu0 0.0
      %2732 = vmatpush2.msra.mxu0 0.0
      %2733 = vmatprep.subr.mxu0 0.0
      %2734 = vmatpush2.msra.mxu0 0.0
      %2735 = vmatprep.subr.mxu0 0.0
      %2736 = vmatpush2.msra.mxu0 0.0
      %2737 = vmatprep.mubr.f32.mxu0 0.0
      %2738 = vmatmul.mubr.f32.gmra.mxu0 %v2611
      %v2739 = vpop.f32.mrf.mxu0
      %v2740 = vadd.f32 0.0, %v2739
      %v2741 = vpop.f32.mrf.mxu0
      %2742 = vmatprep.mubr.f32.mxu0 0.0
      %2743 = vmatmul.mubr.f32.gmra.mxu0 %v2614
      %v2744 = vpop.f32.mrf.mxu0
      %v2745 = vadd.f32 0.0, %v2744
      %v2746 = vpop.f32.mrf.mxu0
      %2747 = vmatprep.mubr.f32.mxu0 0.0
      %2748 = vmatmul.mubr.f32.gmra.mxu0 %v2617
      %v2749 = vpop.f32.mrf.mxu0
      %v2750 = vadd.f32 0.0, %v2749
      %v2751 = vpop.f32.mrf.mxu0
      %2752 = vmatprep.mubr.f32.mxu0 0.0
      %2753 = vmatmul.mubr.f32.gmra.mxu0 %v2620
      %v2754 = vpop.f32.mrf.mxu0
      %v2755 = vadd.f32 0.0, %v2754
      %v2756 = vpop.f32.mrf.mxu0
      %2757 = vmatprep.mubr.f32.mxu0 0.0
      %2758 = vmatmul.mubr.f32.gmra.mxu0 %v2623
      %v2759 = vpop.f32.mrf.mxu0
      %v2760 = vadd.f32 0.0, %v2759
      %v2761 = vpop.f32.mrf.mxu0
      %2762 = vmatprep.mubr.f32.mxu0 0.0
      %2763 = vmatmul.mubr.f32.gmra.mxu0 %v2626
      %v2764 = vpop.f32.mrf.mxu0
      %v2765 = vadd.f32 0.0, %v2764
      %v2766 = vpop.f32.mrf.mxu0
      %2767 = vmatprep.mubr.f32.mxu0 0.0
      %2768 = vmatmul.mubr.f32.gmra.mxu0 %v2629
      %v2769 = vpop.f32.mrf.mxu0
      %v2770 = vadd.f32 0.0, %v2769
      %v2771 = vpop.f32.mrf.mxu0
      %2772 = vmatprep.mubr.f32.mxu0 0.0
      %2773 = vmatmul.mubr.f32.gmra.mxu0 %v2632
      %v2774 = vpop.f32.mrf.mxu0
      %v2775 = vadd.f32 0.0, %v2774
      %v2776 = vpop.f32.mrf.mxu0
      %2777 = vmatprep.mubr.f32.mxu0 0.0
      %2778 = vmatmul.mubr.f32.gmra.mxu0 %v2635
      %v2779 = vpop.f32.mrf.mxu0
      %v2780 = vadd.f32 0.0, %v2779
      %v2781 = vpop.f32.mrf.mxu0
      %2782 = vmatprep.mubr.f32.mxu0 0.0
      %2783 = vmatmul.mubr.f32.gmra.mxu0 %v2638
      %v2784 = vpop.f32.mrf.mxu0
      %v2785 = vadd.f32 0.0, %v2784
      %v2786 = vpop.f32.mrf.mxu0
      %2787 = vmatprep.mubr.f32.mxu0 0.0
      %2788 = vmatmul.mubr.f32.gmra.mxu0 %v2641
      %v2789 = vpop.f32.mrf.mxu0
      %v2790 = vadd.f32 0.0, %v2789
      %v2791 = vpop.f32.mrf.mxu0
      %2792 = vmatprep.mubr.f32.mxu0 0.0
      %2793 = vmatmul.mubr.f32.gmra.mxu0 %v2644
      %v2794 = vpop.f32.mrf.mxu0
      %v2795 = vadd.f32 0.0, %v2794
      %v2796 = vpop.f32.mrf.mxu0
      %2797 = vmatprep.mubr.f32.mxu0 0.0
      %2798 = vmatmul.mubr.f32.gmra.mxu0 %v2647
      %v2799 = vpop.f32.mrf.mxu0
      %v2800 = vadd.f32 0.0, %v2799
      %v2801 = vpop.f32.mrf.mxu0
      %2802 = vmatprep.mubr.f32.mxu0 0.0
      %2803 = vmatmul.mubr.f32.gmra.mxu0 %v2650
      %v2804 = vpop.f32.mrf.mxu0
      %v2805 = vadd.f32 0.0, %v2804
      %v2806 = vpop.f32.mrf.mxu0
      %2807 = vmatprep.mubr.f32.mxu0 0.0
      %2808 = vmatmul.mubr.f32.gmra.mxu0 %v2653
      %v2809 = vpop.f32.mrf.mxu0
      %v2810 = vadd.f32 0.0, %v2809
      %v2811 = vpop.f32.mrf.mxu0
      %2812 = vmatprep.mubr.f32.mxu0 0.0
      %2813 = vmatmul.mubr.f32.gmra.mxu0 %v2656
      %v2814 = vpop.f32.mrf.mxu0
      %v2815 = vadd.f32 0.0, %v2814
      %v2816 = vpop.f32.mrf.mxu0
      %2817 = vmatprep.mubr.f32.mxu0 0.0
      %2818 = vmatmul.mubr.f32.gmra.mxu0 %v2659
      %v2819 = vpop.f32.mrf.mxu0
      %v2820 = vadd.f32 0.0, %v2819
      %v2821 = vpop.f32.mrf.mxu0
      %2822 = vmatprep.mubr.f32.mxu0 0.0
      %2823 = vmatmul.mubr.f32.gmra.mxu0 %v2662
      %v2824 = vpop.f32.mrf.mxu0
      %v2825 = vadd.f32 0.0, %v2824
      %v2826 = vpop.f32.mrf.mxu0
      %2827 = vmatprep.mubr.f32.mxu0 0.0
      %2828 = vmatmul.mubr.f32.gmra.mxu0 %v2665
      %v2829 = vpop.f32.mrf.mxu0
      %v2830 = vadd.f32 0.0, %v2829
      %v2831 = vpop.f32.mrf.mxu0
      %2832 = vmatprep.mubr.f32.mxu0 0.0
      %2833 = vmatmul.mubr.f32.gmra.mxu0 %v2668
      %v2834 = vpop.f32.mrf.mxu0
      %v2835 = vadd.f32 0.0, %v2834
      %v2836 = vpop.f32.mrf.mxu0
      %2837 = vdwg.mxu0
      %v2838 = vadd.f32 %v2568, %v2740
      %v2839 = vadd.f32 %v2569, %v2745
      %v2840 = vadd.f32 %v2570, %v2750
      %v2841 = vadd.f32 %v2571, %v2755
      %v2842 = vadd.f32 %v2572, %v2760
      %v2843 = vadd.f32 %v2573, %v2765
      %v2844 = vadd.f32 %v2574, %v2770
      %v2845 = vadd.f32 %v2575, %v2775
      %v2846 = vadd.f32 %v2576, %v2780
      %v2847 = vadd.f32 %v2577, %v2785
      %v2848 = vadd.f32 %v2578, %v2790
      %v2849 = vadd.f32 %v2579, %v2795
      %v2850 = vadd.f32 %v2580, %v2800
      %v2851 = vadd.f32 %v2581, %v2805
      %v2852 = vadd.f32 %v2582, %v2810
      %v2853 = vadd.f32 %v2583, %v2815
      %v2854 = vadd.f32 %v2584, %v2820
      %v2855 = vadd.f32 %v2585, %v2825
      %v2856 = vadd.f32 %v2586, %v2830
      %v2857 = vadd.f32 %v2587, %v2835
      %v2858 = vld [vmem:[%s4] sm:$0x1]
      %v2860 = vlaneseq
      %v2861 = vshrl.u32 %v2860, 7
      %v2862 = vsub.s32 0, %v2861
      %v2863 = vrot.slane %v2858, %v2862
      %v2865 = vadd.f32 %v2838, %v2863
      %v2866 = vadd.f32 %v2839, %v2863
      %v2867 = vadd.f32 %v2840, %v2863
      %v2868 = vadd.f32 %v2841, %v2863
      %v2869 = vadd.f32 %v2842, %v2863
      %v2870 = vadd.f32 %v2843, %v2863
      %v2871 = vadd.f32 %v2844, %v2863
      %v2872 = vadd.f32 %v2845, %v2863
      %v2873 = vadd.f32 %v2846, %v2863
      %v2874 = vadd.f32 %v2847, %v2863
      %v2875 = vadd.f32 %v2848, %v2863
      %v2876 = vadd.f32 %v2849, %v2863
      %v2877 = vadd.f32 %v2850, %v2863
      %v2878 = vadd.f32 %v2851, %v2863
      %v2879 = vadd.f32 %v2852, %v2863
      %v2880 = vadd.f32 %v2853, %v2863
      %v2881 = vadd.f32 %v2854, %v2863
      %v2882 = vadd.f32 %v2855, %v2863
      %v2883 = vadd.f32 %v2856, %v2863
      %v2884 = vadd.f32 %v2857, %v2863
      %p2885 = scmp.gt.s32.totalorder %s23, 0
      %s2886 = scalar_select %p2885, 1, 0
      %v2887 = vstv %s2886
      %vm2888 = vcmp.eq.s32.totalorder %v2887, 1
      %p2889 = scmp.lt.s32.totalorder %s23, 1
      %s2890 = scalar_select %p2889, 1, 0
      %v2891 = vstv %s2890
      %vm2892 = vcmp.eq.s32.totalorder %v2891, 1
      %v2893 = vsel %vm2888, 1, 0
      %v2894 = vsel %vm2892, 1, 0
      %vm2895 = vcmp.eq.s32.totalorder %v2893, 1
      %vm2896 = vcmp.eq.s32.totalorder %v2894, 1
      %v2897 = vsel %vm2895, %v2865, 0.0
      %v2898 = vsel %vm2895, %v2866, 0.0
      %v2899 = vsel 1, %v2867, 0.0
      %v2900 = vsel 1, %v2868, 0.0
      %v2901 = vsel 1, %v2869, 0.0
      %v2902 = vsel 1, %v2870, 0.0
      %v2903 = vsel 1, %v2871, 0.0
      %v2904 = vsel 1, %v2872, 0.0
      %v2905 = vsel 1, %v2873, 0.0
      %v2906 = vsel 1, %v2874, 0.0
      %v2907 = vsel 1, %v2875, 0.0
      %v2908 = vsel 1, %v2876, 0.0
      %v2909 = vsel 1, %v2877, 0.0
      %v2910 = vsel 1, %v2878, 0.0
      %v2911 = vsel 1, %v2879, 0.0
      %v2912 = vsel 1, %v2880, 0.0
      %v2913 = vsel 1, %v2881, 0.0
      %v2914 = vsel 1, %v2882, 0.0
      %v2915 = vsel %vm2896, %v2883, 0.0
      %v2916 = vsel %vm2896, %v2884, 0.0
      %vm2917 = vcmask 8192
      %2918 = vst.msk [vmem:[#allocation3] sm:$0x1] %vm2917, 0.0
      %2919 = vst.msk [vmem:[#allocation3 + $0x18] sm:$0x1] %vm2917, 0.0
      %2920 = vst.msk [vmem:[#allocation3 + $0x30] sm:$0x1] %vm2917, 0.0
      %2921 = vst.msk [vmem:[#allocation3 + $0x48] sm:$0x1] %vm2917, 0.0
      %2922 = vst.msk [vmem:[#allocation3 + $0x60] sm:$0x1] %vm2917, 0.0
      %2923 = vst.msk [vmem:[#allocation3 + $0x78] sm:$0x1] %vm2917, 0.0
      %2924 = vst.msk [vmem:[#allocation3 + $0x90] sm:$0x1] %vm2917, 0.0
      %2925 = vst.msk [vmem:[#allocation3 + $0xa8] sm:$0x1] %vm2917, 0.0
      %2926 = vst.msk [vmem:[#allocation3 + $0xc0] sm:$0x1] %vm2917, 0.0
      %2927 = vst.msk [vmem:[#allocation3 + $0xd8] sm:$0x1] %vm2917, 0.0
      %2928 = vst.msk [vmem:[#allocation3 + $0x11] sm:$0x1] %vm2917, 0.0
      %2929 = vst.msk [vmem:[#allocation3 + $0x29] sm:$0x1] %vm2917, 0.0
      %2930 = vst.msk [vmem:[#allocation3 + $0x41] sm:$0x1] %vm2917, 0.0
      %2931 = vst.msk [vmem:[#allocation3 + $0x59] sm:$0x1] %vm2917, 0.0
      %2932 = vst.msk [vmem:[#allocation3 + $0x71] sm:$0x1] %vm2917, 0.0
      %2933 = vst.msk [vmem:[#allocation3 + $0x89] sm:$0x1] %vm2917, 0.0
      %2934 = vst.msk [vmem:[#allocation3 + $0xa1] sm:$0x1] %vm2917, 0.0
      %2935 = vst.msk [vmem:[#allocation3 + $0xb9] sm:$0x1] %vm2917, 0.0
      %2936 = vst.msk [vmem:[#allocation3 + $0xd1] sm:$0x1] %vm2917, 0.0
      %2937 = vst.msk [vmem:[#allocation3 + $0xe9] sm:$0x1] %vm2917, 0.0
      %vm2938 = vcmask 15360
      %2939 = vst.msk [vmem:[#allocation3 + $0x1] sm:$0xff] %vm2938, %v2897
      %2940 = vst.msk [vmem:[#allocation3 + $0x9] sm:$0xff] %vm2938, %v2898
      %2941 = vst.msk [vmem:[#allocation3 + $0x19] sm:$0xff] %vm2938, %v2899
      %2942 = vst.msk [vmem:[#allocation3 + $0x21] sm:$0xff] %vm2938, %v2900
      %2943 = vst.msk [vmem:[#allocation3 + $0x31] sm:$0xff] %vm2938, %v2901
      %2944 = vst.msk [vmem:[#allocation3 + $0x39] sm:$0xff] %vm2938, %v2902
      %2945 = vst.msk [vmem:[#allocation3 + $0x49] sm:$0xff] %vm2938, %v2903
      %2946 = vst.msk [vmem:[#allocation3 + $0x51] sm:$0xff] %vm2938, %v2904
      %2947 = vst.msk [vmem:[#allocation3 + $0x61] sm:$0xff] %vm2938, %v2905
      %2948 = vst.msk [vmem:[#allocation3 + $0x69] sm:$0xff] %vm2938, %v2906
      %2949 = vst.msk [vmem:[#allocation3 + $0x79] sm:$0xff] %vm2938, %v2907
      %2950 = vst.msk [vmem:[#allocation3 + $0x81] sm:$0xff] %vm2938, %v2908
      %2951 = vst.msk [vmem:[#allocation3 + $0x91] sm:$0xff] %vm2938, %v2909
      %2952 = vst.msk [vmem:[#allocation3 + $0x99] sm:$0xff] %vm2938, %v2910
      %2953 = vst.msk [vmem:[#allocation3 + $0xa9] sm:$0xff] %vm2938, %v2911
      %2954 = vst.msk [vmem:[#allocation3 + $0xb1] sm:$0xff] %vm2938, %v2912
      %2955 = vst.msk [vmem:[#allocation3 + $0xc1] sm:$0xff] %vm2938, %v2913
      %2956 = vst.msk [vmem:[#allocation3 + $0xc9] sm:$0xff] %vm2938, %v2914
      %2957 = vst.msk [vmem:[#allocation3 + $0xd9] sm:$0xff] %vm2938, %v2915
      %2958 = vst.msk [vmem:[#allocation3 + $0xe1] sm:$0xff] %vm2938, %v2916
      %v2959 = vld [vmem:[#allocation3] sm:$0xff]
      %v2960 = vld [vmem:[#allocation3 + $0x8] sm:$0xff]
      %v2961 = vld [vmem:[#allocation3 + $0x18] sm:$0xff]
      %v2962 = vld [vmem:[#allocation3 + $0x20] sm:$0xff]
      %v2963 = vld [vmem:[#allocation3 + $0x30] sm:$0xff]
      %v2964 = vld [vmem:[#allocation3 + $0x38] sm:$0xff]
      %v2965 = vld [vmem:[#allocation3 + $0x48] sm:$0xff]
      %v2966 = vld [vmem:[#allocation3 + $0x50] sm:$0xff]
      %v2967 = vld [vmem:[#allocation3 + $0x60] sm:$0xff]
      %v2968 = vld [vmem:[#allocation3 + $0x68] sm:$0xff]
      %v2969 = vld [vmem:[#allocation3 + $0x78] sm:$0xff]
      %v2970 = vld [vmem:[#allocation3 + $0x80] sm:$0xff]
      %v2971 = vld [vmem:[#allocation3 + $0x90] sm:$0xff]
      %v2972 = vld [vmem:[#allocation3 + $0x98] sm:$0xff]
      %v2973 = vld [vmem:[#allocation3 + $0xa8] sm:$0xff]
      %v2974 = vld [vmem:[#allocation3 + $0xb0] sm:$0xff]
      %v2975 = vld [vmem:[%s5] sm:$0x3]
      %v2976 = vld [vmem:[#allocation3 + $0x1] sm:$0xff]
      %v2977 = vld [vmem:[#allocation3 + $0x9] sm:$0xff]
      %v2978 = vld [vmem:[#allocation3 + $0x19] sm:$0xff]
      %v2979 = vld [vmem:[#allocation3 + $0x21] sm:$0xff]
      %v2980 = vld [vmem:[#allocation3 + $0x31] sm:$0xff]
      %v2981 = vld [vmem:[#allocation3 + $0x39] sm:$0xff]
      %v2982 = vld [vmem:[#allocation3 + $0x49] sm:$0xff]
      %v2983 = vld [vmem:[#allocation3 + $0x51] sm:$0xff]
      %v2984 = vld [vmem:[#allocation3 + $0x61] sm:$0xff]
      %v2985 = vld [vmem:[#allocation3 + $0x69] sm:$0xff]
      %v2986 = vld [vmem:[#allocation3 + $0x79] sm:$0xff]
      %v2987 = vld [vmem:[#allocation3 + $0x81] sm:$0xff]
      %v2988 = vld [vmem:[#allocation3 + $0x91] sm:$0xff]
      %v2989 = vld [vmem:[#allocation3 + $0x99] sm:$0xff]
      %v2990 = vld [vmem:[#allocation3 + $0xa9] sm:$0xff]
      %v2991 = vld [vmem:[#allocation3 + $0xb1] sm:$0xff]
      %s2992 = scalar_lea.vmem %s5, 2
      %v2993 = vld [vmem:[%s2992] sm:$0x3]
      %v2995 = vsel %vm2938, %v2976, 0
      %v2998 = vsel %vm2938, %v2977, 0
      %v3001 = vsel %vm2938, %v2978, 0
      %v3004 = vsel %vm2938, %v2979, 0
      %v3007 = vsel %vm2938, %v2980, 0
      %v3010 = vsel %vm2938, %v2981, 0
      %v3013 = vsel %vm2938, %v2982, 0
      %v3016 = vsel %vm2938, %v2983, 0
      %v3019 = vsel %vm2938, %v2984, 0
      %v3022 = vsel %vm2938, %v2985, 0
      %v3025 = vsel %vm2938, %v2986, 0
      %v3028 = vsel %vm2938, %v2987, 0
      %v3031 = vsel %vm2938, %v2988, 0
      %v3034 = vsel %vm2938, %v2989, 0
      %v3037 = vsel %vm2938, %v2990, 0
      %v3040 = vsel %vm2938, %v2991, 0
      %vm3042 = vcmask 1041408
      %v3044 = vsel %vm3042, %v2993, 0
      %3046 = vmatprep.subr.mxu0 0.0
      %3047 = vmatpush1.msra.mxu0 0.0
      %3048 = vmatprep.subr.mxu0 0.0
      %3049 = vmatpush1.msra.mxu0 0.0
      %3050 = vmatprep.subr.mxu0 0.0
      %3051 = vmatpush1.msra.mxu0 0.0
      %3052 = vmatprep.subr.mxu0 0.0
      %3053 = vmatpush1.msra.mxu0 0.0
      %3054 = vmatprep.subr.mxu0 0.0
      %3055 = vmatpush1.msra.mxu0 0.0
      %3056 = vmatprep.subr.mxu0 0.0
      %3057 = vmatpush1.msra.mxu0 0.0
      %3058 = vmatprep.subr.mxu0 0.0
      %3059 = vmatpush1.msra.mxu0 0.0
      %3060 = vmatprep.subr.mxu0 0.0
      %3061 = vmatpush1.msra.mxu0 0.0
      %3062 = vmatprep.subr.mxu0 0.0
      %3063 = vmatpush1.msra.mxu0 0.0
      %3064 = vmatprep.subr.mxu0 0.0
      %3065 = vmatpush1.msra.mxu0 0.0
      %3066 = vmatprep.subr.mxu0 0.0
      %3067 = vmatpush1.msra.mxu0 0.0
      %3068 = vmatprep.subr.mxu0 0.0
      %3069 = vmatpush1.msra.mxu0 0.0
      %3070 = vmatprep.subr.mxu0 0.0
      %3071 = vmatpush1.msra.mxu0 0.0
      %3072 = vmatprep.subr.mxu0 0.0
      %3073 = vmatpush1.msra.mxu0 0.0
      %3074 = vmatprep.subr.mxu0 0.0
      %3075 = vmatpush1.msra.mxu0 0.0
      %3076 = vmatprep.subr.mxu0 0.0
      %3077 = vmatpush1.msra.mxu0 %v3044
      %3078 = vmatprep.subr.mxu0 0.0
      %3079 = vmatpush2.msra.mxu0 0.0
      %3080 = vmatprep.subr.mxu0 0.0
      %3081 = vmatpush2.msra.mxu0 0.0
      %3082 = vmatprep.subr.mxu0 0.0
      %3083 = vmatpush2.msra.mxu0 0.0
      %3084 = vmatprep.subr.mxu0 0.0
      %3085 = vmatpush2.msra.mxu0 0.0
      %3086 = vmatprep.subr.mxu0 0.0
      %3087 = vmatpush2.msra.mxu0 0.0
      %3088 = vmatprep.subr.mxu0 0.0
      %3089 = vmatpush2.msra.mxu0 0.0
      %3090 = vmatprep.subr.mxu0 0.0
      %3091 = vmatpush2.msra.mxu0 0.0
      %3092 = vmatprep.subr.mxu0 0.0
      %3093 = vmatpush2.msra.mxu0 0.0
      %3094 = vmatprep.subr.mxu0 0.0
      %3095 = vmatpush2.msra.mxu0 0.0
      %3096 = vmatprep.subr.mxu0 0.0
      %3097 = vmatpush2.msra.mxu0 0.0
      %3098 = vmatprep.subr.mxu0 0.0
      %3099 = vmatpush2.msra.mxu0 0.0
      %3100 = vmatprep.subr.mxu0 0.0
      %3101 = vmatpush2.msra.mxu0 0.0
      %3102 = vmatprep.subr.mxu0 0.0
      %3103 = vmatpush2.msra.mxu0 0.0
      %3104 = vmatprep.subr.mxu0 0.0
      %3105 = vmatpush2.msra.mxu0 0.0
      %3106 = vmatprep.subr.mxu0 0.0
      %3107 = vmatpush2.msra.mxu0 0.0
      %3108 = vmatprep.subr.mxu0 0.0
      %3109 = vmatpush2.msra.mxu0 0.0
      %3110 = vmatprep.mubr.f32.mxu0 0.0
      %3111 = vmatmul.mubr.f32.gmra.mxu0 %v2995
      %v3112 = vpop.f32.mrf.mxu0
      %v3113 = vadd.f32 0.0, %v3112
      %v3114 = vpop.f32.mrf.mxu0
      %3115 = vmatprep.mubr.f32.mxu0 0.0
      %3116 = vmatmul.mubr.f32.gmra.mxu0 %v2998
      %v3117 = vpop.f32.mrf.mxu0
      %v3118 = vadd.f32 0.0, %v3117
      %v3119 = vpop.f32.mrf.mxu0
      %3120 = vmatprep.mubr.f32.mxu0 0.0
      %3121 = vmatmul.mubr.f32.gmra.mxu0 %v3001
      %v3122 = vpop.f32.mrf.mxu0
      %v3123 = vadd.f32 0.0, %v3122
      %v3124 = vpop.f32.mrf.mxu0
      %3125 = vmatprep.mubr.f32.mxu0 0.0
      %3126 = vmatmul.mubr.f32.gmra.mxu0 %v3004
      %v3127 = vpop.f32.mrf.mxu0
      %v3128 = vadd.f32 0.0, %v3127
      %v3129 = vpop.f32.mrf.mxu0
      %3130 = vmatprep.mubr.f32.mxu0 0.0
      %3131 = vmatmul.mubr.f32.gmra.mxu0 %v3007
      %v3132 = vpop.f32.mrf.mxu0
      %v3133 = vadd.f32 0.0, %v3132
      %v3134 = vpop.f32.mrf.mxu0
      %3135 = vmatprep.mubr.f32.mxu0 0.0
      %3136 = vmatmul.mubr.f32.gmra.mxu0 %v3010
      %v3137 = vpop.f32.mrf.mxu0
      %v3138 = vadd.f32 0.0, %v3137
      %v3139 = vpop.f32.mrf.mxu0
      %3140 = vmatprep.mubr.f32.mxu0 0.0
      %3141 = vmatmul.mubr.f32.gmra.mxu0 %v3013
      %v3142 = vpop.f32.mrf.mxu0
      %v3143 = vadd.f32 0.0, %v3142
      %v3144 = vpop.f32.mrf.mxu0
      %3145 = vmatprep.mubr.f32.mxu0 0.0
      %3146 = vmatmul.mubr.f32.gmra.mxu0 %v3016
      %v3147 = vpop.f32.mrf.mxu0
      %v3148 = vadd.f32 0.0, %v3147
      %v3149 = vpop.f32.mrf.mxu0
      %3150 = vmatprep.mubr.f32.mxu0 0.0
      %3151 = vmatmul.mubr.f32.gmra.mxu0 %v3019
      %v3152 = vpop.f32.mrf.mxu0
      %v3153 = vadd.f32 0.0, %v3152
      %v3154 = vpop.f32.mrf.mxu0
      %3155 = vmatprep.mubr.f32.mxu0 0.0
      %3156 = vmatmul.mubr.f32.gmra.mxu0 %v3022
      %v3157 = vpop.f32.mrf.mxu0
      %v3158 = vadd.f32 0.0, %v3157
      %v3159 = vpop.f32.mrf.mxu0
      %3160 = vmatprep.mubr.f32.mxu0 0.0
      %3161 = vmatmul.mubr.f32.gmra.mxu0 %v3025
      %v3162 = vpop.f32.mrf.mxu0
      %v3163 = vadd.f32 0.0, %v3162
      %v3164 = vpop.f32.mrf.mxu0
      %3165 = vmatprep.mubr.f32.mxu0 0.0
      %3166 = vmatmul.mubr.f32.gmra.mxu0 %v3028
      %v3167 = vpop.f32.mrf.mxu0
      %v3168 = vadd.f32 0.0, %v3167
      %v3169 = vpop.f32.mrf.mxu0
      %3170 = vmatprep.mubr.f32.mxu0 0.0
      %3171 = vmatmul.mubr.f32.gmra.mxu0 %v3031
      %v3172 = vpop.f32.mrf.mxu0
      %v3173 = vadd.f32 0.0, %v3172
      %v3174 = vpop.f32.mrf.mxu0
      %3175 = vmatprep.mubr.f32.mxu0 0.0
      %3176 = vmatmul.mubr.f32.gmra.mxu0 %v3034
      %v3177 = vpop.f32.mrf.mxu0
      %v3178 = vadd.f32 0.0, %v3177
      %v3179 = vpop.f32.mrf.mxu0
      %3180 = vmatprep.mubr.f32.mxu0 0.0
      %3181 = vmatmul.mubr.f32.gmra.mxu0 %v3037
      %v3182 = vpop.f32.mrf.mxu0
      %v3183 = vadd.f32 0.0, %v3182
      %v3184 = vpop.f32.mrf.mxu0
      %3185 = vmatprep.mubr.f32.mxu0 0.0
      %3186 = vmatmul.mubr.f32.gmra.mxu0 %v3040
      %v3187 = vpop.f32.mrf.mxu0
      %v3188 = vadd.f32 0.0, %v3187
      %v3189 = vpop.f32.mrf.mxu0
      %3190 = vdwg.mxu0
      %v3192 = vsel %vm2938, %v2959, 0
      %v3195 = vsel %vm2938, %v2960, 0
      %v3198 = vsel %vm2938, %v2961, 0
      %v3201 = vsel %vm2938, %v2962, 0
      %v3204 = vsel %vm2938, %v2963, 0
      %v3207 = vsel %vm2938, %v2964, 0
      %v3210 = vsel %vm2938, %v2965, 0
      %v3213 = vsel %vm2938, %v2966, 0
      %v3216 = vsel %vm2938, %v2967, 0
      %v3219 = vsel %vm2938, %v2968, 0
      %v3222 = vsel %vm2938, %v2969, 0
      %v3225 = vsel %vm2938, %v2970, 0
      %v3228 = vsel %vm2938, %v2971, 0
      %v3231 = vsel %vm2938, %v2972, 0
      %v3234 = vsel %vm2938, %v2973, 0
      %v3237 = vsel %vm2938, %v2974, 0
      %v3240 = vsel %vm3042, %v2975, 0
      %3242 = vmatprep.subr.mxu0 0.0
      %3243 = vmatpush1.msra.mxu0 0.0
      %3244 = vmatprep.subr.mxu0 0.0
      %3245 = vmatpush1.msra.mxu0 0.0
      %3246 = vmatprep.subr.mxu0 0.0
      %3247 = vmatpush1.msra.mxu0 0.0
      %3248 = vmatprep.subr.mxu0 0.0
      %3249 = vmatpush1.msra.mxu0 0.0
      %3250 = vmatprep.subr.mxu0 0.0
      %3251 = vmatpush1.msra.mxu0 0.0
      %3252 = vmatprep.subr.mxu0 0.0
      %3253 = vmatpush1.msra.mxu0 0.0
      %3254 = vmatprep.subr.mxu0 0.0
      %3255 = vmatpush1.msra.mxu0 0.0
      %3256 = vmatprep.subr.mxu0 0.0
      %3257 = vmatpush1.msra.mxu0 0.0
      %3258 = vmatprep.subr.mxu0 0.0
      %3259 = vmatpush1.msra.mxu0 0.0
      %3260 = vmatprep.subr.mxu0 0.0
      %3261 = vmatpush1.msra.mxu0 0.0
      %3262 = vmatprep.subr.mxu0 0.0
      %3263 = vmatpush1.msra.mxu0 0.0
      %3264 = vmatprep.subr.mxu0 0.0
      %3265 = vmatpush1.msra.mxu0 0.0
      %3266 = vmatprep.subr.mxu0 0.0
      %3267 = vmatpush1.msra.mxu0 0.0
      %3268 = vmatprep.subr.mxu0 0.0
      %3269 = vmatpush1.msra.mxu0 0.0
      %3270 = vmatprep.subr.mxu0 0.0
      %3271 = vmatpush1.msra.mxu0 0.0
      %3272 = vmatprep.subr.mxu0 0.0
      %3273 = vmatpush1.msra.mxu0 %v3240
      %3274 = vmatprep.subr.mxu0 0.0
      %3275 = vmatpush2.msra.mxu0 0.0
      %3276 = vmatprep.subr.mxu0 0.0
      %3277 = vmatpush2.msra.mxu0 0.0
      %3278 = vmatprep.subr.mxu0 0.0
      %3279 = vmatpush2.msra.mxu0 0.0
      %3280 = vmatprep.subr.mxu0 0.0
      %3281 = vmatpush2.msra.mxu0 0.0
      %3282 = vmatprep.subr.mxu0 0.0
      %3283 = vmatpush2.msra.mxu0 0.0
      %3284 = vmatprep.subr.mxu0 0.0
      %3285 = vmatpush2.msra.mxu0 0.0
      %3286 = vmatprep.subr.mxu0 0.0
      %3287 = vmatpush2.msra.mxu0 0.0
      %3288 = vmatprep.subr.mxu0 0.0
      %3289 = vmatpush2.msra.mxu0 0.0
      %3290 = vmatprep.subr.mxu0 0.0
      %3291 = vmatpush2.msra.mxu0 0.0
      %3292 = vmatprep.subr.mxu0 0.0
      %3293 = vmatpush2.msra.mxu0 0.0
      %3294 = vmatprep.subr.mxu0 0.0
      %3295 = vmatpush2.msra.mxu0 0.0
      %3296 = vmatprep.subr.mxu0 0.0
      %3297 = vmatpush2.msra.mxu0 0.0
      %3298 = vmatprep.subr.mxu0 0.0
      %3299 = vmatpush2.msra.mxu0 0.0
      %3300 = vmatprep.subr.mxu0 0.0
      %3301 = vmatpush2.msra.mxu0 0.0
      %3302 = vmatprep.subr.mxu0 0.0
      %3303 = vmatpush2.msra.mxu0 0.0
      %3304 = vmatprep.subr.mxu0 0.0
      %3305 = vmatpush2.msra.mxu0 0.0
      %3306 = vmatprep.mubr.f32.mxu0 0.0
      %3307 = vmatmul.mubr.f32.gmra.mxu0 %v3192
      %v3308 = vpop.f32.mrf.mxu0
      %v3309 = vadd.f32 %v3113, %v3308
      %v3310 = vpop.f32.mrf.mxu0
      %3311 = vmatprep.mubr.f32.mxu0 0.0
      %3312 = vmatmul.mubr.f32.gmra.mxu0 %v3195
      %v3313 = vpop.f32.mrf.mxu0
      %v3314 = vadd.f32 %v3118, %v3313
      %v3315 = vpop.f32.mrf.mxu0
      %3316 = vmatprep.mubr.f32.mxu0 0.0
      %3317 = vmatmul.mubr.f32.gmra.mxu0 %v3198
      %v3318 = vpop.f32.mrf.mxu0
      %v3319 = vadd.f32 %v3123, %v3318
      %v3320 = vpop.f32.mrf.mxu0
      %3321 = vmatprep.mubr.f32.mxu0 0.0
      %3322 = vmatmul.mubr.f32.gmra.mxu0 %v3201
      %v3323 = vpop.f32.mrf.mxu0
      %v3324 = vadd.f32 %v3128, %v3323
      %v3325 = vpop.f32.mrf.mxu0
      %3326 = vmatprep.mubr.f32.mxu0 0.0
      %3327 = vmatmul.mubr.f32.gmra.mxu0 %v3204
      %v3328 = vpop.f32.mrf.mxu0
      %v3329 = vadd.f32 %v3133, %v3328
      %v3330 = vpop.f32.mrf.mxu0
      %3331 = vmatprep.mubr.f32.mxu0 0.0
      %3332 = vmatmul.mubr.f32.gmra.mxu0 %v3207
      %v3333 = vpop.f32.mrf.mxu0
      %v3334 = vadd.f32 %v3138, %v3333
      %v3335 = vpop.f32.mrf.mxu0
      %3336 = vmatprep.mubr.f32.mxu0 0.0
      %3337 = vmatmul.mubr.f32.gmra.mxu0 %v3210
      %v3338 = vpop.f32.mrf.mxu0
      %v3339 = vadd.f32 %v3143, %v3338
      %v3340 = vpop.f32.mrf.mxu0
      %3341 = vmatprep.mubr.f32.mxu0 0.0
      %3342 = vmatmul.mubr.f32.gmra.mxu0 %v3213
      %v3343 = vpop.f32.mrf.mxu0
      %v3344 = vadd.f32 %v3148, %v3343
      %v3345 = vpop.f32.mrf.mxu0
      %3346 = vmatprep.mubr.f32.mxu0 0.0
      %3347 = vmatmul.mubr.f32.gmra.mxu0 %v3216
      %v3348 = vpop.f32.mrf.mxu0
      %v3349 = vadd.f32 %v3153, %v3348
      %v3350 = vpop.f32.mrf.mxu0
      %3351 = vmatprep.mubr.f32.mxu0 0.0
      %3352 = vmatmul.mubr.f32.gmra.mxu0 %v3219
      %v3353 = vpop.f32.mrf.mxu0
      %v3354 = vadd.f32 %v3158, %v3353
      %v3355 = vpop.f32.mrf.mxu0
      %3356 = vmatprep.mubr.f32.mxu0 0.0
      %3357 = vmatmul.mubr.f32.gmra.mxu0 %v3222
      %v3358 = vpop.f32.mrf.mxu0
      %v3359 = vadd.f32 %v3163, %v3358
      %v3360 = vpop.f32.mrf.mxu0
      %3361 = vmatprep.mubr.f32.mxu0 0.0
      %3362 = vmatmul.mubr.f32.gmra.mxu0 %v3225
      %v3363 = vpop.f32.mrf.mxu0
      %v3364 = vadd.f32 %v3168, %v3363
      %v3365 = vpop.f32.mrf.mxu0
      %3366 = vmatprep.mubr.f32.mxu0 0.0
      %3367 = vmatmul.mubr.f32.gmra.mxu0 %v3228
      %v3368 = vpop.f32.mrf.mxu0
      %v3369 = vadd.f32 %v3173, %v3368
      %v3370 = vpop.f32.mrf.mxu0
      %3371 = vmatprep.mubr.f32.mxu0 0.0
      %3372 = vmatmul.mubr.f32.gmra.mxu0 %v3231
      %v3373 = vpop.f32.mrf.mxu0
      %v3374 = vadd.f32 %v3178, %v3373
      %v3375 = vpop.f32.mrf.mxu0
      %3376 = vmatprep.mubr.f32.mxu0 0.0
      %3377 = vmatmul.mubr.f32.gmra.mxu0 %v3234
      %v3378 = vpop.f32.mrf.mxu0
      %v3379 = vadd.f32 %v3183, %v3378
      %v3380 = vpop.f32.mrf.mxu0
      %3381 = vmatprep.mubr.f32.mxu0 0.0
      %3382 = vmatmul.mubr.f32.gmra.mxu0 %v3237
      %v3383 = vpop.f32.mrf.mxu0
      %v3384 = vadd.f32 %v3188, %v3383
      %v3385 = vpop.f32.mrf.mxu0
      %3386 = vdwg.mxu0
      %v3387 = vld [vmem:[#allocation3 + $0x2] sm:$0xff]
      %v3388 = vld [vmem:[#allocation3 + $0xa] sm:$0xff]
      %v3389 = vld [vmem:[#allocation3 + $0x1a] sm:$0xff]
      %v3390 = vld [vmem:[#allocation3 + $0x22] sm:$0xff]
      %v3391 = vld [vmem:[#allocation3 + $0x32] sm:$0xff]
      %v3392 = vld [vmem:[#allocation3 + $0x3a] sm:$0xff]
      %v3393 = vld [vmem:[#allocation3 + $0x4a] sm:$0xff]
      %v3394 = vld [vmem:[#allocation3 + $0x52] sm:$0xff]
      %v3395 = vld [vmem:[#allocation3 + $0x62] sm:$0xff]
      %v3396 = vld [vmem:[#allocation3 + $0x6a] sm:$0xff]
      %v3397 = vld [vmem:[#allocation3 + $0x7a] sm:$0xff]
      %v3398 = vld [vmem:[#allocation3 + $0x82] sm:$0xff]
      %v3399 = vld [vmem:[#allocation3 + $0x92] sm:$0xff]
      %v3400 = vld [vmem:[#allocation3 + $0x9a] sm:$0xff]
      %v3401 = vld [vmem:[#allocation3 + $0xaa] sm:$0xff]
      %v3402 = vld [vmem:[#allocation3 + $0xb2] sm:$0xff]
      %s3403 = scalar_lea.vmem %s5, 4
      %v3404 = vld [vmem:[%s3403] sm:$0x3]
      %v3406 = vsel %vm2938, %v3387, 0
      %v3409 = vsel %vm2938, %v3388, 0
      %v3412 = vsel %vm2938, %v3389, 0
      %v3415 = vsel %vm2938, %v3390, 0
      %v3418 = vsel %vm2938, %v3391, 0
      %v3421 = vsel %vm2938, %v3392, 0
      %v3424 = vsel %vm2938, %v3393, 0
      %v3427 = vsel %vm2938, %v3394, 0
      %v3430 = vsel %vm2938, %v3395, 0
      %v3433 = vsel %vm2938, %v3396, 0
      %v3436 = vsel %vm2938, %v3397, 0
      %v3439 = vsel %vm2938, %v3398, 0
      %v3442 = vsel %vm2938, %v3399, 0
      %v3445 = vsel %vm2938, %v3400, 0
      %v3448 = vsel %vm2938, %v3401, 0
      %v3451 = vsel %vm2938, %v3402, 0
      %v3454 = vsel %vm3042, %v3404, 0
      %3456 = vmatprep.subr.mxu0 0.0
      %3457 = vmatpush1.msra.mxu0 0.0
      %3458 = vmatprep.subr.mxu0 0.0
      %3459 = vmatpush1.msra.mxu0 0.0
      %3460 = vmatprep.subr.mxu0 0.0
      %3461 = vmatpush1.msra.mxu0 0.0
      %3462 = vmatprep.subr.mxu0 0.0
      %3463 = vmatpush1.msra.mxu0 0.0
      %3464 = vmatprep.subr.mxu0 0.0
      %3465 = vmatpush1.msra.mxu0 0.0
      %3466 = vmatprep.subr.mxu0 0.0
      %3467 = vmatpush1.msra.mxu0 0.0
      %3468 = vmatprep.subr.mxu0 0.0
      %3469 = vmatpush1.msra.mxu0 0.0
      %3470 = vmatprep.subr.mxu0 0.0
      %3471 = vmatpush1.msra.mxu0 0.0
      %3472 = vmatprep.subr.mxu0 0.0
      %3473 = vmatpush1.msra.mxu0 0.0
      %3474 = vmatprep.subr.mxu0 0.0
      %3475 = vmatpush1.msra.mxu0 0.0
      %3476 = vmatprep.subr.mxu0 0.0
      %3477 = vmatpush1.msra.mxu0 0.0
      %3478 = vmatprep.subr.mxu0 0.0
      %3479 = vmatpush1.msra.mxu0 0.0
      %3480 = vmatprep.subr.mxu0 0.0
      %3481 = vmatpush1.msra.mxu0 0.0
      %3482 = vmatprep.subr.mxu0 0.0
      %3483 = vmatpush1.msra.mxu0 0.0
      %3484 = vmatprep.subr.mxu0 0.0
      %3485 = vmatpush1.msra.mxu0 0.0
      %3486 = vmatprep.subr.mxu0 0.0
      %3487 = vmatpush1.msra.mxu0 %v3454
      %3488 = vmatprep.subr.mxu0 0.0
      %3489 = vmatpush2.msra.mxu0 0.0
      %3490 = vmatprep.subr.mxu0 0.0
      %3491 = vmatpush2.msra.mxu0 0.0
      %3492 = vmatprep.subr.mxu0 0.0
      %3493 = vmatpush2.msra.mxu0 0.0
      %3494 = vmatprep.subr.mxu0 0.0
      %3495 = vmatpush2.msra.mxu0 0.0
      %3496 = vmatprep.subr.mxu0 0.0
      %3497 = vmatpush2.msra.mxu0 0.0
      %3498 = vmatprep.subr.mxu0 0.0
      %3499 = vmatpush2.msra.mxu0 0.0
      %3500 = vmatprep.subr.mxu0 0.0
      %3501 = vmatpush2.msra.mxu0 0.0
      %3502 = vmatprep.subr.mxu0 0.0
      %3503 = vmatpush2.msra.mxu0 0.0
      %3504 = vmatprep.subr.mxu0 0.0
      %3505 = vmatpush2.msra.mxu0 0.0
      %3506 = vmatprep.subr.mxu0 0.0
      %3507 = vmatpush2.msra.mxu0 0.0
      %3508 = vmatprep.subr.mxu0 0.0
      %3509 = vmatpush2.msra.mxu0 0.0
      %3510 = vmatprep.subr.mxu0 0.0
      %3511 = vmatpush2.msra.mxu0 0.0
      %3512 = vmatprep.subr.mxu0 0.0
      %3513 = vmatpush2.msra.mxu0 0.0
      %3514 = vmatprep.subr.mxu0 0.0
      %3515 = vmatpush2.msra.mxu0 0.0
      %3516 = vmatprep.subr.mxu0 0.0
      %3517 = vmatpush2.msra.mxu0 0.0
      %3518 = vmatprep.subr.mxu0 0.0
      %3519 = vmatpush2.msra.mxu0 0.0
      %3520 = vmatprep.mubr.f32.mxu0 0.0
      %3521 = vmatmul.mubr.f32.gmra.mxu0 %v3406
      %v3522 = vpop.f32.mrf.mxu0
      %v3523 = vadd.f32 0.0, %v3522
      %v3524 = vpop.f32.mrf.mxu0
      %3525 = vmatprep.mubr.f32.mxu0 0.0
      %3526 = vmatmul.mubr.f32.gmra.mxu0 %v3409
      %v3527 = vpop.f32.mrf.mxu0
      %v3528 = vadd.f32 0.0, %v3527
      %v3529 = vpop.f32.mrf.mxu0
      %3530 = vmatprep.mubr.f32.mxu0 0.0
      %3531 = vmatmul.mubr.f32.gmra.mxu0 %v3412
      %v3532 = vpop.f32.mrf.mxu0
      %v3533 = vadd.f32 0.0, %v3532
      %v3534 = vpop.f32.mrf.mxu0
      %3535 = vmatprep.mubr.f32.mxu0 0.0
      %3536 = vmatmul.mubr.f32.gmra.mxu0 %v3415
      %v3537 = vpop.f32.mrf.mxu0
      %v3538 = vadd.f32 0.0, %v3537
      %v3539 = vpop.f32.mrf.mxu0
      %3540 = vmatprep.mubr.f32.mxu0 0.0
      %3541 = vmatmul.mubr.f32.gmra.mxu0 %v3418
      %v3542 = vpop.f32.mrf.mxu0
      %v3543 = vadd.f32 0.0, %v3542
      %v3544 = vpop.f32.mrf.mxu0
      %3545 = vmatprep.mubr.f32.mxu0 0.0
      %3546 = vmatmul.mubr.f32.gmra.mxu0 %v3421
      %v3547 = vpop.f32.mrf.mxu0
      %v3548 = vadd.f32 0.0, %v3547
      %v3549 = vpop.f32.mrf.mxu0
      %3550 = vmatprep.mubr.f32.mxu0 0.0
      %3551 = vmatmul.mubr.f32.gmra.mxu0 %v3424
      %v3552 = vpop.f32.mrf.mxu0
      %v3553 = vadd.f32 0.0, %v3552
      %v3554 = vpop.f32.mrf.mxu0
      %3555 = vmatprep.mubr.f32.mxu0 0.0
      %3556 = vmatmul.mubr.f32.gmra.mxu0 %v3427
      %v3557 = vpop.f32.mrf.mxu0
      %v3558 = vadd.f32 0.0, %v3557
      %v3559 = vpop.f32.mrf.mxu0
      %3560 = vmatprep.mubr.f32.mxu0 0.0
      %3561 = vmatmul.mubr.f32.gmra.mxu0 %v3430
      %v3562 = vpop.f32.mrf.mxu0
      %v3563 = vadd.f32 0.0, %v3562
      %v3564 = vpop.f32.mrf.mxu0
      %3565 = vmatprep.mubr.f32.mxu0 0.0
      %3566 = vmatmul.mubr.f32.gmra.mxu0 %v3433
      %v3567 = vpop.f32.mrf.mxu0
      %v3568 = vadd.f32 0.0, %v3567
      %v3569 = vpop.f32.mrf.mxu0
      %3570 = vmatprep.mubr.f32.mxu0 0.0
      %3571 = vmatmul.mubr.f32.gmra.mxu0 %v3436
      %v3572 = vpop.f32.mrf.mxu0
      %v3573 = vadd.f32 0.0, %v3572
      %v3574 = vpop.f32.mrf.mxu0
      %3575 = vmatprep.mubr.f32.mxu0 0.0
      %3576 = vmatmul.mubr.f32.gmra.mxu0 %v3439
      %v3577 = vpop.f32.mrf.mxu0
      %v3578 = vadd.f32 0.0, %v3577
      %v3579 = vpop.f32.mrf.mxu0
      %3580 = vmatprep.mubr.f32.mxu0 0.0
      %3581 = vmatmul.mubr.f32.gmra.mxu0 %v3442
      %v3582 = vpop.f32.mrf.mxu0
      %v3583 = vadd.f32 0.0, %v3582
      %v3584 = vpop.f32.mrf.mxu0
      %3585 = vmatprep.mubr.f32.mxu0 0.0
      %3586 = vmatmul.mubr.f32.gmra.mxu0 %v3445
      %v3587 = vpop.f32.mrf.mxu0
      %v3588 = vadd.f32 0.0, %v3587
      %v3589 = vpop.f32.mrf.mxu0
      %3590 = vmatprep.mubr.f32.mxu0 0.0
      %3591 = vmatmul.mubr.f32.gmra.mxu0 %v3448
      %v3592 = vpop.f32.mrf.mxu0
      %v3593 = vadd.f32 0.0, %v3592
      %v3594 = vpop.f32.mrf.mxu0
      %3595 = vmatprep.mubr.f32.mxu0 0.0
      %3596 = vmatmul.mubr.f32.gmra.mxu0 %v3451
      %v3597 = vpop.f32.mrf.mxu0
      %v3598 = vadd.f32 0.0, %v3597
      %v3599 = vpop.f32.mrf.mxu0
      %3600 = vdwg.mxu0
      %v3601 = vadd.f32 %v3309, %v3523
      %v3602 = vadd.f32 %v3314, %v3528
      %v3603 = vadd.f32 %v3319, %v3533
      %v3604 = vadd.f32 %v3324, %v3538
      %v3605 = vadd.f32 %v3329, %v3543
      %v3606 = vadd.f32 %v3334, %v3548
      %v3607 = vadd.f32 %v3339, %v3553
      %v3608 = vadd.f32 %v3344, %v3558
      %v3609 = vadd.f32 %v3349, %v3563
      %v3610 = vadd.f32 %v3354, %v3568
      %v3611 = vadd.f32 %v3359, %v3573
      %v3612 = vadd.f32 %v3364, %v3578
      %v3613 = vadd.f32 %v3369, %v3583
      %v3614 = vadd.f32 %v3374, %v3588
      %v3615 = vadd.f32 %v3379, %v3593
      %v3616 = vadd.f32 %v3384, %v3598
      %s3617 = scalar_lea.vmem [#allocation3], 24
      %v3618 = vld [vmem:[%s3617] sm:$0xff]
      %v3619 = vld [vmem:[%s3617 + $0x8] sm:$0xff]
      %v3620 = vld [vmem:[%s3617 + $0x18] sm:$0xff]
      %v3621 = vld [vmem:[%s3617 + $0x20] sm:$0xff]
      %v3622 = vld [vmem:[%s3617 + $0x30] sm:$0xff]
      %v3623 = vld [vmem:[%s3617 + $0x38] sm:$0xff]
      %v3624 = vld [vmem:[%s3617 + $0x48] sm:$0xff]
      %v3625 = vld [vmem:[%s3617 + $0x50] sm:$0xff]
      %v3626 = vld [vmem:[%s3617 + $0x60] sm:$0xff]
      %v3627 = vld [vmem:[%s3617 + $0x68] sm:$0xff]
      %v3628 = vld [vmem:[%s3617 + $0x78] sm:$0xff]
      %v3629 = vld [vmem:[%s3617 + $0x80] sm:$0xff]
      %v3630 = vld [vmem:[%s3617 + $0x90] sm:$0xff]
      %v3631 = vld [vmem:[%s3617 + $0x98] sm:$0xff]
      %v3632 = vld [vmem:[%s3617 + $0xa8] sm:$0xff]
      %v3633 = vld [vmem:[%s3617 + $0xb0] sm:$0xff]
      %s3634 = scalar_lea.vmem %s5, 6
      %v3635 = vld [vmem:[%s3634] sm:$0x3]
      %v3637 = vsel %vm2938, %v3618, 0
      %v3640 = vsel %vm2938, %v3619, 0
      %v3643 = vsel %vm2938, %v3620, 0
      %v3646 = vsel %vm2938, %v3621, 0
      %v3649 = vsel %vm2938, %v3622, 0
      %v3652 = vsel %vm2938, %v3623, 0
      %v3655 = vsel %vm2938, %v3624, 0
      %v3658 = vsel %vm2938, %v3625, 0
      %v3661 = vsel %vm2938, %v3626, 0
      %v3664 = vsel %vm2938, %v3627, 0
      %v3667 = vsel %vm2938, %v3628, 0
      %v3670 = vsel %vm2938, %v3629, 0
      %v3673 = vsel %vm2938, %v3630, 0
      %v3676 = vsel %vm2938, %v3631, 0
      %v3679 = vsel %vm2938, %v3632, 0
      %v3682 = vsel %vm2938, %v3633, 0
      %v3685 = vsel %vm3042, %v3635, 0
      %3687 = vmatprep.subr.mxu0 0.0
      %3688 = vmatpush1.msra.mxu0 0.0
      %3689 = vmatprep.subr.mxu0 0.0
      %3690 = vmatpush1.msra.mxu0 0.0
      %3691 = vmatprep.subr.mxu0 0.0
      %3692 = vmatpush1.msra.mxu0 0.0
      %3693 = vmatprep.subr.mxu0 0.0
      %3694 = vmatpush1.msra.mxu0 0.0
      %3695 = vmatprep.subr.mxu0 0.0
      %3696 = vmatpush1.msra.mxu0 0.0
      %3697 = vmatprep.subr.mxu0 0.0
      %3698 = vmatpush1.msra.mxu0 0.0
      %3699 = vmatprep.subr.mxu0 0.0
      %3700 = vmatpush1.msra.mxu0 0.0
      %3701 = vmatprep.subr.mxu0 0.0
      %3702 = vmatpush1.msra.mxu0 0.0
      %3703 = vmatprep.subr.mxu0 0.0
      %3704 = vmatpush1.msra.mxu0 0.0
      %3705 = vmatprep.subr.mxu0 0.0
      %3706 = vmatpush1.msra.mxu0 0.0
      %3707 = vmatprep.subr.mxu0 0.0
      %3708 = vmatpush1.msra.mxu0 0.0
      %3709 = vmatprep.subr.mxu0 0.0
      %3710 = vmatpush1.msra.mxu0 0.0
      %3711 = vmatprep.subr.mxu0 0.0
      %3712 = vmatpush1.msra.mxu0 0.0
      %3713 = vmatprep.subr.mxu0 0.0
      %3714 = vmatpush1.msra.mxu0 0.0
      %3715 = vmatprep.subr.mxu0 0.0
      %3716 = vmatpush1.msra.mxu0 0.0
      %3717 = vmatprep.subr.mxu0 0.0
      %3718 = vmatpush1.msra.mxu0 %v3685
      %3719 = vmatprep.subr.mxu0 0.0
      %3720 = vmatpush2.msra.mxu0 0.0
      %3721 = vmatprep.subr.mxu0 0.0
      %3722 = vmatpush2.msra.mxu0 0.0
      %3723 = vmatprep.subr.mxu0 0.0
      %3724 = vmatpush2.msra.mxu0 0.0
      %3725 = vmatprep.subr.mxu0 0.0
      %3726 = vmatpush2.msra.mxu0 0.0
      %3727 = vmatprep.subr.mxu0 0.0
      %3728 = vmatpush2.msra.mxu0 0.0
      %3729 = vmatprep.subr.mxu0 0.0
      %3730 = vmatpush2.msra.mxu0 0.0
      %3731 = vmatprep.subr.mxu0 0.0
      %3732 = vmatpush2.msra.mxu0 0.0
      %3733 = vmatprep.subr.mxu0 0.0
      %3734 = vmatpush2.msra.mxu0 0.0
      %3735 = vmatprep.subr.mxu0 0.0
      %3736 = vmatpush2.msra.mxu0 0.0
      %3737 = vmatprep.subr.mxu0 0.0
      %3738 = vmatpush2.msra.mxu0 0.0
      %3739 = vmatprep.subr.mxu0 0.0
      %3740 = vmatpush2.msra.mxu0 0.0
      %3741 = vmatprep.subr.mxu0 0.0
      %3742 = vmatpush2.msra.mxu0 0.0
      %3743 = vmatprep.subr.mxu0 0.0
      %3744 = vmatpush2.msra.mxu0 0.0
      %3745 = vmatprep.subr.mxu0 0.0
      %3746 = vmatpush2.msra.mxu0 0.0
      %3747 = vmatprep.subr.mxu0 0.0
      %3748 = vmatpush2.msra.mxu0 0.0
      %3749 = vmatprep.subr.mxu0 0.0
      %3750 = vmatpush2.msra.mxu0 0.0
      %3751 = vmatprep.mubr.f32.mxu0 0.0
      %3752 = vmatmul.mubr.f32.gmra.mxu0 %v3637
      %v3753 = vpop.f32.mrf.mxu0
      %v3754 = vadd.f32 0.0, %v3753
      %v3755 = vpop.f32.mrf.mxu0
      %3756 = vmatprep.mubr.f32.mxu0 0.0
      %3757 = vmatmul.mubr.f32.gmra.mxu0 %v3640
      %v3758 = vpop.f32.mrf.mxu0
      %v3759 = vadd.f32 0.0, %v3758
      %v3760 = vpop.f32.mrf.mxu0
      %3761 = vmatprep.mubr.f32.mxu0 0.0
      %3762 = vmatmul.mubr.f32.gmra.mxu0 %v3643
      %v3763 = vpop.f32.mrf.mxu0
      %v3764 = vadd.f32 0.0, %v3763
      %v3765 = vpop.f32.mrf.mxu0
      %3766 = vmatprep.mubr.f32.mxu0 0.0
      %3767 = vmatmul.mubr.f32.gmra.mxu0 %v3646
      %v3768 = vpop.f32.mrf.mxu0
      %v3769 = vadd.f32 0.0, %v3768
      %v3770 = vpop.f32.mrf.mxu0
      %3771 = vmatprep.mubr.f32.mxu0 0.0
      %3772 = vmatmul.mubr.f32.gmra.mxu0 %v3649
      %v3773 = vpop.f32.mrf.mxu0
      %v3774 = vadd.f32 0.0, %v3773
      %v3775 = vpop.f32.mrf.mxu0
      %3776 = vmatprep.mubr.f32.mxu0 0.0
      %3777 = vmatmul.mubr.f32.gmra.mxu0 %v3652
      %v3778 = vpop.f32.mrf.mxu0
      %v3779 = vadd.f32 0.0, %v3778
      %v3780 = vpop.f32.mrf.mxu0
      %3781 = vmatprep.mubr.f32.mxu0 0.0
      %3782 = vmatmul.mubr.f32.gmra.mxu0 %v3655
      %v3783 = vpop.f32.mrf.mxu0
      %v3784 = vadd.f32 0.0, %v3783
      %v3785 = vpop.f32.mrf.mxu0
      %3786 = vmatprep.mubr.f32.mxu0 0.0
      %3787 = vmatmul.mubr.f32.gmra.mxu0 %v3658
      %v3788 = vpop.f32.mrf.mxu0
      %v3789 = vadd.f32 0.0, %v3788
      %v3790 = vpop.f32.mrf.mxu0
      %3791 = vmatprep.mubr.f32.mxu0 0.0
      %3792 = vmatmul.mubr.f32.gmra.mxu0 %v3661
      %v3793 = vpop.f32.mrf.mxu0
      %v3794 = vadd.f32 0.0, %v3793
      %v3795 = vpop.f32.mrf.mxu0
      %3796 = vmatprep.mubr.f32.mxu0 0.0
      %3797 = vmatmul.mubr.f32.gmra.mxu0 %v3664
      %v3798 = vpop.f32.mrf.mxu0
      %v3799 = vadd.f32 0.0, %v3798
      %v3800 = vpop.f32.mrf.mxu0
      %3801 = vmatprep.mubr.f32.mxu0 0.0
      %3802 = vmatmul.mubr.f32.gmra.mxu0 %v3667
      %v3803 = vpop.f32.mrf.mxu0
      %v3804 = vadd.f32 0.0, %v3803
      %v3805 = vpop.f32.mrf.mxu0
      %3806 = vmatprep.mubr.f32.mxu0 0.0
      %3807 = vmatmul.mubr.f32.gmra.mxu0 %v3670
      %v3808 = vpop.f32.mrf.mxu0
      %v3809 = vadd.f32 0.0, %v3808
      %v3810 = vpop.f32.mrf.mxu0
      %3811 = vmatprep.mubr.f32.mxu0 0.0
      %3812 = vmatmul.mubr.f32.gmra.mxu0 %v3673
      %v3813 = vpop.f32.mrf.mxu0
      %v3814 = vadd.f32 0.0, %v3813
      %v3815 = vpop.f32.mrf.mxu0
      %3816 = vmatprep.mubr.f32.mxu0 0.0
      %3817 = vmatmul.mubr.f32.gmra.mxu0 %v3676
      %v3818 = vpop.f32.mrf.mxu0
      %v3819 = vadd.f32 0.0, %v3818
      %v3820 = vpop.f32.mrf.mxu0
      %3821 = vmatprep.mubr.f32.mxu0 0.0
      %3822 = vmatmul.mubr.f32.gmra.mxu0 %v3679
      %v3823 = vpop.f32.mrf.mxu0
      %v3824 = vadd.f32 0.0, %v3823
      %v3825 = vpop.f32.mrf.mxu0
      %3826 = vmatprep.mubr.f32.mxu0 0.0
      %3827 = vmatmul.mubr.f32.gmra.mxu0 %v3682
      %v3828 = vpop.f32.mrf.mxu0
      %v3829 = vadd.f32 0.0, %v3828
      %v3830 = vpop.f32.mrf.mxu0
      %3831 = vdwg.mxu0
      %v3832 = vadd.f32 %v3601, %v3754
      %v3833 = vadd.f32 %v3602, %v3759
      %v3834 = vadd.f32 %v3603, %v3764
      %v3835 = vadd.f32 %v3604, %v3769
      %v3836 = vadd.f32 %v3605, %v3774
      %v3837 = vadd.f32 %v3606, %v3779
      %v3838 = vadd.f32 %v3607, %v3784
      %v3839 = vadd.f32 %v3608, %v3789
      %v3840 = vadd.f32 %v3609, %v3794
      %v3841 = vadd.f32 %v3610, %v3799
      %v3842 = vadd.f32 %v3611, %v3804
      %v3843 = vadd.f32 %v3612, %v3809
      %v3844 = vadd.f32 %v3613, %v3814
      %v3845 = vadd.f32 %v3614, %v3819
      %v3846 = vadd.f32 %v3615, %v3824
      %v3847 = vadd.f32 %v3616, %v3829
      %v3848 = vld [vmem:[%s3617 + $0x1] sm:$0xff]
      %v3849 = vld [vmem:[%s3617 + $0x9] sm:$0xff]
      %v3850 = vld [vmem:[%s3617 + $0x19] sm:$0xff]
      %v3851 = vld [vmem:[%s3617 + $0x21] sm:$0xff]
      %v3852 = vld [vmem:[%s3617 + $0x31] sm:$0xff]
      %v3853 = vld [vmem:[%s3617 + $0x39] sm:$0xff]
      %v3854 = vld [vmem:[%s3617 + $0x49] sm:$0xff]
      %v3855 = vld [vmem:[%s3617 + $0x51] sm:$0xff]
      %v3856 = vld [vmem:[%s3617 + $0x61] sm:$0xff]
      %v3857 = vld [vmem:[%s3617 + $0x69] sm:$0xff]
      %v3858 = vld [vmem:[%s3617 + $0x79] sm:$0xff]
      %v3859 = vld [vmem:[%s3617 + $0x81] sm:$0xff]
      %v3860 = vld [vmem:[%s3617 + $0x91] sm:$0xff]
      %v3861 = vld [vmem:[%s3617 + $0x99] sm:$0xff]
      %v3862 = vld [vmem:[%s3617 + $0xa9] sm:$0xff]
      %v3863 = vld [vmem:[%s3617 + $0xb1] sm:$0xff]
      %s3864 = scalar_lea.vmem %s5, 8
      %v3865 = vld [vmem:[%s3864] sm:$0x3]
      %v3867 = vsel %vm2938, %v3848, 0
      %v3870 = vsel %vm2938, %v3849, 0
      %v3873 = vsel %vm2938, %v3850, 0
      %v3876 = vsel %vm2938, %v3851, 0
      %v3879 = vsel %vm2938, %v3852, 0
      %v3882 = vsel %vm2938, %v3853, 0
      %v3885 = vsel %vm2938, %v3854, 0
      %v3888 = vsel %vm2938, %v3855, 0
      %v3891 = vsel %vm2938, %v3856, 0
      %v3894 = vsel %vm2938, %v3857, 0
      %v3897 = vsel %vm2938, %v3858, 0
      %v3900 = vsel %vm2938, %v3859, 0
      %v3903 = vsel %vm2938, %v3860, 0
      %v3906 = vsel %vm2938, %v3861, 0
      %v3909 = vsel %vm2938, %v3862, 0
      %v3912 = vsel %vm2938, %v3863, 0
      %v3915 = vsel %vm3042, %v3865, 0
      %3917 = vmatprep.subr.mxu0 0.0
      %3918 = vmatpush1.msra.mxu0 0.0
      %3919 = vmatprep.subr.mxu0 0.0
      %3920 = vmatpush1.msra.mxu0 0.0
      %3921 = vmatprep.subr.mxu0 0.0
      %3922 = vmatpush1.msra.mxu0 0.0
      %3923 = vmatprep.subr.mxu0 0.0
      %3924 = vmatpush1.msra.mxu0 0.0
      %3925 = vmatprep.subr.mxu0 0.0
      %3926 = vmatpush1.msra.mxu0 0.0
      %3927 = vmatprep.subr.mxu0 0.0
      %3928 = vmatpush1.msra.mxu0 0.0
      %3929 = vmatprep.subr.mxu0 0.0
      %3930 = vmatpush1.msra.mxu0 0.0
      %3931 = vmatprep.subr.mxu0 0.0
      %3932 = vmatpush1.msra.mxu0 0.0
      %3933 = vmatprep.subr.mxu0 0.0
      %3934 = vmatpush1.msra.mxu0 0.0
      %3935 = vmatprep.subr.mxu0 0.0
      %3936 = vmatpush1.msra.mxu0 0.0
      %3937 = vmatprep.subr.mxu0 0.0
      %3938 = vmatpush1.msra.mxu0 0.0
      %3939 = vmatprep.subr.mxu0 0.0
      %3940 = vmatpush1.msra.mxu0 0.0
      %3941 = vmatprep.subr.mxu0 0.0
      %3942 = vmatpush1.msra.mxu0 0.0
      %3943 = vmatprep.subr.mxu0 0.0
      %3944 = vmatpush1.msra.mxu0 0.0
      %3945 = vmatprep.subr.mxu0 0.0
      %3946 = vmatpush1.msra.mxu0 0.0
      %3947 = vmatprep.subr.mxu0 0.0
      %3948 = vmatpush1.msra.mxu0 %v3915
      %3949 = vmatprep.subr.mxu0 0.0
      %3950 = vmatpush2.msra.mxu0 0.0
      %3951 = vmatprep.subr.mxu0 0.0
      %3952 = vmatpush2.msra.mxu0 0.0
      %3953 = vmatprep.subr.mxu0 0.0
      %3954 = vmatpush2.msra.mxu0 0.0
      %3955 = vmatprep.subr.mxu0 0.0
      %3956 = vmatpush2.msra.mxu0 0.0
      %3957 = vmatprep.subr.mxu0 0.0
      %3958 = vmatpush2.msra.mxu0 0.0
      %3959 = vmatprep.subr.mxu0 0.0
      %3960 = vmatpush2.msra.mxu0 0.0
      %3961 = vmatprep.subr.mxu0 0.0
      %3962 = vmatpush2.msra.mxu0 0.0
      %3963 = vmatprep.subr.mxu0 0.0
      %3964 = vmatpush2.msra.mxu0 0.0
      %3965 = vmatprep.subr.mxu0 0.0
      %3966 = vmatpush2.msra.mxu0 0.0
      %3967 = vmatprep.subr.mxu0 0.0
      %3968 = vmatpush2.msra.mxu0 0.0
      %3969 = vmatprep.subr.mxu0 0.0
      %3970 = vmatpush2.msra.mxu0 0.0
      %3971 = vmatprep.subr.mxu0 0.0
      %3972 = vmatpush2.msra.mxu0 0.0
      %3973 = vmatprep.subr.mxu0 0.0
      %3974 = vmatpush2.msra.mxu0 0.0
      %3975 = vmatprep.subr.mxu0 0.0
      %3976 = vmatpush2.msra.mxu0 0.0
      %3977 = vmatprep.subr.mxu0 0.0
      %3978 = vmatpush2.msra.mxu0 0.0
      %3979 = vmatprep.subr.mxu0 0.0
      %3980 = vmatpush2.msra.mxu0 0.0
      %3981 = vmatprep.mubr.f32.mxu0 0.0
      %3982 = vmatmul.mubr.f32.gmra.mxu0 %v3867
      %v3983 = vpop.f32.mrf.mxu0
      %v3984 = vadd.f32 0.0, %v3983
      %v3985 = vpop.f32.mrf.mxu0
      %3986 = vmatprep.mubr.f32.mxu0 0.0
      %3987 = vmatmul.mubr.f32.gmra.mxu0 %v3870
      %v3988 = vpop.f32.mrf.mxu0
      %v3989 = vadd.f32 0.0, %v3988
      %v3990 = vpop.f32.mrf.mxu0
      %3991 = vmatprep.mubr.f32.mxu0 0.0
      %3992 = vmatmul.mubr.f32.gmra.mxu0 %v3873
      %v3993 = vpop.f32.mrf.mxu0
      %v3994 = vadd.f32 0.0, %v3993
      %v3995 = vpop.f32.mrf.mxu0
      %3996 = vmatprep.mubr.f32.mxu0 0.0
      %3997 = vmatmul.mubr.f32.gmra.mxu0 %v3876
      %v3998 = vpop.f32.mrf.mxu0
      %v3999 = vadd.f32 0.0, %v3998
      %v4000 = vpop.f32.mrf.mxu0
      %4001 = vmatprep.mubr.f32.mxu0 0.0
      %4002 = vmatmul.mubr.f32.gmra.mxu0 %v3879
      %v4003 = vpop.f32.mrf.mxu0
      %v4004 = vadd.f32 0.0, %v4003
      %v4005 = vpop.f32.mrf.mxu0
      %4006 = vmatprep.mubr.f32.mxu0 0.0
      %4007 = vmatmul.mubr.f32.gmra.mxu0 %v3882
      %v4008 = vpop.f32.mrf.mxu0
      %v4009 = vadd.f32 0.0, %v4008
      %v4010 = vpop.f32.mrf.mxu0
      %4011 = vmatprep.mubr.f32.mxu0 0.0
      %4012 = vmatmul.mubr.f32.gmra.mxu0 %v3885
      %v4013 = vpop.f32.mrf.mxu0
      %v4014 = vadd.f32 0.0, %v4013
      %v4015 = vpop.f32.mrf.mxu0
      %4016 = vmatprep.mubr.f32.mxu0 0.0
      %4017 = vmatmul.mubr.f32.gmra.mxu0 %v3888
      %v4018 = vpop.f32.mrf.mxu0
      %v4019 = vadd.f32 0.0, %v4018
      %v4020 = vpop.f32.mrf.mxu0
      %4021 = vmatprep.mubr.f32.mxu0 0.0
      %4022 = vmatmul.mubr.f32.gmra.mxu0 %v3891
      %v4023 = vpop.f32.mrf.mxu0
      %v4024 = vadd.f32 0.0, %v4023
      %v4025 = vpop.f32.mrf.mxu0
      %4026 = vmatprep.mubr.f32.mxu0 0.0
      %4027 = vmatmul.mubr.f32.gmra.mxu0 %v3894
      %v4028 = vpop.f32.mrf.mxu0
      %v4029 = vadd.f32 0.0, %v4028
      %v4030 = vpop.f32.mrf.mxu0
      %4031 = vmatprep.mubr.f32.mxu0 0.0
      %4032 = vmatmul.mubr.f32.gmra.mxu0 %v3897
      %v4033 = vpop.f32.mrf.mxu0
      %v4034 = vadd.f32 0.0, %v4033
      %v4035 = vpop.f32.mrf.mxu0
      %4036 = vmatprep.mubr.f32.mxu0 0.0
      %4037 = vmatmul.mubr.f32.gmra.mxu0 %v3900
      %v4038 = vpop.f32.mrf.mxu0
      %v4039 = vadd.f32 0.0, %v4038
      %v4040 = vpop.f32.mrf.mxu0
      %4041 = vmatprep.mubr.f32.mxu0 0.0
      %4042 = vmatmul.mubr.f32.gmra.mxu0 %v3903
      %v4043 = vpop.f32.mrf.mxu0
      %v4044 = vadd.f32 0.0, %v4043
      %v4045 = vpop.f32.mrf.mxu0
      %4046 = vmatprep.mubr.f32.mxu0 0.0
      %4047 = vmatmul.mubr.f32.gmra.mxu0 %v3906
      %v4048 = vpop.f32.mrf.mxu0
      %v4049 = vadd.f32 0.0, %v4048
      %v4050 = vpop.f32.mrf.mxu0
      %4051 = vmatprep.mubr.f32.mxu0 0.0
      %4052 = vmatmul.mubr.f32.gmra.mxu0 %v3909
      %v4053 = vpop.f32.mrf.mxu0
      %v4054 = vadd.f32 0.0, %v4053
      %v4055 = vpop.f32.mrf.mxu0
      %4056 = vmatprep.mubr.f32.mxu0 0.0
      %4057 = vmatmul.mubr.f32.gmra.mxu0 %v3912
      %v4058 = vpop.f32.mrf.mxu0
      %v4059 = vadd.f32 0.0, %v4058
      %v4060 = vpop.f32.mrf.mxu0
      %4061 = vdwg.mxu0
      %v4062 = vadd.f32 %v3832, %v3984
      %v4063 = vadd.f32 %v3833, %v3989
      %v4064 = vadd.f32 %v3834, %v3994
      %v4065 = vadd.f32 %v3835, %v3999
      %v4066 = vadd.f32 %v3836, %v4004
      %v4067 = vadd.f32 %v3837, %v4009
      %v4068 = vadd.f32 %v3838, %v4014
      %v4069 = vadd.f32 %v3839, %v4019
      %v4070 = vadd.f32 %v3840, %v4024
      %v4071 = vadd.f32 %v3841, %v4029
      %v4072 = vadd.f32 %v3842, %v4034
      %v4073 = vadd.f32 %v3843, %v4039
      %v4074 = vadd.f32 %v3844, %v4044
      %v4075 = vadd.f32 %v3845, %v4049
      %v4076 = vadd.f32 %v3846, %v4054
      %v4077 = vadd.f32 %v3847, %v4059
      %v4078 = vld [vmem:[%s3617 + $0x2] sm:$0xff]
      %v4079 = vld [vmem:[%s3617 + $0xa] sm:$0xff]
      %v4080 = vld [vmem:[%s3617 + $0x1a] sm:$0xff]
      %v4081 = vld [vmem:[%s3617 + $0x22] sm:$0xff]
      %v4082 = vld [vmem:[%s3617 + $0x32] sm:$0xff]
      %v4083 = vld [vmem:[%s3617 + $0x3a] sm:$0xff]
      %v4084 = vld [vmem:[%s3617 + $0x4a] sm:$0xff]
      %v4085 = vld [vmem:[%s3617 + $0x52] sm:$0xff]
      %v4086 = vld [vmem:[%s3617 + $0x62] sm:$0xff]
      %v4087 = vld [vmem:[%s3617 + $0x6a] sm:$0xff]
      %v4088 = vld [vmem:[%s3617 + $0x7a] sm:$0xff]
      %v4089 = vld [vmem:[%s3617 + $0x82] sm:$0xff]
      %v4090 = vld [vmem:[%s3617 + $0x92] sm:$0xff]
      %v4091 = vld [vmem:[%s3617 + $0x9a] sm:$0xff]
      %v4092 = vld [vmem:[%s3617 + $0xaa] sm:$0xff]
      %v4093 = vld [vmem:[%s3617 + $0xb2] sm:$0xff]
      %s4094 = scalar_lea.vmem %s5, 10
      %v4095 = vld [vmem:[%s4094] sm:$0x3]
      %v4097 = vsel %vm2938, %v4078, 0
      %v4100 = vsel %vm2938, %v4079, 0
      %v4103 = vsel %vm2938, %v4080, 0
      %v4106 = vsel %vm2938, %v4081, 0
      %v4109 = vsel %vm2938, %v4082, 0
      %v4112 = vsel %vm2938, %v4083, 0
      %v4115 = vsel %vm2938, %v4084, 0
      %v4118 = vsel %vm2938, %v4085, 0
      %v4121 = vsel %vm2938, %v4086, 0
      %v4124 = vsel %vm2938, %v4087, 0
      %v4127 = vsel %vm2938, %v4088, 0
      %v4130 = vsel %vm2938, %v4089, 0
      %v4133 = vsel %vm2938, %v4090, 0
      %v4136 = vsel %vm2938, %v4091, 0
      %v4139 = vsel %vm2938, %v4092, 0
      %v4142 = vsel %vm2938, %v4093, 0
      %v4145 = vsel %vm3042, %v4095, 0
      %4147 = vmatprep.subr.mxu0 0.0
      %4148 = vmatpush1.msra.mxu0 0.0
      %4149 = vmatprep.subr.mxu0 0.0
      %4150 = vmatpush1.msra.mxu0 0.0
      %4151 = vmatprep.subr.mxu0 0.0
      %4152 = vmatpush1.msra.mxu0 0.0
      %4153 = vmatprep.subr.mxu0 0.0
      %4154 = vmatpush1.msra.mxu0 0.0
      %4155 = vmatprep.subr.mxu0 0.0
      %4156 = vmatpush1.msra.mxu0 0.0
      %4157 = vmatprep.subr.mxu0 0.0
      %4158 = vmatpush1.msra.mxu0 0.0
      %4159 = vmatprep.subr.mxu0 0.0
      %4160 = vmatpush1.msra.mxu0 0.0
      %4161 = vmatprep.subr.mxu0 0.0
      %4162 = vmatpush1.msra.mxu0 0.0
      %4163 = vmatprep.subr.mxu0 0.0
      %4164 = vmatpush1.msra.mxu0 0.0
      %4165 = vmatprep.subr.mxu0 0.0
      %4166 = vmatpush1.msra.mxu0 0.0
      %4167 = vmatprep.subr.mxu0 0.0
      %4168 = vmatpush1.msra.mxu0 0.0
      %4169 = vmatprep.subr.mxu0 0.0
      %4170 = vmatpush1.msra.mxu0 0.0
      %4171 = vmatprep.subr.mxu0 0.0
      %4172 = vmatpush1.msra.mxu0 0.0
      %4173 = vmatprep.subr.mxu0 0.0
      %4174 = vmatpush1.msra.mxu0 0.0
      %4175 = vmatprep.subr.mxu0 0.0
      %4176 = vmatpush1.msra.mxu0 0.0
      %4177 = vmatprep.subr.mxu0 0.0
      %4178 = vmatpush1.msra.mxu0 %v4145
      %4179 = vmatprep.subr.mxu0 0.0
      %4180 = vmatpush2.msra.mxu0 0.0
      %4181 = vmatprep.subr.mxu0 0.0
      %4182 = vmatpush2.msra.mxu0 0.0
      %4183 = vmatprep.subr.mxu0 0.0
      %4184 = vmatpush2.msra.mxu0 0.0
      %4185 = vmatprep.subr.mxu0 0.0
      %4186 = vmatpush2.msra.mxu0 0.0
      %4187 = vmatprep.subr.mxu0 0.0
      %4188 = vmatpush2.msra.mxu0 0.0
      %4189 = vmatprep.subr.mxu0 0.0
      %4190 = vmatpush2.msra.mxu0 0.0
      %4191 = vmatprep.subr.mxu0 0.0
      %4192 = vmatpush2.msra.mxu0 0.0
      %4193 = vmatprep.subr.mxu0 0.0
      %4194 = vmatpush2.msra.mxu0 0.0
      %4195 = vmatprep.subr.mxu0 0.0
      %4196 = vmatpush2.msra.mxu0 0.0
      %4197 = vmatprep.subr.mxu0 0.0
      %4198 = vmatpush2.msra.mxu0 0.0
      %4199 = vmatprep.subr.mxu0 0.0
      %4200 = vmatpush2.msra.mxu0 0.0
      %4201 = vmatprep.subr.mxu0 0.0
      %4202 = vmatpush2.msra.mxu0 0.0
      %4203 = vmatprep.subr.mxu0 0.0
      %4204 = vmatpush2.msra.mxu0 0.0
      %4205 = vmatprep.subr.mxu0 0.0
      %4206 = vmatpush2.msra.mxu0 0.0
      %4207 = vmatprep.subr.mxu0 0.0
      %4208 = vmatpush2.msra.mxu0 0.0
      %4209 = vmatprep.subr.mxu0 0.0
      %4210 = vmatpush2.msra.mxu0 0.0
      %4211 = vmatprep.mubr.f32.mxu0 0.0
      %4212 = vmatmul.mubr.f32.gmra.mxu0 %v4097
      %v4213 = vpop.f32.mrf.mxu0
      %v4214 = vadd.f32 0.0, %v4213
      %v4215 = vpop.f32.mrf.mxu0
      %4216 = vmatprep.mubr.f32.mxu0 0.0
      %4217 = vmatmul.mubr.f32.gmra.mxu0 %v4100
      %v4218 = vpop.f32.mrf.mxu0
      %v4219 = vadd.f32 0.0, %v4218
      %v4220 = vpop.f32.mrf.mxu0
      %4221 = vmatprep.mubr.f32.mxu0 0.0
      %4222 = vmatmul.mubr.f32.gmra.mxu0 %v4103
      %v4223 = vpop.f32.mrf.mxu0
      %v4224 = vadd.f32 0.0, %v4223
      %v4225 = vpop.f32.mrf.mxu0
      %4226 = vmatprep.mubr.f32.mxu0 0.0
      %4227 = vmatmul.mubr.f32.gmra.mxu0 %v4106
      %v4228 = vpop.f32.mrf.mxu0
      %v4229 = vadd.f32 0.0, %v4228
      %v4230 = vpop.f32.mrf.mxu0
      %4231 = vmatprep.mubr.f32.mxu0 0.0
      %4232 = vmatmul.mubr.f32.gmra.mxu0 %v4109
      %v4233 = vpop.f32.mrf.mxu0
      %v4234 = vadd.f32 0.0, %v4233
      %v4235 = vpop.f32.mrf.mxu0
      %4236 = vmatprep.mubr.f32.mxu0 0.0
      %4237 = vmatmul.mubr.f32.gmra.mxu0 %v4112
      %v4238 = vpop.f32.mrf.mxu0
      %v4239 = vadd.f32 0.0, %v4238
      %v4240 = vpop.f32.mrf.mxu0
      %4241 = vmatprep.mubr.f32.mxu0 0.0
      %4242 = vmatmul.mubr.f32.gmra.mxu0 %v4115
      %v4243 = vpop.f32.mrf.mxu0
      %v4244 = vadd.f32 0.0, %v4243
      %v4245 = vpop.f32.mrf.mxu0
      %4246 = vmatprep.mubr.f32.mxu0 0.0
      %4247 = vmatmul.mubr.f32.gmra.mxu0 %v4118
      %v4248 = vpop.f32.mrf.mxu0
      %v4249 = vadd.f32 0.0, %v4248
      %v4250 = vpop.f32.mrf.mxu0
      %4251 = vmatprep.mubr.f32.mxu0 0.0
      %4252 = vmatmul.mubr.f32.gmra.mxu0 %v4121
      %v4253 = vpop.f32.mrf.mxu0
      %v4254 = vadd.f32 0.0, %v4253
      %v4255 = vpop.f32.mrf.mxu0
      %4256 = vmatprep.mubr.f32.mxu0 0.0
      %4257 = vmatmul.mubr.f32.gmra.mxu0 %v4124
      %v4258 = vpop.f32.mrf.mxu0
      %v4259 = vadd.f32 0.0, %v4258
      %v4260 = vpop.f32.mrf.mxu0
      %4261 = vmatprep.mubr.f32.mxu0 0.0
      %4262 = vmatmul.mubr.f32.gmra.mxu0 %v4127
      %v4263 = vpop.f32.mrf.mxu0
      %v4264 = vadd.f32 0.0, %v4263
      %v4265 = vpop.f32.mrf.mxu0
      %4266 = vmatprep.mubr.f32.mxu0 0.0
      %4267 = vmatmul.mubr.f32.gmra.mxu0 %v4130
      %v4268 = vpop.f32.mrf.mxu0
      %v4269 = vadd.f32 0.0, %v4268
      %v4270 = vpop.f32.mrf.mxu0
      %4271 = vmatprep.mubr.f32.mxu0 0.0
      %4272 = vmatmul.mubr.f32.gmra.mxu0 %v4133
      %v4273 = vpop.f32.mrf.mxu0
      %v4274 = vadd.f32 0.0, %v4273
      %v4275 = vpop.f32.mrf.mxu0
      %4276 = vmatprep.mubr.f32.mxu0 0.0
      %4277 = vmatmul.mubr.f32.gmra.mxu0 %v4136
      %v4278 = vpop.f32.mrf.mxu0
      %v4279 = vadd.f32 0.0, %v4278
      %v4280 = vpop.f32.mrf.mxu0
      %4281 = vmatprep.mubr.f32.mxu0 0.0
      %4282 = vmatmul.mubr.f32.gmra.mxu0 %v4139
      %v4283 = vpop.f32.mrf.mxu0
      %v4284 = vadd.f32 0.0, %v4283
      %v4285 = vpop.f32.mrf.mxu0
      %4286 = vmatprep.mubr.f32.mxu0 0.0
      %4287 = vmatmul.mubr.f32.gmra.mxu0 %v4142
      %v4288 = vpop.f32.mrf.mxu0
      %v4289 = vadd.f32 0.0, %v4288
      %v4290 = vpop.f32.mrf.mxu0
      %4291 = vdwg.mxu0
      %v4292 = vadd.f32 %v4062, %v4214
      %v4293 = vadd.f32 %v4063, %v4219
      %v4294 = vadd.f32 %v4064, %v4224
      %v4295 = vadd.f32 %v4065, %v4229
      %v4296 = vadd.f32 %v4066, %v4234
      %v4297 = vadd.f32 %v4067, %v4239
      %v4298 = vadd.f32 %v4068, %v4244
      %v4299 = vadd.f32 %v4069, %v4249
      %v4300 = vadd.f32 %v4070, %v4254
      %v4301 = vadd.f32 %v4071, %v4259
      %v4302 = vadd.f32 %v4072, %v4264
      %v4303 = vadd.f32 %v4073, %v4269
      %v4304 = vadd.f32 %v4074, %v4274
      %v4305 = vadd.f32 %v4075, %v4279
      %v4306 = vadd.f32 %v4076, %v4284
      %v4307 = vadd.f32 %v4077, %v4289
      %s4308 = scalar_lea.vmem [#allocation3], 48
      %v4309 = vld [vmem:[%s4308] sm:$0xff]
      %v4310 = vld [vmem:[%s4308 + $0x8] sm:$0xff]
      %v4311 = vld [vmem:[%s4308 + $0x18] sm:$0xff]
      %v4312 = vld [vmem:[%s4308 + $0x20] sm:$0xff]
      %v4313 = vld [vmem:[%s4308 + $0x30] sm:$0xff]
      %v4314 = vld [vmem:[%s4308 + $0x38] sm:$0xff]
      %v4315 = vld [vmem:[%s4308 + $0x48] sm:$0xff]
      %v4316 = vld [vmem:[%s4308 + $0x50] sm:$0xff]
      %v4317 = vld [vmem:[%s4308 + $0x60] sm:$0xff]
      %v4318 = vld [vmem:[%s4308 + $0x68] sm:$0xff]
      %v4319 = vld [vmem:[%s4308 + $0x78] sm:$0xff]
      %v4320 = vld [vmem:[%s4308 + $0x80] sm:$0xff]
      %v4321 = vld [vmem:[%s4308 + $0x90] sm:$0xff]
      %v4322 = vld [vmem:[%s4308 + $0x98] sm:$0xff]
      %v4323 = vld [vmem:[%s4308 + $0xa8] sm:$0xff]
      %v4324 = vld [vmem:[%s4308 + $0xb0] sm:$0xff]
      %s4325 = scalar_lea.vmem %s5, 12
      %v4326 = vld [vmem:[%s4325] sm:$0x3]
      %v4328 = vsel %vm2938, %v4309, 0
      %v4331 = vsel %vm2938, %v4310, 0
      %v4334 = vsel %vm2938, %v4311, 0
      %v4337 = vsel %vm2938, %v4312, 0
      %v4340 = vsel %vm2938, %v4313, 0
      %v4343 = vsel %vm2938, %v4314, 0
      %v4346 = vsel %vm2938, %v4315, 0
      %v4349 = vsel %vm2938, %v4316, 0
      %v4352 = vsel %vm2938, %v4317, 0
      %v4355 = vsel %vm2938, %v4318, 0
      %v4358 = vsel %vm2938, %v4319, 0
      %v4361 = vsel %vm2938, %v4320, 0
      %v4364 = vsel %vm2938, %v4321, 0
      %v4367 = vsel %vm2938, %v4322, 0
      %v4370 = vsel %vm2938, %v4323, 0
      %v4373 = vsel %vm2938, %v4324, 0
      %v4376 = vsel %vm3042, %v4326, 0
      %4378 = vmatprep.subr.mxu0 0.0
      %4379 = vmatpush1.msra.mxu0 0.0
      %4380 = vmatprep.subr.mxu0 0.0
      %4381 = vmatpush1.msra.mxu0 0.0
      %4382 = vmatprep.subr.mxu0 0.0
      %4383 = vmatpush1.msra.mxu0 0.0
      %4384 = vmatprep.subr.mxu0 0.0
      %4385 = vmatpush1.msra.mxu0 0.0
      %4386 = vmatprep.subr.mxu0 0.0
      %4387 = vmatpush1.msra.mxu0 0.0
      %4388 = vmatprep.subr.mxu0 0.0
      %4389 = vmatpush1.msra.mxu0 0.0
      %4390 = vmatprep.subr.mxu0 0.0
      %4391 = vmatpush1.msra.mxu0 0.0
      %4392 = vmatprep.subr.mxu0 0.0
      %4393 = vmatpush1.msra.mxu0 0.0
      %4394 = vmatprep.subr.mxu0 0.0
      %4395 = vmatpush1.msra.mxu0 0.0
      %4396 = vmatprep.subr.mxu0 0.0
      %4397 = vmatpush1.msra.mxu0 0.0
      %4398 = vmatprep.subr.mxu0 0.0
      %4399 = vmatpush1.msra.mxu0 0.0
      %4400 = vmatprep.subr.mxu0 0.0
      %4401 = vmatpush1.msra.mxu0 0.0
      %4402 = vmatprep.subr.mxu0 0.0
      %4403 = vmatpush1.msra.mxu0 0.0
      %4404 = vmatprep.subr.mxu0 0.0
      %4405 = vmatpush1.msra.mxu0 0.0
      %4406 = vmatprep.subr.mxu0 0.0
      %4407 = vmatpush1.msra.mxu0 0.0
      %4408 = vmatprep.subr.mxu0 0.0
      %4409 = vmatpush1.msra.mxu0 %v4376
      %4410 = vmatprep.subr.mxu0 0.0
      %4411 = vmatpush2.msra.mxu0 0.0
      %4412 = vmatprep.subr.mxu0 0.0
      %4413 = vmatpush2.msra.mxu0 0.0
      %4414 = vmatprep.subr.mxu0 0.0
      %4415 = vmatpush2.msra.mxu0 0.0
      %4416 = vmatprep.subr.mxu0 0.0
      %4417 = vmatpush2.msra.mxu0 0.0
      %4418 = vmatprep.subr.mxu0 0.0
      %4419 = vmatpush2.msra.mxu0 0.0
      %4420 = vmatprep.subr.mxu0 0.0
      %4421 = vmatpush2.msra.mxu0 0.0
      %4422 = vmatprep.subr.mxu0 0.0
      %4423 = vmatpush2.msra.mxu0 0.0
      %4424 = vmatprep.subr.mxu0 0.0
      %4425 = vmatpush2.msra.mxu0 0.0
      %4426 = vmatprep.subr.mxu0 0.0
      %4427 = vmatpush2.msra.mxu0 0.0
      %4428 = vmatprep.subr.mxu0 0.0
      %4429 = vmatpush2.msra.mxu0 0.0
      %4430 = vmatprep.subr.mxu0 0.0
      %4431 = vmatpush2.msra.mxu0 0.0
      %4432 = vmatprep.subr.mxu0 0.0
      %4433 = vmatpush2.msra.mxu0 0.0
      %4434 = vmatprep.subr.mxu0 0.0
      %4435 = vmatpush2.msra.mxu0 0.0
      %4436 = vmatprep.subr.mxu0 0.0
      %4437 = vmatpush2.msra.mxu0 0.0
      %4438 = vmatprep.subr.mxu0 0.0
      %4439 = vmatpush2.msra.mxu0 0.0
      %4440 = vmatprep.subr.mxu0 0.0
      %4441 = vmatpush2.msra.mxu0 0.0
      %4442 = vmatprep.mubr.f32.mxu0 0.0
      %4443 = vmatmul.mubr.f32.gmra.mxu0 %v4328
      %v4444 = vpop.f32.mrf.mxu0
      %v4445 = vadd.f32 0.0, %v4444
      %v4446 = vpop.f32.mrf.mxu0
      %4447 = vmatprep.mubr.f32.mxu0 0.0
      %4448 = vmatmul.mubr.f32.gmra.mxu0 %v4331
      %v4449 = vpop.f32.mrf.mxu0
      %v4450 = vadd.f32 0.0, %v4449
      %v4451 = vpop.f32.mrf.mxu0
      %4452 = vmatprep.mubr.f32.mxu0 0.0
      %4453 = vmatmul.mubr.f32.gmra.mxu0 %v4334
      %v4454 = vpop.f32.mrf.mxu0
      %v4455 = vadd.f32 0.0, %v4454
      %v4456 = vpop.f32.mrf.mxu0
      %4457 = vmatprep.mubr.f32.mxu0 0.0
      %4458 = vmatmul.mubr.f32.gmra.mxu0 %v4337
      %v4459 = vpop.f32.mrf.mxu0
      %v4460 = vadd.f32 0.0, %v4459
      %v4461 = vpop.f32.mrf.mxu0
      %4462 = vmatprep.mubr.f32.mxu0 0.0
      %4463 = vmatmul.mubr.f32.gmra.mxu0 %v4340
      %v4464 = vpop.f32.mrf.mxu0
      %v4465 = vadd.f32 0.0, %v4464
      %v4466 = vpop.f32.mrf.mxu0
      %4467 = vmatprep.mubr.f32.mxu0 0.0
      %4468 = vmatmul.mubr.f32.gmra.mxu0 %v4343
      %v4469 = vpop.f32.mrf.mxu0
      %v4470 = vadd.f32 0.0, %v4469
      %v4471 = vpop.f32.mrf.mxu0
      %4472 = vmatprep.mubr.f32.mxu0 0.0
      %4473 = vmatmul.mubr.f32.gmra.mxu0 %v4346
      %v4474 = vpop.f32.mrf.mxu0
      %v4475 = vadd.f32 0.0, %v4474
      %v4476 = vpop.f32.mrf.mxu0
      %4477 = vmatprep.mubr.f32.mxu0 0.0
      %4478 = vmatmul.mubr.f32.gmra.mxu0 %v4349
      %v4479 = vpop.f32.mrf.mxu0
      %v4480 = vadd.f32 0.0, %v4479
      %v4481 = vpop.f32.mrf.mxu0
      %4482 = vmatprep.mubr.f32.mxu0 0.0
      %4483 = vmatmul.mubr.f32.gmra.mxu0 %v4352
      %v4484 = vpop.f32.mrf.mxu0
      %v4485 = vadd.f32 0.0, %v4484
      %v4486 = vpop.f32.mrf.mxu0
      %4487 = vmatprep.mubr.f32.mxu0 0.0
      %4488 = vmatmul.mubr.f32.gmra.mxu0 %v4355
      %v4489 = vpop.f32.mrf.mxu0
      %v4490 = vadd.f32 0.0, %v4489
      %v4491 = vpop.f32.mrf.mxu0
      %4492 = vmatprep.mubr.f32.mxu0 0.0
      %4493 = vmatmul.mubr.f32.gmra.mxu0 %v4358
      %v4494 = vpop.f32.mrf.mxu0
      %v4495 = vadd.f32 0.0, %v4494
      %v4496 = vpop.f32.mrf.mxu0
      %4497 = vmatprep.mubr.f32.mxu0 0.0
      %4498 = vmatmul.mubr.f32.gmra.mxu0 %v4361
      %v4499 = vpop.f32.mrf.mxu0
      %v4500 = vadd.f32 0.0, %v4499
      %v4501 = vpop.f32.mrf.mxu0
      %4502 = vmatprep.mubr.f32.mxu0 0.0
      %4503 = vmatmul.mubr.f32.gmra.mxu0 %v4364
      %v4504 = vpop.f32.mrf.mxu0
      %v4505 = vadd.f32 0.0, %v4504
      %v4506 = vpop.f32.mrf.mxu0
      %4507 = vmatprep.mubr.f32.mxu0 0.0
      %4508 = vmatmul.mubr.f32.gmra.mxu0 %v4367
      %v4509 = vpop.f32.mrf.mxu0
      %v4510 = vadd.f32 0.0, %v4509
      %v4511 = vpop.f32.mrf.mxu0
      %4512 = vmatprep.mubr.f32.mxu0 0.0
      %4513 = vmatmul.mubr.f32.gmra.mxu0 %v4370
      %v4514 = vpop.f32.mrf.mxu0
      %v4515 = vadd.f32 0.0, %v4514
      %v4516 = vpop.f32.mrf.mxu0
      %4517 = vmatprep.mubr.f32.mxu0 0.0
      %4518 = vmatmul.mubr.f32.gmra.mxu0 %v4373
      %v4519 = vpop.f32.mrf.mxu0
      %v4520 = vadd.f32 0.0, %v4519
      %v4521 = vpop.f32.mrf.mxu0
      %4522 = vdwg.mxu0
      %v4523 = vadd.f32 %v4292, %v4445
      %v4524 = vadd.f32 %v4293, %v4450
      %v4525 = vadd.f32 %v4294, %v4455
      %v4526 = vadd.f32 %v4295, %v4460
      %v4527 = vadd.f32 %v4296, %v4465
      %v4528 = vadd.f32 %v4297, %v4470
      %v4529 = vadd.f32 %v4298, %v4475
      %v4530 = vadd.f32 %v4299, %v4480
      %v4531 = vadd.f32 %v4300, %v4485
      %v4532 = vadd.f32 %v4301, %v4490
      %v4533 = vadd.f32 %v4302, %v4495
      %v4534 = vadd.f32 %v4303, %v4500
      %v4535 = vadd.f32 %v4304, %v4505
      %v4536 = vadd.f32 %v4305, %v4510
      %v4537 = vadd.f32 %v4306, %v4515
      %v4538 = vadd.f32 %v4307, %v4520
      %v4539 = vld [vmem:[%s4308 + $0x1] sm:$0xff]
      %v4540 = vld [vmem:[%s4308 + $0x9] sm:$0xff]
      %v4541 = vld [vmem:[%s4308 + $0x19] sm:$0xff]
      %v4542 = vld [vmem:[%s4308 + $0x21] sm:$0xff]
      %v4543 = vld [vmem:[%s4308 + $0x31] sm:$0xff]
      %v4544 = vld [vmem:[%s4308 + $0x39] sm:$0xff]
      %v4545 = vld [vmem:[%s4308 + $0x49] sm:$0xff]
      %v4546 = vld [vmem:[%s4308 + $0x51] sm:$0xff]
      %v4547 = vld [vmem:[%s4308 + $0x61] sm:$0xff]
      %v4548 = vld [vmem:[%s4308 + $0x69] sm:$0xff]
      %v4549 = vld [vmem:[%s4308 + $0x79] sm:$0xff]
      %v4550 = vld [vmem:[%s4308 + $0x81] sm:$0xff]
      %v4551 = vld [vmem:[%s4308 + $0x91] sm:$0xff]
      %v4552 = vld [vmem:[%s4308 + $0x99] sm:$0xff]
      %v4553 = vld [vmem:[%s4308 + $0xa9] sm:$0xff]
      %v4554 = vld [vmem:[%s4308 + $0xb1] sm:$0xff]
      %s4555 = scalar_lea.vmem %s5, 14
      %v4556 = vld [vmem:[%s4555] sm:$0x3]
      %v4558 = vsel %vm2938, %v4539, 0
      %v4561 = vsel %vm2938, %v4540, 0
      %v4564 = vsel %vm2938, %v4541, 0
      %v4567 = vsel %vm2938, %v4542, 0
      %v4570 = vsel %vm2938, %v4543, 0
      %v4573 = vsel %vm2938, %v4544, 0
      %v4576 = vsel %vm2938, %v4545, 0
      %v4579 = vsel %vm2938, %v4546, 0
      %v4582 = vsel %vm2938, %v4547, 0
      %v4585 = vsel %vm2938, %v4548, 0
      %v4588 = vsel %vm2938, %v4549, 0
      %v4591 = vsel %vm2938, %v4550, 0
      %v4594 = vsel %vm2938, %v4551, 0
      %v4597 = vsel %vm2938, %v4552, 0
      %v4600 = vsel %vm2938, %v4553, 0
      %v4603 = vsel %vm2938, %v4554, 0
      %v4606 = vsel %vm3042, %v4556, 0
      %4608 = vmatprep.subr.mxu0 0.0
      %4609 = vmatpush1.msra.mxu0 0.0
      %4610 = vmatprep.subr.mxu0 0.0
      %4611 = vmatpush1.msra.mxu0 0.0
      %4612 = vmatprep.subr.mxu0 0.0
      %4613 = vmatpush1.msra.mxu0 0.0
      %4614 = vmatprep.subr.mxu0 0.0
      %4615 = vmatpush1.msra.mxu0 0.0
      %4616 = vmatprep.subr.mxu0 0.0
      %4617 = vmatpush1.msra.mxu0 0.0
      %4618 = vmatprep.subr.mxu0 0.0
      %4619 = vmatpush1.msra.mxu0 0.0
      %4620 = vmatprep.subr.mxu0 0.0
      %4621 = vmatpush1.msra.mxu0 0.0
      %4622 = vmatprep.subr.mxu0 0.0
      %4623 = vmatpush1.msra.mxu0 0.0
      %4624 = vmatprep.subr.mxu0 0.0
      %4625 = vmatpush1.msra.mxu0 0.0
      %4626 = vmatprep.subr.mxu0 0.0
      %4627 = vmatpush1.msra.mxu0 0.0
      %4628 = vmatprep.subr.mxu0 0.0
      %4629 = vmatpush1.msra.mxu0 0.0
      %4630 = vmatprep.subr.mxu0 0.0
      %4631 = vmatpush1.msra.mxu0 0.0
      %4632 = vmatprep.subr.mxu0 0.0
      %4633 = vmatpush1.msra.mxu0 0.0
      %4634 = vmatprep.subr.mxu0 0.0
      %4635 = vmatpush1.msra.mxu0 0.0
      %4636 = vmatprep.subr.mxu0 0.0
      %4637 = vmatpush1.msra.mxu0 0.0
      %4638 = vmatprep.subr.mxu0 0.0
      %4639 = vmatpush1.msra.mxu0 %v4606
      %4640 = vmatprep.subr.mxu0 0.0
      %4641 = vmatpush2.msra.mxu0 0.0
      %4642 = vmatprep.subr.mxu0 0.0
      %4643 = vmatpush2.msra.mxu0 0.0
      %4644 = vmatprep.subr.mxu0 0.0
      %4645 = vmatpush2.msra.mxu0 0.0
      %4646 = vmatprep.subr.mxu0 0.0
      %4647 = vmatpush2.msra.mxu0 0.0
      %4648 = vmatprep.subr.mxu0 0.0
      %4649 = vmatpush2.msra.mxu0 0.0
      %4650 = vmatprep.subr.mxu0 0.0
      %4651 = vmatpush2.msra.mxu0 0.0
      %4652 = vmatprep.subr.mxu0 0.0
      %4653 = vmatpush2.msra.mxu0 0.0
      %4654 = vmatprep.subr.mxu0 0.0
      %4655 = vmatpush2.msra.mxu0 0.0
      %4656 = vmatprep.subr.mxu0 0.0
      %4657 = vmatpush2.msra.mxu0 0.0
      %4658 = vmatprep.subr.mxu0 0.0
      %4659 = vmatpush2.msra.mxu0 0.0
      %4660 = vmatprep.subr.mxu0 0.0
      %4661 = vmatpush2.msra.mxu0 0.0
      %4662 = vmatprep.subr.mxu0 0.0
      %4663 = vmatpush2.msra.mxu0 0.0
      %4664 = vmatprep.subr.mxu0 0.0
      %4665 = vmatpush2.msra.mxu0 0.0
      %4666 = vmatprep.subr.mxu0 0.0
      %4667 = vmatpush2.msra.mxu0 0.0
      %4668 = vmatprep.subr.mxu0 0.0
      %4669 = vmatpush2.msra.mxu0 0.0
      %4670 = vmatprep.subr.mxu0 0.0
      %4671 = vmatpush2.msra.mxu0 0.0
      %4672 = vmatprep.mubr.f32.mxu0 0.0
      %4673 = vmatmul.mubr.f32.gmra.mxu0 %v4558
      %v4674 = vpop.f32.mrf.mxu0
      %v4675 = vadd.f32 0.0, %v4674
      %v4676 = vpop.f32.mrf.mxu0
      %4677 = vmatprep.mubr.f32.mxu0 0.0
      %4678 = vmatmul.mubr.f32.gmra.mxu0 %v4561
      %v4679 = vpop.f32.mrf.mxu0
      %v4680 = vadd.f32 0.0, %v4679
      %v4681 = vpop.f32.mrf.mxu0
      %4682 = vmatprep.mubr.f32.mxu0 0.0
      %4683 = vmatmul.mubr.f32.gmra.mxu0 %v4564
      %v4684 = vpop.f32.mrf.mxu0
      %v4685 = vadd.f32 0.0, %v4684
      %v4686 = vpop.f32.mrf.mxu0
      %4687 = vmatprep.mubr.f32.mxu0 0.0
      %4688 = vmatmul.mubr.f32.gmra.mxu0 %v4567
      %v4689 = vpop.f32.mrf.mxu0
      %v4690 = vadd.f32 0.0, %v4689
      %v4691 = vpop.f32.mrf.mxu0
      %4692 = vmatprep.mubr.f32.mxu0 0.0
      %4693 = vmatmul.mubr.f32.gmra.mxu0 %v4570
      %v4694 = vpop.f32.mrf.mxu0
      %v4695 = vadd.f32 0.0, %v4694
      %v4696 = vpop.f32.mrf.mxu0
      %4697 = vmatprep.mubr.f32.mxu0 0.0
      %4698 = vmatmul.mubr.f32.gmra.mxu0 %v4573
      %v4699 = vpop.f32.mrf.mxu0
      %v4700 = vadd.f32 0.0, %v4699
      %v4701 = vpop.f32.mrf.mxu0
      %4702 = vmatprep.mubr.f32.mxu0 0.0
      %4703 = vmatmul.mubr.f32.gmra.mxu0 %v4576
      %v4704 = vpop.f32.mrf.mxu0
      %v4705 = vadd.f32 0.0, %v4704
      %v4706 = vpop.f32.mrf.mxu0
      %4707 = vmatprep.mubr.f32.mxu0 0.0
      %4708 = vmatmul.mubr.f32.gmra.mxu0 %v4579
      %v4709 = vpop.f32.mrf.mxu0
      %v4710 = vadd.f32 0.0, %v4709
      %v4711 = vpop.f32.mrf.mxu0
      %4712 = vmatprep.mubr.f32.mxu0 0.0
      %4713 = vmatmul.mubr.f32.gmra.mxu0 %v4582
      %v4714 = vpop.f32.mrf.mxu0
      %v4715 = vadd.f32 0.0, %v4714
      %v4716 = vpop.f32.mrf.mxu0
      %4717 = vmatprep.mubr.f32.mxu0 0.0
      %4718 = vmatmul.mubr.f32.gmra.mxu0 %v4585
      %v4719 = vpop.f32.mrf.mxu0
      %v4720 = vadd.f32 0.0, %v4719
      %v4721 = vpop.f32.mrf.mxu0
      %4722 = vmatprep.mubr.f32.mxu0 0.0
      %4723 = vmatmul.mubr.f32.gmra.mxu0 %v4588
      %v4724 = vpop.f32.mrf.mxu0
      %v4725 = vadd.f32 0.0, %v4724
      %v4726 = vpop.f32.mrf.mxu0
      %4727 = vmatprep.mubr.f32.mxu0 0.0
      %4728 = vmatmul.mubr.f32.gmra.mxu0 %v4591
      %v4729 = vpop.f32.mrf.mxu0
      %v4730 = vadd.f32 0.0, %v4729
      %v4731 = vpop.f32.mrf.mxu0
      %4732 = vmatprep.mubr.f32.mxu0 0.0
      %4733 = vmatmul.mubr.f32.gmra.mxu0 %v4594
      %v4734 = vpop.f32.mrf.mxu0
      %v4735 = vadd.f32 0.0, %v4734
      %v4736 = vpop.f32.mrf.mxu0
      %4737 = vmatprep.mubr.f32.mxu0 0.0
      %4738 = vmatmul.mubr.f32.gmra.mxu0 %v4597
      %v4739 = vpop.f32.mrf.mxu0
      %v4740 = vadd.f32 0.0, %v4739
      %v4741 = vpop.f32.mrf.mxu0
      %4742 = vmatprep.mubr.f32.mxu0 0.0
      %4743 = vmatmul.mubr.f32.gmra.mxu0 %v4600
      %v4744 = vpop.f32.mrf.mxu0
      %v4745 = vadd.f32 0.0, %v4744
      %v4746 = vpop.f32.mrf.mxu0
      %4747 = vmatprep.mubr.f32.mxu0 0.0
      %4748 = vmatmul.mubr.f32.gmra.mxu0 %v4603
      %v4749 = vpop.f32.mrf.mxu0
      %v4750 = vadd.f32 0.0, %v4749
      %v4751 = vpop.f32.mrf.mxu0
      %4752 = vdwg.mxu0
      %v4753 = vadd.f32 %v4523, %v4675
      %v4754 = vadd.f32 %v4524, %v4680
      %v4755 = vadd.f32 %v4525, %v4685
      %v4756 = vadd.f32 %v4526, %v4690
      %v4757 = vadd.f32 %v4527, %v4695
      %v4758 = vadd.f32 %v4528, %v4700
      %v4759 = vadd.f32 %v4529, %v4705
      %v4760 = vadd.f32 %v4530, %v4710
      %v4761 = vadd.f32 %v4531, %v4715
      %v4762 = vadd.f32 %v4532, %v4720
      %v4763 = vadd.f32 %v4533, %v4725
      %v4764 = vadd.f32 %v4534, %v4730
      %v4765 = vadd.f32 %v4535, %v4735
      %v4766 = vadd.f32 %v4536, %v4740
      %v4767 = vadd.f32 %v4537, %v4745
      %v4768 = vadd.f32 %v4538, %v4750
      %v4769 = vld [vmem:[%s4308 + $0x2] sm:$0xff]
      %v4770 = vld [vmem:[%s4308 + $0xa] sm:$0xff]
      %v4771 = vld [vmem:[%s4308 + $0x1a] sm:$0xff]
      %v4772 = vld [vmem:[%s4308 + $0x22] sm:$0xff]
      %v4773 = vld [vmem:[%s4308 + $0x32] sm:$0xff]
      %v4774 = vld [vmem:[%s4308 + $0x3a] sm:$0xff]
      %v4775 = vld [vmem:[%s4308 + $0x4a] sm:$0xff]
      %v4776 = vld [vmem:[%s4308 + $0x52] sm:$0xff]
      %v4777 = vld [vmem:[%s4308 + $0x62] sm:$0xff]
      %v4778 = vld [vmem:[%s4308 + $0x6a] sm:$0xff]
      %v4779 = vld [vmem:[%s4308 + $0x7a] sm:$0xff]
      %v4780 = vld [vmem:[%s4308 + $0x82] sm:$0xff]
      %v4781 = vld [vmem:[%s4308 + $0x92] sm:$0xff]
      %v4782 = vld [vmem:[%s4308 + $0x9a] sm:$0xff]
      %v4783 = vld [vmem:[%s4308 + $0xaa] sm:$0xff]
      %v4784 = vld [vmem:[%s4308 + $0xb2] sm:$0xff]
      %s4785 = scalar_lea.vmem %s5, 16
      %v4786 = vld [vmem:[%s4785] sm:$0x3]
      %v4788 = vsel %vm2938, %v4769, 0
      %v4791 = vsel %vm2938, %v4770, 0
      %v4794 = vsel %vm2938, %v4771, 0
      %v4797 = vsel %vm2938, %v4772, 0
      %v4800 = vsel %vm2938, %v4773, 0
      %v4803 = vsel %vm2938, %v4774, 0
      %v4806 = vsel %vm2938, %v4775, 0
      %v4809 = vsel %vm2938, %v4776, 0
      %v4812 = vsel %vm2938, %v4777, 0
      %v4815 = vsel %vm2938, %v4778, 0
      %v4818 = vsel %vm2938, %v4779, 0
      %v4821 = vsel %vm2938, %v4780, 0
      %v4824 = vsel %vm2938, %v4781, 0
      %v4827 = vsel %vm2938, %v4782, 0
      %v4830 = vsel %vm2938, %v4783, 0
      %v4833 = vsel %vm2938, %v4784, 0
      %v4836 = vsel %vm3042, %v4786, 0
      %4838 = vmatprep.subr.mxu0 0.0
      %4839 = vmatpush1.msra.mxu0 0.0
      %4840 = vmatprep.subr.mxu0 0.0
      %4841 = vmatpush1.msra.mxu0 0.0
      %4842 = vmatprep.subr.mxu0 0.0
      %4843 = vmatpush1.msra.mxu0 0.0
      %4844 = vmatprep.subr.mxu0 0.0
      %4845 = vmatpush1.msra.mxu0 0.0
      %4846 = vmatprep.subr.mxu0 0.0
      %4847 = vmatpush1.msra.mxu0 0.0
      %4848 = vmatprep.subr.mxu0 0.0
      %4849 = vmatpush1.msra.mxu0 0.0
      %4850 = vmatprep.subr.mxu0 0.0
      %4851 = vmatpush1.msra.mxu0 0.0
      %4852 = vmatprep.subr.mxu0 0.0
      %4853 = vmatpush1.msra.mxu0 0.0
      %4854 = vmatprep.subr.mxu0 0.0
      %4855 = vmatpush1.msra.mxu0 0.0
      %4856 = vmatprep.subr.mxu0 0.0
      %4857 = vmatpush1.msra.mxu0 0.0
      %4858 = vmatprep.subr.mxu0 0.0
      %4859 = vmatpush1.msra.mxu0 0.0
      %4860 = vmatprep.subr.mxu0 0.0
      %4861 = vmatpush1.msra.mxu0 0.0
      %4862 = vmatprep.subr.mxu0 0.0
      %4863 = vmatpush1.msra.mxu0 0.0
      %4864 = vmatprep.subr.mxu0 0.0
      %4865 = vmatpush1.msra.mxu0 0.0
      %4866 = vmatprep.subr.mxu0 0.0
      %4867 = vmatpush1.msra.mxu0 0.0
      %4868 = vmatprep.subr.mxu0 0.0
      %4869 = vmatpush1.msra.mxu0 %v4836
      %4870 = vmatprep.subr.mxu0 0.0
      %4871 = vmatpush2.msra.mxu0 0.0
      %4872 = vmatprep.subr.mxu0 0.0
      %4873 = vmatpush2.msra.mxu0 0.0
      %4874 = vmatprep.subr.mxu0 0.0
      %4875 = vmatpush2.msra.mxu0 0.0
      %4876 = vmatprep.subr.mxu0 0.0
      %4877 = vmatpush2.msra.mxu0 0.0
      %4878 = vmatprep.subr.mxu0 0.0
      %4879 = vmatpush2.msra.mxu0 0.0
      %4880 = vmatprep.subr.mxu0 0.0
      %4881 = vmatpush2.msra.mxu0 0.0
      %4882 = vmatprep.subr.mxu0 0.0
      %4883 = vmatpush2.msra.mxu0 0.0
      %4884 = vmatprep.subr.mxu0 0.0
      %4885 = vmatpush2.msra.mxu0 0.0
      %4886 = vmatprep.subr.mxu0 0.0
      %4887 = vmatpush2.msra.mxu0 0.0
      %4888 = vmatprep.subr.mxu0 0.0
      %4889 = vmatpush2.msra.mxu0 0.0
      %4890 = vmatprep.subr.mxu0 0.0
      %4891 = vmatpush2.msra.mxu0 0.0
      %4892 = vmatprep.subr.mxu0 0.0
      %4893 = vmatpush2.msra.mxu0 0.0
      %4894 = vmatprep.subr.mxu0 0.0
      %4895 = vmatpush2.msra.mxu0 0.0
      %4896 = vmatprep.subr.mxu0 0.0
      %4897 = vmatpush2.msra.mxu0 0.0
      %4898 = vmatprep.subr.mxu0 0.0
      %4899 = vmatpush2.msra.mxu0 0.0
      %4900 = vmatprep.subr.mxu0 0.0
      %4901 = vmatpush2.msra.mxu0 0.0
      %4902 = vmatprep.mubr.f32.mxu0 0.0
      %4903 = vmatmul.mubr.f32.gmra.mxu0 %v4788
      %v4904 = vpop.f32.mrf.mxu0
      %v4905 = vadd.f32 0.0, %v4904
      %v4906 = vpop.f32.mrf.mxu0
      %4907 = vmatprep.mubr.f32.mxu0 0.0
      %4908 = vmatmul.mubr.f32.gmra.mxu0 %v4791
      %v4909 = vpop.f32.mrf.mxu0
      %v4910 = vadd.f32 0.0, %v4909
      %v4911 = vpop.f32.mrf.mxu0
      %4912 = vmatprep.mubr.f32.mxu0 0.0
      %4913 = vmatmul.mubr.f32.gmra.mxu0 %v4794
      %v4914 = vpop.f32.mrf.mxu0
      %v4915 = vadd.f32 0.0, %v4914
      %v4916 = vpop.f32.mrf.mxu0
      %4917 = vmatprep.mubr.f32.mxu0 0.0
      %4918 = vmatmul.mubr.f32.gmra.mxu0 %v4797
      %v4919 = vpop.f32.mrf.mxu0
      %v4920 = vadd.f32 0.0, %v4919
      %v4921 = vpop.f32.mrf.mxu0
      %4922 = vmatprep.mubr.f32.mxu0 0.0
      %4923 = vmatmul.mubr.f32.gmra.mxu0 %v4800
      %v4924 = vpop.f32.mrf.mxu0
      %v4925 = vadd.f32 0.0, %v4924
      %v4926 = vpop.f32.mrf.mxu0
      %4927 = vmatprep.mubr.f32.mxu0 0.0
      %4928 = vmatmul.mubr.f32.gmra.mxu0 %v4803
      %v4929 = vpop.f32.mrf.mxu0
      %v4930 = vadd.f32 0.0, %v4929
      %v4931 = vpop.f32.mrf.mxu0
      %4932 = vmatprep.mubr.f32.mxu0 0.0
      %4933 = vmatmul.mubr.f32.gmra.mxu0 %v4806
      %v4934 = vpop.f32.mrf.mxu0
      %v4935 = vadd.f32 0.0, %v4934
      %v4936 = vpop.f32.mrf.mxu0
      %4937 = vmatprep.mubr.f32.mxu0 0.0
      %4938 = vmatmul.mubr.f32.gmra.mxu0 %v4809
      %v4939 = vpop.f32.mrf.mxu0
      %v4940 = vadd.f32 0.0, %v4939
      %v4941 = vpop.f32.mrf.mxu0
      %4942 = vmatprep.mubr.f32.mxu0 0.0
      %4943 = vmatmul.mubr.f32.gmra.mxu0 %v4812
      %v4944 = vpop.f32.mrf.mxu0
      %v4945 = vadd.f32 0.0, %v4944
      %v4946 = vpop.f32.mrf.mxu0
      %4947 = vmatprep.mubr.f32.mxu0 0.0
      %4948 = vmatmul.mubr.f32.gmra.mxu0 %v4815
      %v4949 = vpop.f32.mrf.mxu0
      %v4950 = vadd.f32 0.0, %v4949
      %v4951 = vpop.f32.mrf.mxu0
      %4952 = vmatprep.mubr.f32.mxu0 0.0
      %4953 = vmatmul.mubr.f32.gmra.mxu0 %v4818
      %v4954 = vpop.f32.mrf.mxu0
      %v4955 = vadd.f32 0.0, %v4954
      %v4956 = vpop.f32.mrf.mxu0
      %4957 = vmatprep.mubr.f32.mxu0 0.0
      %4958 = vmatmul.mubr.f32.gmra.mxu0 %v4821
      %v4959 = vpop.f32.mrf.mxu0
      %v4960 = vadd.f32 0.0, %v4959
      %v4961 = vpop.f32.mrf.mxu0
      %4962 = vmatprep.mubr.f32.mxu0 0.0
      %4963 = vmatmul.mubr.f32.gmra.mxu0 %v4824
      %v4964 = vpop.f32.mrf.mxu0
      %v4965 = vadd.f32 0.0, %v4964
      %v4966 = vpop.f32.mrf.mxu0
      %4967 = vmatprep.mubr.f32.mxu0 0.0
      %4968 = vmatmul.mubr.f32.gmra.mxu0 %v4827
      %v4969 = vpop.f32.mrf.mxu0
      %v4970 = vadd.f32 0.0, %v4969
      %v4971 = vpop.f32.mrf.mxu0
      %4972 = vmatprep.mubr.f32.mxu0 0.0
      %4973 = vmatmul.mubr.f32.gmra.mxu0 %v4830
      %v4974 = vpop.f32.mrf.mxu0
      %v4975 = vadd.f32 0.0, %v4974
      %v4976 = vpop.f32.mrf.mxu0
      %4977 = vmatprep.mubr.f32.mxu0 0.0
      %4978 = vmatmul.mubr.f32.gmra.mxu0 %v4833
      %v4979 = vpop.f32.mrf.mxu0
      %v4980 = vadd.f32 0.0, %v4979
      %v4981 = vpop.f32.mrf.mxu0
      %4982 = vdwg.mxu0
      %v4983 = vadd.f32 %v4753, %v4905
      %v4984 = vadd.f32 %v4754, %v4910
      %v4985 = vadd.f32 %v4755, %v4915
      %v4986 = vadd.f32 %v4756, %v4920
      %v4987 = vadd.f32 %v4757, %v4925
      %v4988 = vadd.f32 %v4758, %v4930
      %v4989 = vadd.f32 %v4759, %v4935
      %v4990 = vadd.f32 %v4760, %v4940
      %v4991 = vadd.f32 %v4761, %v4945
      %v4992 = vadd.f32 %v4762, %v4950
      %v4993 = vadd.f32 %v4763, %v4955
      %v4994 = vadd.f32 %v4764, %v4960
      %v4995 = vadd.f32 %v4765, %v4965
      %v4996 = vadd.f32 %v4766, %v4970
      %v4997 = vadd.f32 %v4767, %v4975
      %v4998 = vadd.f32 %v4768, %v4980
      %v4999 = vld [vmem:[%s6] sm:$0x1]
      %v5001 = vlaneseq
      %v5002 = vshrl.u32 %v5001, 7
      %v5003 = vsub.s32 0, %v5002
      %v5004 = vrot.slane %v4999, %v5003
      %v5006 = vadd.f32 %v4983, %v5004
      %v5007 = vadd.f32 %v4984, %v5004
      %v5008 = vadd.f32 %v4985, %v5004
      %v5009 = vadd.f32 %v4986, %v5004
      %v5010 = vadd.f32 %v4987, %v5004
      %v5011 = vadd.f32 %v4988, %v5004
      %v5012 = vadd.f32 %v4989, %v5004
      %v5013 = vadd.f32 %v4990, %v5004
      %v5014 = vadd.f32 %v4991, %v5004
      %v5015 = vadd.f32 %v4992, %v5004
      %v5016 = vadd.f32 %v4993, %v5004
      %v5017 = vadd.f32 %v4994, %v5004
      %v5018 = vadd.f32 %v4995, %v5004
      %v5019 = vadd.f32 %v4996, %v5004
      %v5020 = vadd.f32 %v4997, %v5004
      %v5021 = vadd.f32 %v4998, %v5004
      %v5022 = vmax.f32 %v5006, 0.0
      %v5023 = vmax.f32 %v5007, 0.0
      %v5024 = vmax.f32 %v5008, 0.0
      %v5025 = vmax.f32 %v5009, 0.0
      %v5026 = vmax.f32 %v5010, 0.0
      %v5027 = vmax.f32 %v5011, 0.0
      %v5028 = vmax.f32 %v5012, 0.0
      %v5029 = vmax.f32 %v5013, 0.0
      %v5030 = vmax.f32 %v5014, 0.0
      %v5031 = vmax.f32 %v5015, 0.0
      %v5032 = vmax.f32 %v5016, 0.0
      %v5033 = vmax.f32 %v5017, 0.0
      %v5034 = vmax.f32 %v5018, 0.0
      %v5035 = vmax.f32 %v5019, 0.0
      %v5036 = vmax.f32 %v5020, 0.0
      %v5037 = vmax.f32 %v5021, 0.0
      %v5038 = vld [vmem:[%s360] sm:$0xff]
      %v5039 = vld [vmem:[%s360 + $0x8] sm:$0xff]
      %v5040 = vld [vmem:[%s360 + $0x10] sm:$0xff]
      %v5041 = vld [vmem:[%s360 + $0x18] sm:$0xff]
      %v5042 = vld [vmem:[%s360 + $0x20] sm:$0xff]
      %v5043 = vld [vmem:[%s360 + $0x28] sm:$0xff]
      %v5044 = vld [vmem:[%s360 + $0x30] sm:$0xff]
      %v5045 = vld [vmem:[%s360 + $0x38] sm:$0xff]
      %v5046 = vld [vmem:[%s360 + $0x40] sm:$0xff]
      %v5047 = vld [vmem:[%s360 + $0x48] sm:$0xff]
      %v5048 = vld [vmem:[%s360 + $0x50] sm:$0xff]
      %v5049 = vld [vmem:[%s360 + $0x58] sm:$0xff]
      %v5050 = vld [vmem:[%s360 + $0x60] sm:$0xff]
      %v5051 = vld [vmem:[%s360 + $0x68] sm:$0xff]
      %v5052 = vld [vmem:[%s360 + $0x70] sm:$0xff]
      %v5053 = vld [vmem:[%s360 + $0x78] sm:$0xff]
      %v5054 = vadd.f32 %v5022, %v5038
      %v5055 = vadd.f32 %v5023, %v5039
      %v5056 = vadd.f32 %v5024, %v5040
      %v5057 = vadd.f32 %v5025, %v5041
      %v5058 = vadd.f32 %v5026, %v5042
      %v5059 = vadd.f32 %v5027, %v5043
      %v5060 = vadd.f32 %v5028, %v5044
      %v5061 = vadd.f32 %v5029, %v5045
      %v5062 = vadd.f32 %v5030, %v5046
      %v5063 = vadd.f32 %v5031, %v5047
      %v5064 = vadd.f32 %v5032, %v5048
      %v5065 = vadd.f32 %v5033, %v5049
      %v5066 = vadd.f32 %v5034, %v5050
      %v5067 = vadd.f32 %v5035, %v5051
      %v5068 = vadd.f32 %v5036, %v5052
      %v5069 = vadd.f32 %v5037, %v5053
      %5070 = vst.msk [vmem:[%s389] sm:$0xff] %vm420, %v5054
      %5071 = vst.msk [vmem:[%s389 + $0x8] sm:$0xff] %vm420, %v5055
      %5072 = vst.msk [vmem:[%s389 + $0x10] sm:$0xff] %vm420, %v5056
      %5073 = vst.msk [vmem:[%s389 + $0x18] sm:$0xff] %vm420, %v5057
      %5074 = vst.msk [vmem:[%s389 + $0x20] sm:$0xff] %vm420, %v5058
      %5075 = vst.msk [vmem:[%s389 + $0x28] sm:$0xff] %vm420, %v5059
      %5076 = vst.msk [vmem:[%s389 + $0x30] sm:$0xff] %vm420, %v5060
      %5077 = vst.msk [vmem:[%s389 + $0x38] sm:$0xff] %vm420, %v5061
      %5078 = vst.msk [vmem:[%s389 + $0x40] sm:$0xff] %vm420, %v5062
      %5079 = vst.msk [vmem:[%s389 + $0x48] sm:$0xff] %vm420, %v5063
      %5080 = vst.msk [vmem:[%s389 + $0x50] sm:$0xff] %vm420, %v5064
      %5081 = vst.msk [vmem:[%s389 + $0x58] sm:$0xff] %vm420, %v5065
      %5082 = vst.msk [vmem:[%s389 + $0x60] sm:$0xff] %vm420, %v5066
      %5083 = vst.msk [vmem:[%s389 + $0x68] sm:$0xff] %vm420, %v5067
      %5084 = vst.msk [vmem:[%s389 + $0x70] sm:$0xff] %vm420, %v5068
      %5085 = vst.msk [vmem:[%s389 + $0x78] sm:$0xff] %vm420, %v5069
      %s5086 = smul.u32 8, %s23
      %p5087 = scmp.lt.s32.totalorder %s22, 1
      %s5088 = scalar_select %p5087, %s22, 1
      %p5089 = scmp.lt.s32.totalorder %s5086, 15
      %s5090 = scalar_select %p5089, %s5086, 15
      %s5091 = smul.addr %s5090, 2
      %s5092 = smul.addr %s5088, 32
      %s5093 = sadd.s32 %s5091, %s5092
      %s5094 = smul.addr %s5093, 8
      %s5095 = scalar_lea.vmem %s7, %s5094
      // Predicated region
      $region49: #{tpu_custom_call.1} parent=47 // pred_check
        %p5096 = pneg %p218
      $region50: #{tpu_custom_call.1} parent=47 // pred_check_branch
        %5098 = sbr.rel (%p5096) target = $region52
      $region51: #{tpu_custom_call.1} parent=47 // pred_region
        %s5099 = smul.u32 8, %s23
      $region52: #{tpu_custom_call.1} parent=47 // pred_fallthru
        _
    $region48: #{tpu_custom_call.1} parent=5 // pred_fallthru
      _
    %p5100 = scmp.le.s32.totalorder 2, %s13
    // Predicated region
    $region53: #{tpu_custom_call.1} parent=5 // pred_check
      %p5101 = pneg %p5100
    $region54: #{tpu_custom_call.1} parent=5 // pred_check_branch
      %5103 = sbr.rel (%p5101) target = $region56
    $region55: #{tpu_custom_call.1} parent=5 // pred_region
      %s5104 = ssub.s32 %s13, 2
      // Predicated region
      $region57: #{tpu_custom_call.1} parent=55 // pred_check
        %p5105 = pneg %p224
      $region58: #{tpu_custom_call.1} parent=55 // pred_check_branch
        %5107 = sbr.rel (%p5105) target = $region60
      $region59: #{tpu_custom_call.1} parent=55 // pred_region
        %s5108 = smul.u32 8, %s25
        %p5109 = scmp.lt.s32.totalorder %s24, 1
        %s5110 = scalar_select %p5109, %s24, 1
        %p5111 = scmp.lt.s32.totalorder %s5108, 15
        %s5112 = scalar_select %p5111, %s5108, 15
        %s5113 = smul.addr %s5112, 2
        %s5114 = smul.addr %s5110, 32
        %s5115 = sadd.s32 %s5113, %s5114
        %s5116 = smul.addr %s5115, 8
        %s5117 = scalar_lea.vmem %s7, %s5116
      $region60: #{tpu_custom_call.1} parent=55 // pred_fallthru
        _
    $region56: #{tpu_custom_call.1} parent=5 // pred_fallthru
      _
  $region6: #{tpu_custom_call.1} parent=0 // loop_footer
    %s17 = sadd.s32 1, %s13
  $region7: #{tpu_custom_call.1} parent=0 // loop_footer_branch
    %12 = sbr.rel target = $region3
  $region8: #{tpu_custom_call.1} parent=0 // loop_exit
    _

</llo_original>
